<compile_context>
chip_gen: v5e
topology: v5e:2x2
jax: 0.10.0
libtpu: 0.0.40
codegen_flags: <defaults>
</compile_context>

<pallas_src>
import functools

import jax
import jax.numpy as jnp
from jax.experimental import pallas as pl
from jax.experimental.pallas import tpu as pltpu


# -----------------------------------------------------------------------------
# Fused kernel: one grid step == one batch element (full H x W x C slab in VMEM)
# -----------------------------------------------------------------------------
def _time_conv_block_kernel(x_ref, w1_ref, b1_ref, wu1_ref, s1_ref,
                            wu2_ref, s2_ref, sew1_ref, sew2_ref,
                            o_ref,
                            pad1_ref, col1_ref, pad2_ref, col2_ref,
                            *, K1, W, W1, H, C_in, C_out):
    PAD1 = K1 // 2

    # ---- Stage 1: conv1, kernel (1, K1), padding (0, PAD1) ----------------------
    # Zero halo buffer + interior write (in-kernel padding), then im2col into a
    # VMEM scratch so the whole conv is ONE MXU matmul with contraction K1*C_in.
    pad1_ref[...] = jnp.zeros_like(pad1_ref)
    pad1_ref[:, PAD1:PAD1 + W, :] = x_ref[0]
    for k in range(K1):  # static unroll (K1 = 10)
        col1_ref[:, :, k * C_in:(k + 1) * C_in] = pad1_ref[:, k:k + W1, :]
    patches = col1_ref[...].astype(jnp.bfloat16).reshape(H * W1, K1 * C_in)
    y = jnp.dot(patches, w1_ref[...], preferred_element_type=jnp.float32)
    y = y + b1_ref[...]                               # (H*W1, C_out), f32, no ReLU

    # ---- Stages 2 & 3: TemporalConvUnit = conv(1,3) pad (0,1) + eval-BN + ReLU --
    # (Dropout(0.25) is identity in eval mode; BN scale is pre-folded into the
    #  conv weights in the wrapper, so only the shift add remains here.)
    pad2_ref[...] = jnp.zeros_like(pad2_ref)          # halo stays zero for both units

    def unit(y_flat, wu_ref, shift_ref):
        pad2_ref[:, 1:1 + W1, :] = y_flat.reshape(H, W1, C_out)
        for k in range(3):                            # static unroll
            col2_ref[:, :, k * C_out:(k + 1) * C_out] = pad2_ref[:, k:k + W1, :]
        p = col2_ref[...].astype(jnp.bfloat16).reshape(H * W1, 3 * C_out)
        z = jnp.dot(p, wu_ref[...], preferred_element_type=jnp.float32)
        return jnp.maximum(z + shift_ref[...], 0.0)   # (H*W1, C_out) f32

    y = unit(y, wu1_ref, s1_ref)
    y = unit(y, wu2_ref, s2_ref)

    # ---- SE epilogue: global avg pool -> FC -> ReLU -> FC -> sigmoid -> gate ----
    pooled = jnp.mean(y, axis=0, keepdims=True)                              # (1, C)
    z = jnp.maximum(jnp.dot(pooled, sew1_ref[...],
                            preferred_element_type=jnp.float32), 0.0)        # (1, C//r)
    gate = jax.nn.sigmoid(jnp.dot(z, sew2_ref[...],
                                  preferred_element_type=jnp.float32))       # (1, C)
    o_ref[...] = (y * gate).reshape(1, H, W1, C_out).astype(o_ref.dtype)


# -----------------------------------------------------------------------------
# Wrapper: layout conversion, BN folding, weight flattening, pallas_call
# -----------------------------------------------------------------------------
def _fold_unit_params(u, eps=1e-5):
    """Fold eval-mode BatchNorm into the conv: W' = W*scale (per C_out), shift."""
    scale = u['bn_gamma'] / jnp.sqrt(u['bn_var'] + eps)                # (C_out,)
    w = u['conv_w'] * scale[None, None, :]                             # (3, C, C)
    shift = u['bn_beta'] + (u['conv_b'] - u['bn_mean']) * scale        # (C_out,)
    return (w.reshape(-1, w.shape[-1]).astype(jnp.bfloat16),
            shift.reshape(1, -1).astype(jnp.float32))


def time_conv_block_forward(x_nchw, params):
    B, C_in, H, W = x_nchw.shape
    K1 = params['conv1_w'].shape[0]
    C_out = params['conv1_w'].shape[-1]
    PAD1 = K1 // 2
    W1 = W + 2 * PAD1 - K1 + 1      # = W + 1 for kernel 10 / pad 5

    # NCHW -> (B, H, W, C_in): every conv has kernel height 1, so each (b, h) row is
    # an independent time signal and channels sit on the lane (contraction) axis.
    x = jnp.transpose(x_nchw, (0, 2, 3, 1))

    # im2col-flattened weights (bf16 for the MXU), biases / shifts in f32.
    w1_flat = params['conv1_w'].reshape(K1 * C_in, C_out).astype(jnp.bfloat16)
    b1 = params['conv1_b'].reshape(1, C_out).astype(jnp.float32)
    wu1, s1 = _fold_unit_params(params['unit1'])
    wu2, s2 = _fold_unit_params(params['unit2'])
    sew1 = params['se_w1_t'].astype(jnp.float32)
    sew2 = params['se_w2_t'].astype(jnp.float32)
    Cr = sew1.shape[1]

    kernel = functools.partial(_time_conv_block_kernel, K1=K1, W=W, W1=W1,
                               H=H, C_in=C_in, C_out=C_out)

    def const_spec(*shape):
        # Constant block index across the grid -> weights stay resident in VMEM.
        return pl.BlockSpec(shape, lambda b: (0,) * len(shape))

    out = pl.pallas_call(
        kernel,
        out_shape=jax.ShapeDtypeStruct((B, H, W1, C_out), jnp.float32),
        grid=(B,),
        in_specs=[
            pl.BlockSpec((1, H, W, C_in), lambda b: (b, 0, 0, 0)),   # activations
            const_spec(K1 * C_in, C_out),                            # conv1 weight
            const_spec(1, C_out),                                    # conv1 bias
            const_spec(3 * C_out, C_out),                            # unit1 weight*scale
            const_spec(1, C_out),                                    # unit1 shift
            const_spec(3 * C_out, C_out),                            # unit2 weight*scale
            const_spec(1, C_out),                                    # unit2 shift
            const_spec(C_out, Cr),                                   # SE fc1 (pre-T)
            const_spec(Cr, C_out),                                   # SE fc2 (pre-T)
        ],
        out_specs=pl.BlockSpec((1, H, W1, C_out), lambda b: (b, 0, 0, 0)),
        scratch_shapes=[
            pltpu.VMEM((H, W + 2 * PAD1, C_in), jnp.float32),   # conv1 padded input
            pltpu.VMEM((H, W1, K1 * C_in), jnp.float32),        # conv1 im2col
            pltpu.VMEM((H, W1 + 2, C_out), jnp.float32),        # unit padded input (shared)
            pltpu.VMEM((H, W1, 3 * C_out), jnp.float32),        # unit im2col (shared)
        ],
        compiler_params=pltpu.CompilerParams(
            dimension_semantics=("parallel",),          # batch axis: megacore / v7x 2-TC
            vmem_limit_bytes=32 * 1024 * 1024,          # explicit, safe on v5e/v6e/v7x
        ),
    )(x, w1_flat, b1, wu1, s1, wu2, s2, sew1, sew2)

    # (B, H, W1, C) -> NCHW
    return jnp.transpose(out, (0, 3, 1, 2))


# -----------------------------------------------------------------------------
# Parameters & pure-JAX reference (for a loose-tolerance sanity check)
# -----------------------------------------------------------------------------
def init_params(key, c_in, c_out, reduction=16):
    ks = jax.random.split(key, 8)
    p = {
        # torch conv1.weight is (C_out, C_in, 1, 10); stored here as (K, C_in, C_out)
        'conv1_w': 0.1 * jax.random.normal(ks[0], (10, c_in, c_out), jnp.float32),
        'conv1_b': 0.1 * jax.random.normal(ks[1], (c_out,), jnp.float32),
    }
    for i, name in enumerate(('unit1', 'unit2')):
        p[name] = {
            'conv_w': 0.1 * jax.random.normal(ks[2 + 2 * i], (3, c_out, c_out),
                                              jnp.float32),
            'conv_b': 0.1 * jax.random.normal(ks[3 + 2 * i], (c_out,), jnp.float32),
            'bn_gamma': jnp.ones((c_out,), jnp.float32),
            'bn_beta': jnp.zeros((c_out,), jnp.float32),
            'bn_mean': jnp.zeros((c_out,), jnp.float32),
            'bn_var': jnp.ones((c_out,), jnp.float32),
        }
    cr = c_out // reduction
    # torch fc weights are (out, in); stored pre-transposed for y @ W.T
    p['se_w1_t'] = 0.1 * jax.random.normal(ks[6], (c_out, cr), jnp.float32)
    p['se_w2_t'] = 0.1 * jax.random.normal(ks[7], (cr, c_out), jnp.float32)
    return p


def reference_forward(x_nchw, params, eps=1e-5):
    x = jnp.transpose(x_nchw, (0, 2, 3, 1))      # (B, H, W, C_in)

    def conv1d(x, w_kio, pad):
        K = w_kio.shape[0]
        W_in = x.shape[2]
        W_out = W_in + 2 * pad - K + 1
        xp = jnp.pad(x, ((0, 0), (0, 0), (pad, pad), (0, 0)))
        return sum(jnp.einsum('bhwc,cd->bhwd', xp[:, :, k:k + W_out, :], w_kio[k])
                   for k in range(K))

    y = conv1d(x, params['conv1_w'], 5) + params['conv1_b']
    for name in ('unit1', 'unit2'):
        u = params[name]
        scale = u['bn_gamma'] / jnp.sqrt(u['bn_var'] + eps)
        shift = u['bn_beta'] + (u['conv_b'] - u['bn_mean']) * scale
        y = jnp.maximum(conv1d(y, u['conv_w'], 1) * scale + shift, 0.0)
    pooled = jnp.mean(y, axis=(1, 2))                                    # (B, C)
    z = jnp.maximum(pooled @ params['se_w1_t'], 0.0)
    gate = jax.nn.sigmoid(z @ params['se_w2_t'])                         # (B, C)
    y = y * gate[:, None, None, :]
    return jnp.transpose(y, (0, 3, 1, 2))


if __name__ == "__main__":
    key = jax.random.PRNGKey(0)
    k_x, k_p = jax.random.split(key)

    B, C_in, H, W = 2, 4, 4, 16
    C_out = 32  # must be >= reduction (16) so the SE bottleneck is non-empty

    x = jax.random.normal(k_x, (B, C_in, H, W), jnp.float32)
    params = init_params(k_p, C_in, C_out)

    out = jax.block_until_ready(time_conv_block_forward(x, params))

    # PyTorch shape check: conv1 with kernel 10 / pad 5 grows W by exactly 1.
    assert out.shape == (B, C_out, H, W + 1), out.shape
    assert bool(jnp.all(jnp.isfinite(out)))

    # Loose tolerance: kernel uses bf16 MXU inputs with f32 accumulation.
    ref = reference_forward(x, params)
    assert bool(jnp.allclose(out, ref, atol=5e-2, rtol=5e-2)), float(
        jnp.max(jnp.abs(out - ref)))

    print("KERNEL_OK")
</pallas_src>

<mosaic_0001>
module attributes {stable_mosaic.version = 11 : i64} {
  func.func @_time_conv_block_kernel(%arg0: i32, %arg1: memref<1x4x16x4xf32, #tpu.memory_space<vmem>>, %arg2: memref<40x32xbf16, #tpu.memory_space<vmem>>, %arg3: memref<1x32xf32, #tpu.memory_space<vmem>>, %arg4: memref<96x32xbf16, #tpu.memory_space<vmem>>, %arg5: memref<1x32xf32, #tpu.memory_space<vmem>>, %arg6: memref<96x32xbf16, #tpu.memory_space<vmem>>, %arg7: memref<1x32xf32, #tpu.memory_space<vmem>>, %arg8: memref<32x2xf32, #tpu.memory_space<vmem>>, %arg9: memref<2x32xf32, #tpu.memory_space<vmem>>, %arg10: memref<1x4x17x32xf32, #tpu.memory_space<vmem>>, %arg11: memref<4x26x4xf32, #tpu.memory_space<vmem>>, %arg12: memref<4x17x40xf32, #tpu.memory_space<vmem>>, %arg13: memref<4x19x32xf32, #tpu.memory_space<vmem>>, %arg14: memref<4x17x96xf32, #tpu.memory_space<vmem>>) attributes {dimension_semantics = [#tpu.dimension_semantics<parallel>], iteration_bounds = array<i64: 2>, scalar_prefetch = 0 : i64, scratch_operands = 4 : i64, tpu.core_type = #tpu.core_type<tc>, window_params = [{transform_indices = @transform_0, window_bounds = array<i64: 1, 4, 16, 4>}, {pipeline_mode = #tpu.pipeline_mode<synchronous>, transform_indices = @transform_1, window_bounds = array<i64: 40, 32>}, {pipeline_mode = #tpu.pipeline_mode<synchronous>, transform_indices = @transform_2, window_bounds = array<i64: 1, 32>}, {pipeline_mode = #tpu.pipeline_mode<synchronous>, transform_indices = @transform_3, window_bounds = array<i64: 96, 32>}, {pipeline_mode = #tpu.pipeline_mode<synchronous>, transform_indices = @transform_4, window_bounds = array<i64: 1, 32>}, {pipeline_mode = #tpu.pipeline_mode<synchronous>, transform_indices = @transform_5, window_bounds = array<i64: 96, 32>}, {pipeline_mode = #tpu.pipeline_mode<synchronous>, transform_indices = @transform_6, window_bounds = array<i64: 1, 32>}, {pipeline_mode = #tpu.pipeline_mode<synchronous>, transform_indices = @transform_7, window_bounds = array<i64: 32, 2>}, {pipeline_mode = #tpu.pipeline_mode<synchronous>, transform_indices = @transform_8, window_bounds = array<i64: 2, 32>}, {transform_indices = @transform_9, window_bounds = array<i64: 1, 4, 17, 32>}]} {
    %cst = arith.constant 0.000000e+00 : f32
    %0 = vector.broadcast %cst : f32 to vector<4x26x4xf32>
    %c0 = arith.constant 0 : index
    %c0_0 = arith.constant 0 : index
    %c0_1 = arith.constant 0 : index
    %1 = vector.load %arg11[%c0, %c0_0, %c0_1] : memref<4x26x4xf32, #tpu.memory_space<vmem>>, vector<4x26x4xf32>
    tpu.vector_store %arg11[%c0, %c0_0, %c0_1], %0 {strides = array<i32>} : memref<4x26x4xf32, #tpu.memory_space<vmem>>, vector<4x26x4xf32>,
    %c0_2 = arith.constant 0 : index
    %c0_3 = arith.constant 0 : index
    %c0_4 = arith.constant 0 : index
    %c0_5 = arith.constant 0 : index
    %2 = vector.load %arg1[%c0_2, %c0_3, %c0_4, %c0_5] : memref<1x4x16x4xf32, #tpu.memory_space<vmem>>, vector<1x4x16x4xf32>
    %3 = vector.shape_cast %2 : vector<1x4x16x4xf32> to vector<4x16x4xf32>
    %c0_6 = arith.constant 0 : index
    %c5 = arith.constant 5 : index
    %c0_7 = arith.constant 0 : index
    %4 = vector.load %arg11[%c0_6, %c5, %c0_7] : memref<4x26x4xf32, #tpu.memory_space<vmem>>, vector<4x16x4xf32>
    tpu.vector_store %arg11[%c0_6, %c5, %c0_7], %3 {strides = array<i32>} : memref<4x26x4xf32, #tpu.memory_space<vmem>>, vector<4x16x4xf32>,
    %c0_8 = arith.constant 0 : index
    %c0_9 = arith.constant 0 : index
    %c0_10 = arith.constant 0 : index
    %5 = vector.load %arg11[%c0_8, %c0_9, %c0_10] : memref<4x26x4xf32, #tpu.memory_space<vmem>>, vector<4x17x4xf32>
    %c0_11 = arith.constant 0 : index
    %c0_12 = arith.constant 0 : index
    %c0_13 = arith.constant 0 : index
    %6 = vector.load %arg12[%c0_11, %c0_12, %c0_13] : memref<4x17x40xf32, #tpu.memory_space<vmem>>, vector<4x17x4xf32>
    tpu.vector_store %arg12[%c0_11, %c0_12, %c0_13], %5 {strides = array<i32>} : memref<4x17x40xf32, #tpu.memory_space<vmem>>, vector<4x17x4xf32>,
    %c0_14 = arith.constant 0 : index
    %c1 = arith.constant 1 : index
    %c0_15 = arith.constant 0 : index
    %7 = vector.load %arg11[%c0_14, %c1, %c0_15] : memref<4x26x4xf32, #tpu.memory_space<vmem>>, vector<4x17x4xf32>
    %c0_16 = arith.constant 0 : index
    %c0_17 = arith.constant 0 : index
    %c4 = arith.constant 4 : index
    %8 = vector.load %arg12[%c0_16, %c0_17, %c4] : memref<4x17x40xf32, #tpu.memory_space<vmem>>, vector<4x17x4xf32>
    tpu.vector_store %arg12[%c0_16, %c0_17, %c4], %7 {strides = array<i32>} : memref<4x17x40xf32, #tpu.memory_space<vmem>>, vector<4x17x4xf32>,
    %c0_18 = arith.constant 0 : index
    %c2 = arith.constant 2 : index
    %c0_19 = arith.constant 0 : index
    %9 = vector.load %arg11[%c0_18, %c2, %c0_19] : memref<4x26x4xf32, #tpu.memory_space<vmem>>, vector<4x17x4xf32>
    %c0_20 = arith.constant 0 : index
    %c0_21 = arith.constant 0 : index
    %c8 = arith.constant 8 : index
    %10 = vector.load %arg12[%c0_20, %c0_21, %c8] : memref<4x17x40xf32, #tpu.memory_space<vmem>>, vector<4x17x4xf32>
    tpu.vector_store %arg12[%c0_20, %c0_21, %c8], %9 {strides = array<i32>} : memref<4x17x40xf32, #tpu.memory_space<vmem>>, vector<4x17x4xf32>,
    %c0_22 = arith.constant 0 : index
    %c3 = arith.constant 3 : index
    %c0_23 = arith.constant 0 : index
    %11 = vector.load %arg11[%c0_22, %c3, %c0_23] : memref<4x26x4xf32, #tpu.memory_space<vmem>>, vector<4x17x4xf32>
    %c0_24 = arith.constant 0 : index
    %c0_25 = arith.constant 0 : index
    %c12 = arith.constant 12 : index
    %12 = vector.load %arg12[%c0_24, %c0_25, %c12] : memref<4x17x40xf32, #tpu.memory_space<vmem>>, vector<4x17x4xf32>
    tpu.vector_store %arg12[%c0_24, %c0_25, %c12], %11 {strides = array<i32>} : memref<4x17x40xf32, #tpu.memory_space<vmem>>, vector<4x17x4xf32>,
    %c0_26 = arith.constant 0 : index
    %c4_27 = arith.constant 4 : index
    %c0_28 = arith.constant 0 : index
    %13 = vector.load %arg11[%c0_26, %c4_27, %c0_28] : memref<4x26x4xf32, #tpu.memory_space<vmem>>, vector<4x17x4xf32>
    %c0_29 = arith.constant 0 : index
    %c0_30 = arith.constant 0 : index
    %c16 = arith.constant 16 : index
    %14 = vector.load %arg12[%c0_29, %c0_30, %c16] : memref<4x17x40xf32, #tpu.memory_space<vmem>>, vector<4x17x4xf32>
    tpu.vector_store %arg12[%c0_29, %c0_30, %c16], %13 {strides = array<i32>} : memref<4x17x40xf32, #tpu.memory_space<vmem>>, vector<4x17x4xf32>,
    %c0_31 = arith.constant 0 : index
    %c5_32 = arith.constant 5 : index
    %c0_33 = arith.constant 0 : index
    %15 = vector.load %arg11[%c0_31, %c5_32, %c0_33] : memref<4x26x4xf32, #tpu.memory_space<vmem>>, vector<4x17x4xf32>
    %c0_34 = arith.constant 0 : index
    %c0_35 = arith.constant 0 : index
    %c20 = arith.constant 20 : index
    %16 = vector.load %arg12[%c0_34, %c0_35, %c20] : memref<4x17x40xf32, #tpu.memory_space<vmem>>, vector<4x17x4xf32>
    tpu.vector_store %arg12[%c0_34, %c0_35, %c20], %15 {strides = array<i32>} : memref<4x17x40xf32, #tpu.memory_space<vmem>>, vector<4x17x4xf32>,
    %c0_36 = arith.constant 0 : index
    %c6 = arith.constant 6 : index
    %c0_37 = arith.constant 0 : index
    %17 = vector.load %arg11[%c0_36, %c6, %c0_37] : memref<4x26x4xf32, #tpu.memory_space<vmem>>, vector<4x17x4xf32>
    %c0_38 = arith.constant 0 : index
    %c0_39 = arith.constant 0 : index
    %c24 = arith.constant 24 : index
    %18 = vector.load %arg12[%c0_38, %c0_39, %c24] : memref<4x17x40xf32, #tpu.memory_space<vmem>>, vector<4x17x4xf32>
    tpu.vector_store %arg12[%c0_38, %c0_39, %c24], %17 {strides = array<i32>} : memref<4x17x40xf32, #tpu.memory_space<vmem>>, vector<4x17x4xf32>,
    %c0_40 = arith.constant 0 : index
    %c7 = arith.constant 7 : index
    %c0_41 = arith.constant 0 : index
    %19 = vector.load %arg11[%c0_40, %c7, %c0_41] : memref<4x26x4xf32, #tpu.memory_space<vmem>>, vector<4x17x4xf32>
    %c0_42 = arith.constant 0 : index
    %c0_43 = arith.constant 0 : index
    %c28 = arith.constant 28 : index
    %20 = vector.load %arg12[%c0_42, %c0_43, %c28] : memref<4x17x40xf32, #tpu.memory_space<vmem>>, vector<4x17x4xf32>
    tpu.vector_store %arg12[%c0_42, %c0_43, %c28], %19 {strides = array<i32>} : memref<4x17x40xf32, #tpu.memory_space<vmem>>, vector<4x17x4xf32>,
    %c0_44 = arith.constant 0 : index
    %c8_45 = arith.constant 8 : index
    %c0_46 = arith.constant 0 : index
    %21 = vector.load %arg11[%c0_44, %c8_45, %c0_46] : memref<4x26x4xf32, #tpu.memory_space<vmem>>, vector<4x17x4xf32>
    %c0_47 = arith.constant 0 : index
    %c0_48 = arith.constant 0 : index
    %c32 = arith.constant 32 : index
    %22 = vector.load %arg12[%c0_47, %c0_48, %c32] : memref<4x17x40xf32, #tpu.memory_space<vmem>>, vector<4x17x4xf32>
    tpu.vector_store %arg12[%c0_47, %c0_48, %c32], %21 {strides = array<i32>} : memref<4x17x40xf32, #tpu.memory_space<vmem>>, vector<4x17x4xf32>,
    %c0_49 = arith.constant 0 : index
    %c9 = arith.constant 9 : index
    %c0_50 = arith.constant 0 : index
    %23 = vector.load %arg11[%c0_49, %c9, %c0_50] : memref<4x26x4xf32, #tpu.memory_space<vmem>>, vector<4x17x4xf32>
    %c0_51 = arith.constant 0 : index
    %c0_52 = arith.constant 0 : index
    %c36 = arith.constant 36 : index
    %24 = vector.load %arg12[%c0_51, %c0_52, %c36] : memref<4x17x40xf32, #tpu.memory_space<vmem>>, vector<4x17x4xf32>
    tpu.vector_store %arg12[%c0_51, %c0_52, %c36], %23 {strides = array<i32>} : memref<4x17x40xf32, #tpu.memory_space<vmem>>, vector<4x17x4xf32>,
    %c0_53 = arith.constant 0 : index
    %c0_54 = arith.constant 0 : index
    %c0_55 = arith.constant 0 : index
    %25 = vector.load %arg12[%c0_53, %c0_54, %c0_55] : memref<4x17x40xf32, #tpu.memory_space<vmem>>, vector<4x17x40xf32>
    %26 = arith.truncf %25 : vector<4x17x40xf32> to vector<4x17x40xbf16>
    %27 = vector.shape_cast %26 : vector<4x17x40xbf16> to vector<68x40xbf16>
    %c0_56 = arith.constant 0 : index
    %c0_57 = arith.constant 0 : index
    %28 = vector.load %arg2[%c0_56, %c0_57] : memref<40x32xbf16, #tpu.memory_space<vmem>>, vector<40x32xbf16>
    %cst_58 = arith.constant dense<0.000000e+00> : vector<68x32xf32>
    %29 = tpu.matmul %27, %28, %cst_58 {dimension_numbers = #tpu.dot_dimension_numbers<[1], [0], [0], [1], [0, 0, 1, 1], [], []>} : vector<68x40xbf16>, vector<40x32xbf16>, vector<68x32xf32> -> vector<68x32xf32>
    %c0_59 = arith.constant 0 : index
    %c0_60 = arith.constant 0 : index
    %30 = vector.load %arg3[%c0_59, %c0_60] : memref<1x32xf32, #tpu.memory_space<vmem>>, vector<1x32xf32>
    %31 = vector.broadcast %30 : vector<1x32xf32> to vector<68x32xf32>
    %32 = arith.addf %29, %31 : vector<68x32xf32>
    %cst_61 = arith.constant 0.000000e+00 : f32
    %33 = vector.broadcast %cst_61 : f32 to vector<4x19x32xf32>
    %c0_62 = arith.constant 0 : index
    %c0_63 = arith.constant 0 : index
    %c0_64 = arith.constant 0 : index
    %34 = vector.load %arg13[%c0_62, %c0_63, %c0_64] : memref<4x19x32xf32, #tpu.memory_space<vmem>>, vector<4x19x32xf32>
    tpu.vector_store %arg13[%c0_62, %c0_63, %c0_64], %33 {strides = array<i32>} : memref<4x19x32xf32, #tpu.memory_space<vmem>>, vector<4x19x32xf32>,
    %35 = vector.shape_cast %32 : vector<68x32xf32> to vector<4x17x32xf32>
    %c0_65 = arith.constant 0 : index
    %c1_66 = arith.constant 1 : index
    %c0_67 = arith.constant 0 : index
    %36 = vector.load %arg13[%c0_65, %c1_66, %c0_67] : memref<4x19x32xf32, #tpu.memory_space<vmem>>, vector<4x17x32xf32>
    tpu.vector_store %arg13[%c0_65, %c1_66, %c0_67], %35 {strides = array<i32>} : memref<4x19x32xf32, #tpu.memory_space<vmem>>, vector<4x17x32xf32>,
    %c0_68 = arith.constant 0 : index
    %c0_69 = arith.constant 0 : index
    %c0_70 = arith.constant 0 : index
    %37 = vector.load %arg13[%c0_68, %c0_69, %c0_70] : memref<4x19x32xf32, #tpu.memory_space<vmem>>, vector<4x17x32xf32>
    %c0_71 = arith.constant 0 : index
    %c0_72 = arith.constant 0 : index
    %c0_73 = arith.constant 0 : index
    %38 = vector.load %arg14[%c0_71, %c0_72, %c0_73] : memref<4x17x96xf32, #tpu.memory_space<vmem>>, vector<4x17x32xf32>
    tpu.vector_store %arg14[%c0_71, %c0_72, %c0_73], %37 {strides = array<i32>} : memref<4x17x96xf32, #tpu.memory_space<vmem>>, vector<4x17x32xf32>,
    %c0_74 = arith.constant 0 : index
    %c1_75 = arith.constant 1 : index
    %c0_76 = arith.constant 0 : index
    %39 = vector.load %arg13[%c0_74, %c1_75, %c0_76] : memref<4x19x32xf32, #tpu.memory_space<vmem>>, vector<4x17x32xf32>
    %c0_77 = arith.constant 0 : index
    %c0_78 = arith.constant 0 : index
    %c32_79 = arith.constant 32 : index
    %40 = vector.load %arg14[%c0_77, %c0_78, %c32_79] : memref<4x17x96xf32, #tpu.memory_space<vmem>>, vector<4x17x32xf32>
    tpu.vector_store %arg14[%c0_77, %c0_78, %c32_79], %39 {strides = array<i32>} : memref<4x17x96xf32, #tpu.memory_space<vmem>>, vector<4x17x32xf32>,
    %c0_80 = arith.constant 0 : index
    %c2_81 = arith.constant 2 : index
    %c0_82 = arith.constant 0 : index
    %41 = vector.load %arg13[%c0_80, %c2_81, %c0_82] : memref<4x19x32xf32, #tpu.memory_space<vmem>>, vector<4x17x32xf32>
    %c0_83 = arith.constant 0 : index
    %c0_84 = arith.constant 0 : index
    %c64 = arith.constant 64 : index
    %42 = vector.load %arg14[%c0_83, %c0_84, %c64] : memref<4x17x96xf32, #tpu.memory_space<vmem>>, vector<4x17x32xf32>
    tpu.vector_store %arg14[%c0_83, %c0_84, %c64], %41 {strides = array<i32>} : memref<4x17x96xf32, #tpu.memory_space<vmem>>, vector<4x17x32xf32>,
    %c0_85 = arith.constant 0 : index
    %c0_86 = arith.constant 0 : index
    %c0_87 = arith.constant 0 : index
    %43 = vector.load %arg14[%c0_85, %c0_86, %c0_87] : memref<4x17x96xf32, #tpu.memory_space<vmem>>, vector<4x17x96xf32>
    %44 = arith.truncf %43 : vector<4x17x96xf32> to vector<4x17x96xbf16>
    %45 = vector.shape_cast %44 : vector<4x17x96xbf16> to vector<68x96xbf16>
    %c0_88 = arith.constant 0 : index
    %c0_89 = arith.constant 0 : index
    %46 = vector.load %arg4[%c0_88, %c0_89] : memref<96x32xbf16, #tpu.memory_space<vmem>>, vector<96x32xbf16>
    %cst_90 = arith.constant dense<0.000000e+00> : vector<68x32xf32>
    %47 = tpu.matmul %45, %46, %cst_90 {dimension_numbers = #tpu.dot_dimension_numbers<[1], [0], [0], [1], [0, 0, 1, 1], [], []>} : vector<68x96xbf16>, vector<96x32xbf16>, vector<68x32xf32> -> vector<68x32xf32>
    %c0_91 = arith.constant 0 : index
    %c0_92 = arith.constant 0 : index
    %48 = vector.load %arg5[%c0_91, %c0_92] : memref<1x32xf32, #tpu.memory_space<vmem>>, vector<1x32xf32>
    %49 = vector.broadcast %48 : vector<1x32xf32> to vector<68x32xf32>
    %50 = arith.addf %47, %49 : vector<68x32xf32>
    %cst_93 = arith.constant 0.000000e+00 : f32
    %51 = vector.broadcast %cst_93 : f32 to vector<68x32xf32>
    %52 = arith.maximumf %50, %51 : vector<68x32xf32>
    %53 = vector.shape_cast %52 : vector<68x32xf32> to vector<4x17x32xf32>
    %c0_94 = arith.constant 0 : index
    %c1_95 = arith.constant 1 : index
    %c0_96 = arith.constant 0 : index
    %54 = vector.load %arg13[%c0_94, %c1_95, %c0_96] : memref<4x19x32xf32, #tpu.memory_space<vmem>>, vector<4x17x32xf32>
    tpu.vector_store %arg13[%c0_94, %c1_95, %c0_96], %53 {strides = array<i32>} : memref<4x19x32xf32, #tpu.memory_space<vmem>>, vector<4x17x32xf32>,
    %c0_97 = arith.constant 0 : index
    %c0_98 = arith.constant 0 : index
    %c0_99 = arith.constant 0 : index
    %55 = vector.load %arg13[%c0_97, %c0_98, %c0_99] : memref<4x19x32xf32, #tpu.memory_space<vmem>>, vector<4x17x32xf32>
    %c0_100 = arith.constant 0 : index
    %c0_101 = arith.constant 0 : index
    %c0_102 = arith.constant 0 : index
    %56 = vector.load %arg14[%c0_100, %c0_101, %c0_102] : memref<4x17x96xf32, #tpu.memory_space<vmem>>, vector<4x17x32xf32>
    tpu.vector_store %arg14[%c0_100, %c0_101, %c0_102], %55 {strides = array<i32>} : memref<4x17x96xf32, #tpu.memory_space<vmem>>, vector<4x17x32xf32>,
    %c0_103 = arith.constant 0 : index
    %c1_104 = arith.constant 1 : index
    %c0_105 = arith.constant 0 : index
    %57 = vector.load %arg13[%c0_103, %c1_104, %c0_105] : memref<4x19x32xf32, #tpu.memory_space<vmem>>, vector<4x17x32xf32>
    %c0_106 = arith.constant 0 : index
    %c0_107 = arith.constant 0 : index
    %c32_108 = arith.constant 32 : index
    %58 = vector.load %arg14[%c0_106, %c0_107, %c32_108] : memref<4x17x96xf32, #tpu.memory_space<vmem>>, vector<4x17x32xf32>
    tpu.vector_store %arg14[%c0_106, %c0_107, %c32_108], %57 {strides = array<i32>} : memref<4x17x96xf32, #tpu.memory_space<vmem>>, vector<4x17x32xf32>,
    %c0_109 = arith.constant 0 : index
    %c2_110 = arith.constant 2 : index
    %c0_111 = arith.constant 0 : index
    %59 = vector.load %arg13[%c0_109, %c2_110, %c0_111] : memref<4x19x32xf32, #tpu.memory_space<vmem>>, vector<4x17x32xf32>
    %c0_112 = arith.constant 0 : index
    %c0_113 = arith.constant 0 : index
    %c64_114 = arith.constant 64 : index
    %60 = vector.load %arg14[%c0_112, %c0_113, %c64_114] : memref<4x17x96xf32, #tpu.memory_space<vmem>>, vector<4x17x32xf32>
    tpu.vector_store %arg14[%c0_112, %c0_113, %c64_114], %59 {strides = array<i32>} : memref<4x17x96xf32, #tpu.memory_space<vmem>>, vector<4x17x32xf32>,
    %c0_115 = arith.constant 0 : index
    %c0_116 = arith.constant 0 : index
    %c0_117 = arith.constant 0 : index
    %61 = vector.load %arg14[%c0_115, %c0_116, %c0_117] : memref<4x17x96xf32, #tpu.memory_space<vmem>>, vector<4x17x96xf32>
    %62 = arith.truncf %61 : vector<4x17x96xf32> to vector<4x17x96xbf16>
    %63 = vector.shape_cast %62 : vector<4x17x96xbf16> to vector<68x96xbf16>
    %c0_118 = arith.constant 0 : index
    %c0_119 = arith.constant 0 : index
    %64 = vector.load %arg6[%c0_118, %c0_119] : memref<96x32xbf16, #tpu.memory_space<vmem>>, vector<96x32xbf16>
    %cst_120 = arith.constant dense<0.000000e+00> : vector<68x32xf32>
    %65 = tpu.matmul %63, %64, %cst_120 {dimension_numbers = #tpu.dot_dimension_numbers<[1], [0], [0], [1], [0, 0, 1, 1], [], []>} : vector<68x96xbf16>, vector<96x32xbf16>, vector<68x32xf32> -> vector<68x32xf32>
    %c0_121 = arith.constant 0 : index
    %c0_122 = arith.constant 0 : index
    %66 = vector.load %arg7[%c0_121, %c0_122] : memref<1x32xf32, #tpu.memory_space<vmem>>, vector<1x32xf32>
    %67 = vector.broadcast %66 : vector<1x32xf32> to vector<68x32xf32>
    %68 = arith.addf %65, %67 : vector<68x32xf32>
    %cst_123 = arith.constant 0.000000e+00 : f32
    %69 = vector.broadcast %cst_123 : f32 to vector<68x32xf32>
    %70 = arith.maximumf %68, %69 : vector<68x32xf32>
    %cst_124 = arith.constant dense<0.000000e+00> : vector<32xf32>
    %71 = vector.multi_reduction <add>, %70, %cst_124 [0] : vector<68x32xf32> to vector<32xf32>
    %72 = vector.shape_cast %71 : vector<32xf32> to vector<1x32xf32>
    %cst_125 = arith.constant 6.800000e+01 : f32
    %73 = vector.broadcast %cst_125 : f32 to vector<1x32xf32>
    %74 = arith.divf %72, %73 : vector<1x32xf32>
    %c0_126 = arith.constant 0 : index
    %c0_127 = arith.constant 0 : index
    %75 = vector.load %arg8[%c0_126, %c0_127] : memref<32x2xf32, #tpu.memory_space<vmem>>, vector<32x2xf32>
    %cst_128 = arith.constant dense<0.000000e+00> : vector<1x2xf32>
    %76 = tpu.matmul %74, %75, %cst_128 {dimension_numbers = #tpu.dot_dimension_numbers<[1], [0], [0], [1], [0, 0, 1, 1], [], []>} : vector<1x32xf32>, vector<32x2xf32>, vector<1x2xf32> -> vector<1x2xf32>
    %cst_129 = arith.constant 0.000000e+00 : f32
    %77 = vector.broadcast %cst_129 : f32 to vector<1x2xf32>
    %78 = arith.maximumf %76, %77 : vector<1x2xf32>
    %c0_130 = arith.constant 0 : index
    %c0_131 = arith.constant 0 : index
    %79 = vector.load %arg9[%c0_130, %c0_131] : memref<2x32xf32, #tpu.memory_space<vmem>>, vector<2x32xf32>
    %cst_132 = arith.constant dense<0.000000e+00> : vector<1x32xf32>
    %80 = tpu.matmul %78, %79, %cst_132 {dimension_numbers = #tpu.dot_dimension_numbers<[1], [0], [0], [1], [0, 0, 1, 1], [], []>} : vector<1x2xf32>, vector<2x32xf32>, vector<1x32xf32> -> vector<1x32xf32>
    %81 = arith.negf %80 : vector<1x32xf32>
    %82 = math.exp %81 : vector<1x32xf32>
    %cst_133 = arith.constant 1.000000e+00 : f32
    %83 = vector.broadcast %cst_133 : f32 to vector<1x32xf32>
    %84 = arith.addf %83, %82 : vector<1x32xf32>
    %85 = arith.divf %83, %84 : vector<1x32xf32>
    %86 = vector.broadcast %85 : vector<1x32xf32> to vector<68x32xf32>
    %87 = arith.mulf %70, %86 : vector<68x32xf32>
    %88 = vector.shape_cast %87 : vector<68x32xf32> to vector<1x4x17x32xf32>
    %c0_134 = arith.constant 0 : index
    %c0_135 = arith.constant 0 : index
    %c0_136 = arith.constant 0 : index
    %c0_137 = arith.constant 0 : index
    %89 = vector.load %arg10[%c0_134, %c0_135, %c0_136, %c0_137] : memref<1x4x17x32xf32, #tpu.memory_space<vmem>>, vector<1x4x17x32xf32>
    tpu.vector_store %arg10[%c0_134, %c0_135, %c0_136, %c0_137], %88 {strides = array<i32>} : memref<1x4x17x32xf32, #tpu.memory_space<vmem>>, vector<1x4x17x32xf32>,
    return
  }
  func.func @transform_0(%arg0: i32) -> (i32, i32, i32, i32) {
    %c0_i32 = arith.constant 0 : i32
    %c0_i32_0 = arith.constant 0 : i32
    %c0_i32_1 = arith.constant 0 : i32
    %c0_i32_2 = arith.constant 0 : i32
    return %arg0, %c0_i32, %c0_i32_0, %c0_i32_1 : i32, i32, i32, i32
  }
  func.func @transform_1(%arg0: i32) -> (i32, i32) {
    %c0_i32 = arith.constant 0 : i32
    %c0_i32_0 = arith.constant 0 : i32
    %c0_i32_1 = arith.constant 0 : i32
    return %c0_i32, %c0_i32_0 : i32, i32
  }
  func.func @transform_2(%arg0: i32) -> (i32, i32) {
    %c0_i32 = arith.constant 0 : i32
    %c0_i32_0 = arith.constant 0 : i32
    %c0_i32_1 = arith.constant 0 : i32
    return %c0_i32, %c0_i32_0 : i32, i32
  }
  func.func @transform_3(%arg0: i32) -> (i32, i32) {
    %c0_i32 = arith.constant 0 : i32
    %c0_i32_0 = arith.constant 0 : i32
    %c0_i32_1 = arith.constant 0 : i32
    return %c0_i32, %c0_i32_0 : i32, i32
  }
  func.func @transform_4(%arg0: i32) -> (i32, i32) {
    %c0_i32 = arith.constant 0 : i32
    %c0_i32_0 = arith.constant 0 : i32
    %c0_i32_1 = arith.constant 0 : i32
    return %c0_i32, %c0_i32_0 : i32, i32
  }
  func.func @transform_5(%arg0: i32) -> (i32, i32) {
    %c0_i32 = arith.constant 0 : i32
    %c0_i32_0 = arith.constant 0 : i32
    %c0_i32_1 = arith.constant 0 : i32
    return %c0_i32, %c0_i32_0 : i32, i32
  }
  func.func @transform_6(%arg0: i32) -> (i32, i32) {
    %c0_i32 = arith.constant 0 : i32
    %c0_i32_0 = arith.constant 0 : i32
    %c0_i32_1 = arith.constant 0 : i32
    return %c0_i32, %c0_i32_0 : i32, i32
  }
  func.func @transform_7(%arg0: i32) -> (i32, i32) {
    %c0_i32 = arith.constant 0 : i32
    %c0_i32_0 = arith.constant 0 : i32
    %c0_i32_1 = arith.constant 0 : i32
    return %c0_i32, %c0_i32_0 : i32, i32
  }
  func.func @transform_8(%arg0: i32) -> (i32, i32) {
    %c0_i32 = arith.constant 0 : i32
    %c0_i32_0 = arith.constant 0 : i32
    %c0_i32_1 = arith.constant 0 : i32
    return %c0_i32, %c0_i32_0 : i32, i32
  }
  func.func @transform_9(%arg0: i32) -> (i32, i32, i32, i32) {
    %c0_i32 = arith.constant 0 : i32
    %c0_i32_0 = arith.constant 0 : i32
    %c0_i32_1 = arith.constant 0 : i32
    %c0_i32_2 = arith.constant 0 : i32
    return %arg0, %c0_i32, %c0_i32_0, %c0_i32_1 : i32, i32, i32, i32
  }
}

</mosaic_0001>

<llo_original>
// kernel: tpu_custom_call.1
$region0: #{tpu_custom_call.1}
  #allocation0 [shape = 'u32[]', space=smem, size = 0x4, offset = 0x4, fixed_abs, tag = 'smem constant byte address 0x4 - core index']
  #allocation1 [shape = 'u32[72,128]{1,0:T(1,128)}', space=vmem, size = 0x9000, scoped, tag = 'internal scratch']
  #allocation2 [shape = 'f32[4,26,4]{2,1,0:T(8,128)}', space=vmem, size = 0x10000, scoped, tag = 'scratch operand']
  #allocation3 [shape = 'f32[4,17,40]{2,1,0:T(8,128)}', space=vmem, size = 0xc000, scoped, tag = 'scratch operand']
  #allocation4 [shape = 'f32[4,19,32]{2,1,0:T(8,128)}', space=vmem, size = 0xc000, scoped, tag = 'scratch operand']
  #allocation5 [shape = 'f32[4,17,96]{2,1,0:T(8,128)}', space=vmem, size = 0xc000, scoped, tag = 'scratch operand']
  %s0 = inlined_call_operand.vmem [shape: f32[2,4,16,4], index: 0, kind: input, shape index: {}]
  %s1 = inlined_call_operand.vmem [shape: bf16[40,32], index: 1, kind: input, shape index: {}]
  %s2 = inlined_call_operand.vmem [shape: f32[1,32], index: 2, kind: input, shape index: {}]
  %s3 = inlined_call_operand.vmem [shape: bf16[96,32], index: 3, kind: input, shape index: {}]
  %s4 = inlined_call_operand.vmem [shape: f32[1,32], index: 4, kind: input, shape index: {}]
  %s5 = inlined_call_operand.vmem [shape: bf16[96,32], index: 5, kind: input, shape index: {}]
  %s6 = inlined_call_operand.vmem [shape: f32[1,32], index: 6, kind: input, shape index: {}]
  %s7 = inlined_call_operand.vmem [shape: f32[32,2], index: 7, kind: input, shape index: {}]
  %s8 = inlined_call_operand.vmem [shape: f32[2,32], index: 8, kind: input, shape index: {}]
  %s9 = inlined_call_operand.vmem [shape: f32[2,4,17,32], index: 9, kind: output, shape index: {}]
  %s10 = sld [smem:[#allocation0]]
  $region69: #{tpu_custom_call.1} parent=0
    _
  %s12 = ssub.s32 1, %s10
  %s13 = scalar_select 0, %s12, %s10
  loop: start=0, step=1, limit=4
  $region2: #{tpu_custom_call.1} parent=0 // loop_pre_header
    _
  $region3: #{tpu_custom_call.1} parent=0 // loop_header
    %s15 = sphi 0, %s19
    %p16 = scmp.ge.s32.totalorder %s15, 4
    %s25 = sphi 0, %s27
    %s28 = sphi 0, %s25
    %s29 = sphi 0, %s28
    %s45 = sphi 0, %s29
    %s49 = sphi 0, %s49
    %s51 = sphi 0, %s49
    %s52 = sphi 0, %s51
    %s66 = sphi 0, %s52
    %s70 = sphi 0, %s70
    %s72 = sphi 0, %s70
    %s73 = sphi 0, %s72
    %s87 = sphi 0, %s73
    %s91 = sphi 0, %s91
    %s93 = sphi 0, %s91
    %s94 = sphi 0, %s93
    %s108 = sphi 0, %s94
    %s112 = sphi 0, %s112
    %s114 = sphi 0, %s112
    %s115 = sphi 0, %s114
    %s129 = sphi 0, %s115
    %s133 = sphi 0, %s133
    %s135 = sphi 0, %s133
    %s136 = sphi 0, %s135
    %s150 = sphi 0, %s136
    %s154 = sphi 0, %s154
    %s156 = sphi 0, %s154
    %s157 = sphi 0, %s156
    %s171 = sphi 0, %s157
    %s175 = sphi 0, %s175
    %s177 = sphi 0, %s175
    %s178 = sphi 0, %s177
    %s192 = sphi 0, %s178
    %s196 = sphi 0, %s196
    %s198 = sphi 0, %s196
    %s199 = sphi 0, %s198
    %s213 = sphi 0, %s199
    %s219 = sphi 0, %s221
    %s222 = sphi 0, %s219
    %s223 = sphi 0, %s222
    %s239 = sphi 0, %s223
  $region4: #{tpu_custom_call.1} parent=0 // loop_header_branch
    %18 = sbr.rel (%p16) target = $region8
  $region5: #{tpu_custom_call.1} parent=0 // loop_body
    %s20 = ssub.s32 %s15, 1
    %s21 = ssub.s32 %s15, 2
    %s22 = sadd.s32 %s15, 1
    %s23 = ssub.s32 %s15, %s22
    %p24 = scmp.eq.s32.totalorder %s23, 0
    %s26 = sadd.s32 %s25, 1
    %s27 = scalar_select %p24, %s25, %s26
    %p30 = pneg %p24
    %p31 = scmp.eq.s32.totalorder %s15, 1
    %p32 = por %p30, %p31
    %p33 = scmp.ne.s32.totalorder %s25, %s28
    %p34 = scmp.eq.s32.totalorder %s15, 0
    %p35 = por %p33, %p34
    %p36 = scmp.ne.s32.totalorder %s25, %s28
    %p37 = scmp.eq.s32.totalorder %s20, 1
    %p38 = por %p36, %p37
    %p39 = scmp.ne.s32.totalorder %s28, %s29
    %p40 = scmp.eq.s32.totalorder %s20, 0
    %p41 = por %p39, %p40
    %p42 = scmp.ne.s32.totalorder %s28, %s29
    %p43 = scmp.eq.s32.totalorder %s21, 1
    %p44 = por %p42, %p43
    %p46 = scmp.ne.s32.totalorder %s29, %s45
    %p47 = scmp.eq.s32.totalorder %s21, 0
    %p48 = por %p46, %p47
    %s50 = sadd.s32 %s49, 1
    %p53 = scmp.eq.s32.totalorder %s15, 1
    %p54 = scmp.ne.s32.totalorder %s49, %s51
    %p55 = scmp.eq.s32.totalorder %s15, 0
    %p56 = por %p54, %p55
    %p57 = scmp.ne.s32.totalorder %s49, %s51
    %p58 = scmp.eq.s32.totalorder %s20, 1
    %p59 = por %p57, %p58
    %p60 = scmp.ne.s32.totalorder %s51, %s52
    %p61 = scmp.eq.s32.totalorder %s20, 0
    %p62 = por %p60, %p61
    %p63 = scmp.ne.s32.totalorder %s51, %s52
    %p64 = scmp.eq.s32.totalorder %s21, 1
    %p65 = por %p63, %p64
    %p67 = scmp.ne.s32.totalorder %s52, %s66
    %p68 = scmp.eq.s32.totalorder %s21, 0
    %p69 = por %p67, %p68
    %s71 = sadd.s32 %s70, 1
    %p74 = scmp.eq.s32.totalorder %s15, 1
    %p75 = scmp.ne.s32.totalorder %s70, %s72
    %p76 = scmp.eq.s32.totalorder %s15, 0
    %p77 = por %p75, %p76
    %p78 = scmp.ne.s32.totalorder %s70, %s72
    %p79 = scmp.eq.s32.totalorder %s20, 1
    %p80 = por %p78, %p79
    %p81 = scmp.ne.s32.totalorder %s72, %s73
    %p82 = scmp.eq.s32.totalorder %s20, 0
    %p83 = por %p81, %p82
    %p84 = scmp.ne.s32.totalorder %s72, %s73
    %p85 = scmp.eq.s32.totalorder %s21, 1
    %p86 = por %p84, %p85
    %p88 = scmp.ne.s32.totalorder %s73, %s87
    %p89 = scmp.eq.s32.totalorder %s21, 0
    %p90 = por %p88, %p89
    %s92 = sadd.s32 %s91, 1
    %p95 = scmp.eq.s32.totalorder %s15, 1
    %p96 = scmp.ne.s32.totalorder %s91, %s93
    %p97 = scmp.eq.s32.totalorder %s15, 0
    %p98 = por %p96, %p97
    %p99 = scmp.ne.s32.totalorder %s91, %s93
    %p100 = scmp.eq.s32.totalorder %s20, 1
    %p101 = por %p99, %p100
    %p102 = scmp.ne.s32.totalorder %s93, %s94
    %p103 = scmp.eq.s32.totalorder %s20, 0
    %p104 = por %p102, %p103
    %p105 = scmp.ne.s32.totalorder %s93, %s94
    %p106 = scmp.eq.s32.totalorder %s21, 1
    %p107 = por %p105, %p106
    %p109 = scmp.ne.s32.totalorder %s94, %s108
    %p110 = scmp.eq.s32.totalorder %s21, 0
    %p111 = por %p109, %p110
    %s113 = sadd.s32 %s112, 1
    %p116 = scmp.eq.s32.totalorder %s15, 1
    %p117 = scmp.ne.s32.totalorder %s112, %s114
    %p118 = scmp.eq.s32.totalorder %s15, 0
    %p119 = por %p117, %p118
    %p120 = scmp.ne.s32.totalorder %s112, %s114
    %p121 = scmp.eq.s32.totalorder %s20, 1
    %p122 = por %p120, %p121
    %p123 = scmp.ne.s32.totalorder %s114, %s115
    %p124 = scmp.eq.s32.totalorder %s20, 0
    %p125 = por %p123, %p124
    %p126 = scmp.ne.s32.totalorder %s114, %s115
    %p127 = scmp.eq.s32.totalorder %s21, 1
    %p128 = por %p126, %p127
    %p130 = scmp.ne.s32.totalorder %s115, %s129
    %p131 = scmp.eq.s32.totalorder %s21, 0
    %p132 = por %p130, %p131
    %s134 = sadd.s32 %s133, 1
    %p137 = scmp.eq.s32.totalorder %s15, 1
    %p138 = scmp.ne.s32.totalorder %s133, %s135
    %p139 = scmp.eq.s32.totalorder %s15, 0
    %p140 = por %p138, %p139
    %p141 = scmp.ne.s32.totalorder %s133, %s135
    %p142 = scmp.eq.s32.totalorder %s20, 1
    %p143 = por %p141, %p142
    %p144 = scmp.ne.s32.totalorder %s135, %s136
    %p145 = scmp.eq.s32.totalorder %s20, 0
    %p146 = por %p144, %p145
    %p147 = scmp.ne.s32.totalorder %s135, %s136
    %p148 = scmp.eq.s32.totalorder %s21, 1
    %p149 = por %p147, %p148
    %p151 = scmp.ne.s32.totalorder %s136, %s150
    %p152 = scmp.eq.s32.totalorder %s21, 0
    %p153 = por %p151, %p152
    %s155 = sadd.s32 %s154, 1
    %p158 = scmp.eq.s32.totalorder %s15, 1
    %p159 = scmp.ne.s32.totalorder %s154, %s156
    %p160 = scmp.eq.s32.totalorder %s15, 0
    %p161 = por %p159, %p160
    %p162 = scmp.ne.s32.totalorder %s154, %s156
    %p163 = scmp.eq.s32.totalorder %s20, 1
    %p164 = por %p162, %p163
    %p165 = scmp.ne.s32.totalorder %s156, %s157
    %p166 = scmp.eq.s32.totalorder %s20, 0
    %p167 = por %p165, %p166
    %p168 = scmp.ne.s32.totalorder %s156, %s157
    %p169 = scmp.eq.s32.totalorder %s21, 1
    %p170 = por %p168, %p169
    %p172 = scmp.ne.s32.totalorder %s157, %s171
    %p173 = scmp.eq.s32.totalorder %s21, 0
    %p174 = por %p172, %p173
    %s176 = sadd.s32 %s175, 1
    %p179 = scmp.eq.s32.totalorder %s15, 1
    %p180 = scmp.ne.s32.totalorder %s175, %s177
    %p181 = scmp.eq.s32.totalorder %s15, 0
    %p182 = por %p180, %p181
    %p183 = scmp.ne.s32.totalorder %s175, %s177
    %p184 = scmp.eq.s32.totalorder %s20, 1
    %p185 = por %p183, %p184
    %p186 = scmp.ne.s32.totalorder %s177, %s178
    %p187 = scmp.eq.s32.totalorder %s20, 0
    %p188 = por %p186, %p187
    %p189 = scmp.ne.s32.totalorder %s177, %s178
    %p190 = scmp.eq.s32.totalorder %s21, 1
    %p191 = por %p189, %p190
    %p193 = scmp.ne.s32.totalorder %s178, %s192
    %p194 = scmp.eq.s32.totalorder %s21, 0
    %p195 = por %p193, %p194
    %s197 = sadd.s32 %s196, 1
    %p200 = scmp.eq.s32.totalorder %s15, 1
    %p201 = scmp.ne.s32.totalorder %s196, %s198
    %p202 = scmp.eq.s32.totalorder %s15, 0
    %p203 = por %p201, %p202
    %p204 = scmp.ne.s32.totalorder %s196, %s198
    %p205 = scmp.eq.s32.totalorder %s20, 1
    %p206 = por %p204, %p205
    %p207 = scmp.ne.s32.totalorder %s198, %s199
    %p208 = scmp.eq.s32.totalorder %s20, 0
    %p209 = por %p207, %p208
    %p210 = scmp.ne.s32.totalorder %s198, %s199
    %p211 = scmp.eq.s32.totalorder %s21, 1
    %p212 = por %p210, %p211
    %p214 = scmp.ne.s32.totalorder %s199, %s213
    %p215 = scmp.eq.s32.totalorder %s21, 0
    %p216 = por %p214, %p215
    %s217 = ssub.s32 %s15, %s22
    %p218 = scmp.eq.s32.totalorder %s217, 0
    %s220 = sadd.s32 %s219, 1
    %s221 = scalar_select %p218, %s219, %s220
    %p224 = pneg %p218
    %p225 = scmp.eq.s32.totalorder %s15, 1
    %p226 = por %p224, %p225
    %p227 = scmp.ne.s32.totalorder %s219, %s222
    %p228 = scmp.eq.s32.totalorder %s15, 0
    %p229 = por %p227, %p228
    %p230 = scmp.ne.s32.totalorder %s219, %s222
    %p231 = scmp.eq.s32.totalorder %s20, 1
    %p232 = por %p230, %p231
    %p233 = scmp.ne.s32.totalorder %s222, %s223
    %p234 = scmp.eq.s32.totalorder %s20, 0
    %p235 = por %p233, %p234
    %p236 = scmp.ne.s32.totalorder %s222, %s223
    %p237 = scmp.eq.s32.totalorder %s21, 1
    %p238 = por %p236, %p237
    %p240 = scmp.ne.s32.totalorder %s223, %s239
    %p241 = scmp.eq.s32.totalorder %s21, 0
    %p242 = por %p240, %p241
    %p243 = scmp.le.s32.totalorder 1, %s15
    %p244 = scmp.lt.s32.totalorder %s15, 3
    %p245 = pnand %p243, %p244
    %p246 = pneg %p245
    // Predicated region
    $region9: #{tpu_custom_call.1} parent=5 // pred_check
      _
    $region10: #{tpu_custom_call.1} parent=5 // pred_check_branch
      %248 = sbr.rel (%p245) target = $region12
    $region11: #{tpu_custom_call.1} parent=5 // pred_region
      %s249 = ssub.s32 %s15, 1
      // Predicated region
      $region13: #{tpu_custom_call.1} parent=11 // pred_check
        %p250 = pneg %p62
      $region14: #{tpu_custom_call.1} parent=11 // pred_check_branch
        %252 = sbr.rel (%p250) target = $region16
      $region15: #{tpu_custom_call.1} parent=11 // pred_region
        _
      $region16: #{tpu_custom_call.1} parent=11 // pred_fallthru
        _
      // Predicated region
      $region17: #{tpu_custom_call.1} parent=11 // pred_check
        %p253 = pneg %p83
      $region18: #{tpu_custom_call.1} parent=11 // pred_check_branch
        %255 = sbr.rel (%p253) target = $region20
      $region19: #{tpu_custom_call.1} parent=11 // pred_region
        _
      $region20: #{tpu_custom_call.1} parent=11 // pred_fallthru
        _
      // Predicated region
      $region21: #{tpu_custom_call.1} parent=11 // pred_check
        %p256 = pneg %p104
      $region22: #{tpu_custom_call.1} parent=11 // pred_check_branch
        %258 = sbr.rel (%p256) target = $region24
      $region23: #{tpu_custom_call.1} parent=11 // pred_region
        _
      $region24: #{tpu_custom_call.1} parent=11 // pred_fallthru
        _
      // Predicated region
      $region25: #{tpu_custom_call.1} parent=11 // pred_check
        %p259 = pneg %p125
      $region26: #{tpu_custom_call.1} parent=11 // pred_check_branch
        %261 = sbr.rel (%p259) target = $region28
      $region27: #{tpu_custom_call.1} parent=11 // pred_region
        _
      $region28: #{tpu_custom_call.1} parent=11 // pred_fallthru
        _
      // Predicated region
      $region29: #{tpu_custom_call.1} parent=11 // pred_check
        %p262 = pneg %p146
      $region30: #{tpu_custom_call.1} parent=11 // pred_check_branch
        %264 = sbr.rel (%p262) target = $region32
      $region31: #{tpu_custom_call.1} parent=11 // pred_region
        _
      $region32: #{tpu_custom_call.1} parent=11 // pred_fallthru
        _
      // Predicated region
      $region33: #{tpu_custom_call.1} parent=11 // pred_check
        %p265 = pneg %p167
      $region34: #{tpu_custom_call.1} parent=11 // pred_check_branch
        %267 = sbr.rel (%p265) target = $region36
      $region35: #{tpu_custom_call.1} parent=11 // pred_region
        _
      $region36: #{tpu_custom_call.1} parent=11 // pred_fallthru
        _
      // Predicated region
      $region37: #{tpu_custom_call.1} parent=11 // pred_check
        %p268 = pneg %p188
      $region38: #{tpu_custom_call.1} parent=11 // pred_check_branch
        %270 = sbr.rel (%p268) target = $region40
      $region39: #{tpu_custom_call.1} parent=11 // pred_region
        _
      $region40: #{tpu_custom_call.1} parent=11 // pred_fallthru
        _
      // Predicated region
      $region41: #{tpu_custom_call.1} parent=11 // pred_check
        %p271 = pneg %p209
      $region42: #{tpu_custom_call.1} parent=11 // pred_check_branch
        %273 = sbr.rel (%p271) target = $region44
      $region43: #{tpu_custom_call.1} parent=11 // pred_region
        _
      $region44: #{tpu_custom_call.1} parent=11 // pred_fallthru
        _
    $region12: #{tpu_custom_call.1} parent=5 // pred_fallthru
      _
    %p274 = scmp.lt.s32.totalorder %s15, 2
    // Predicated region
    $region45: #{tpu_custom_call.1} parent=5 // pred_check
      %p275 = pneg %p274
    $region46: #{tpu_custom_call.1} parent=5 // pred_check_branch
      %277 = sbr.rel (%p275) target = $region48
    $region47: #{tpu_custom_call.1} parent=5 // pred_region
      // Predicated region
      $region49: #{tpu_custom_call.1} parent=47 // pred_check
        %p278 = pneg %p35
      $region50: #{tpu_custom_call.1} parent=47 // pred_check_branch
        %280 = sbr.rel (%p278) target = $region52
      $region51: #{tpu_custom_call.1} parent=47 // pred_region
        %p281 = scmp.lt.s32.totalorder %s15, 1
        %s282 = scalar_select %p281, %s15, 1
        %s283 = smul.addr %s282, 8
        %s284 = smul.addr %s283, 8
        %s285 = scalar_lea.vmem %s0, %s284
      $region52: #{tpu_custom_call.1} parent=47 // pred_fallthru
        _
    $region48: #{tpu_custom_call.1} parent=5 // pred_fallthru
      _
    %p286 = scmp.le.s32.totalorder 1, %s15
    %p287 = scmp.lt.s32.totalorder %s15, 3
    %p288 = pnand %p286, %p287
    %p289 = pneg %p288
    // Predicated region
    $region53: #{tpu_custom_call.1} parent=5 // pred_check
      _
    $region54: #{tpu_custom_call.1} parent=5 // pred_check_branch
      %291 = sbr.rel (%p288) target = $region56
    $region55: #{tpu_custom_call.1} parent=5 // pred_region
      %s292 = ssub.s32 %s15, 1
      %p293 = scmp.lt.s32.totalorder %s20, 1
      %s294 = scalar_select %p293, %s20, 1
      %s295 = smul.addr %s294, 8
      %s296 = smul.addr %s295, 8
      %s297 = scalar_lea.vmem %s0, %s296
      %p298 = pneg %p41
      %p299 = pneg %p38
      %p300 = pneg %p62
      %p301 = pneg %p59
      %p302 = pneg %p83
      %p303 = pneg %p80
      %p304 = pneg %p104
      %p305 = pneg %p101
      %p306 = pneg %p125
      %p307 = pneg %p122
      %p308 = pneg %p146
      %p309 = pneg %p143
      %p310 = pneg %p167
      %p311 = pneg %p164
      %p312 = pneg %p188
      %p313 = pneg %p185
      %p314 = pneg %p209
      %p315 = pneg %p206
      %p316 = pneg %p235
      %p317 = pneg %p232
      %p318 = scmp.lt.s32.totalorder %s20, 1
      %s319 = scalar_select %p318, %s20, 1
      %s320 = smul.addr %s319, 12
      %s321 = smul.addr %s320, 8
      %s322 = scalar_lea.vmem %s9, %s321
      %p323 = scmp.lt.s32.totalorder %s20, 1
      %s324 = scalar_select %p323, %s20, 1
      %s325 = smul.addr %s324, 8
      %s326 = smul.addr %s325, 8
      %s327 = scalar_lea.vmem %s0, %s326
      %p328 = scmp.lt.s32.totalorder %s20, 1
      %s329 = scalar_select %p328, %s20, 1
      %s330 = smul.addr %s329, 12
      %s331 = smul.addr %s330, 8
      %s332 = scalar_lea.vmem %s9, %s331
      %vm334 = vcmask 31744
      %335 = vst.msk [vmem:[#allocation2] sm:$0xff] %vm334, 0.0
      %336 = vst.msk [vmem:[#allocation2 + $0x8] sm:$0xff] %vm334, 0.0
      %337 = vst.msk [vmem:[#allocation2 + $0x10] sm:$0xff] %vm334, 0.0
      %vm338 = vcmask 25600
      %339 = vst.msk [vmem:[#allocation2 + $0x18] sm:$0x3] %vm338, 0.0
      %340 = vst.msk [vmem:[#allocation2 + $0x20] sm:$0xff] %vm334, 0.0
      %341 = vst.msk [vmem:[#allocation2 + $0x28] sm:$0xff] %vm334, 0.0
      %342 = vst.msk [vmem:[#allocation2 + $0x30] sm:$0xff] %vm334, 0.0
      %343 = vst.msk [vmem:[#allocation2 + $0x38] sm:$0x3] %vm338, 0.0
      %344 = vst.msk [vmem:[#allocation2 + $0x40] sm:$0xff] %vm334, 0.0
      %345 = vst.msk [vmem:[#allocation2 + $0x48] sm:$0xff] %vm334, 0.0
      %346 = vst.msk [vmem:[#allocation2 + $0x50] sm:$0xff] %vm334, 0.0
      %347 = vst.msk [vmem:[#allocation2 + $0x58] sm:$0x3] %vm338, 0.0
      %348 = vst.msk [vmem:[#allocation2 + $0x60] sm:$0xff] %vm334, 0.0
      %349 = vst.msk [vmem:[#allocation2 + $0x68] sm:$0xff] %vm334, 0.0
      %350 = vst.msk [vmem:[#allocation2 + $0x70] sm:$0xff] %vm334, 0.0
      %351 = vst.msk [vmem:[#allocation2 + $0x78] sm:$0x3] %vm338, 0.0
      %v352 = vld [vmem:[%s327] sm:$0xff]
      %v353 = vld [vmem:[%s327 + $0x8] sm:$0xff]
      %v354 = vld [vmem:[%s327 + $0x10] sm:$0xff]
      %v355 = vld [vmem:[%s327 + $0x18] sm:$0xff]
      %v356 = vld [vmem:[%s327 + $0x20] sm:$0xff]
      %v357 = vld [vmem:[%s327 + $0x28] sm:$0xff]
      %v358 = vld [vmem:[%s327 + $0x30] sm:$0xff]
      %v359 = vld [vmem:[%s327 + $0x38] sm:$0xff]
      %360 = vst.msk [vmem:[#allocation2 + $0x5] sm:$0xff] %vm334, %v352
      %361 = vst.msk [vmem:[#allocation2 + $0xd] sm:$0xff] %vm334, %v353
      %362 = vst.msk [vmem:[#allocation2 + $0x25] sm:$0xff] %vm334, %v354
      %363 = vst.msk [vmem:[#allocation2 + $0x2d] sm:$0xff] %vm334, %v355
      %364 = vst.msk [vmem:[#allocation2 + $0x45] sm:$0xff] %vm334, %v356
      %365 = vst.msk [vmem:[#allocation2 + $0x4d] sm:$0xff] %vm334, %v357
      %366 = vst.msk [vmem:[#allocation2 + $0x65] sm:$0xff] %vm334, %v358
      %367 = vst.msk [vmem:[#allocation2 + $0x6d] sm:$0xff] %vm334, %v359
      %v368 = vld [vmem:[#allocation2] sm:$0xff]
      %v369 = vld [vmem:[#allocation2 + $0x8] sm:$0xff]
      %v370 = vld [vmem:[#allocation2 + $0x10] sm:$0x1]
      %v371 = vld [vmem:[#allocation2 + $0x20] sm:$0xff]
      %v372 = vld [vmem:[#allocation2 + $0x28] sm:$0xff]
      %v373 = vld [vmem:[#allocation2 + $0x30] sm:$0x1]
      %v374 = vld [vmem:[#allocation2 + $0x40] sm:$0xff]
      %v375 = vld [vmem:[#allocation2 + $0x48] sm:$0xff]
      %v376 = vld [vmem:[#allocation2 + $0x50] sm:$0x1]
      %v377 = vld [vmem:[#allocation2 + $0x60] sm:$0xff]
      %v378 = vld [vmem:[#allocation2 + $0x68] sm:$0xff]
      %v379 = vld [vmem:[#allocation2 + $0x70] sm:$0x1]
      %380 = vst.msk [vmem:[#allocation3] sm:$0xff] %vm334, %v368
      %381 = vst.msk [vmem:[#allocation3 + $0x8] sm:$0xff] %vm334, %v369
      %vm382 = vcmask 24576
      %383 = vst.msk [vmem:[#allocation3 + $0x10] sm:$0x1] %vm382, %v370
      %384 = vst.msk [vmem:[#allocation3 + $0x18] sm:$0xff] %vm334, %v371
      %385 = vst.msk [vmem:[#allocation3 + $0x20] sm:$0xff] %vm334, %v372
      %386 = vst.msk [vmem:[#allocation3 + $0x28] sm:$0x1] %vm382, %v373
      %387 = vst.msk [vmem:[#allocation3 + $0x30] sm:$0xff] %vm334, %v374
      %388 = vst.msk [vmem:[#allocation3 + $0x38] sm:$0xff] %vm334, %v375
      %389 = vst.msk [vmem:[#allocation3 + $0x40] sm:$0x1] %vm382, %v376
      %390 = vst.msk [vmem:[#allocation3 + $0x48] sm:$0xff] %vm334, %v377
      %391 = vst.msk [vmem:[#allocation3 + $0x50] sm:$0xff] %vm334, %v378
      %392 = vst.msk [vmem:[#allocation3 + $0x58] sm:$0x1] %vm382, %v379
      %v393 = vld [vmem:[#allocation2 + $0x1] sm:$0xff]
      %v394 = vld [vmem:[#allocation2 + $0x9] sm:$0xff]
      %v395 = vld [vmem:[#allocation2 + $0x11] sm:$0x1]
      %v396 = vld [vmem:[#allocation2 + $0x21] sm:$0xff]
      %v397 = vld [vmem:[#allocation2 + $0x29] sm:$0xff]
      %v398 = vld [vmem:[#allocation2 + $0x31] sm:$0x1]
      %v399 = vld [vmem:[#allocation2 + $0x41] sm:$0xff]
      %v400 = vld [vmem:[#allocation2 + $0x49] sm:$0xff]
      %v401 = vld [vmem:[#allocation2 + $0x51] sm:$0x1]
      %v402 = vld [vmem:[#allocation2 + $0x61] sm:$0xff]
      %v403 = vld [vmem:[#allocation2 + $0x69] sm:$0xff]
      %v404 = vld [vmem:[#allocation2 + $0x71] sm:$0x1]
      %417 = vrot.lane.b32.xlu0 %v393, 4
      %v418 = vpop.permute.xlu0 %417
      %419 = vrot.lane.b32.xlu0 %v394, 4
      %v420 = vpop.permute.xlu0 %419
      %421 = vrot.lane.b32.xlu0 %v395, 4
      %v422 = vpop.permute.xlu0 %421
      %423 = vrot.lane.b32.xlu0 %v396, 4
      %v424 = vpop.permute.xlu0 %423
      %425 = vrot.lane.b32.xlu0 %v397, 4
      %v426 = vpop.permute.xlu0 %425
      %427 = vrot.lane.b32.xlu0 %v398, 4
      %v428 = vpop.permute.xlu0 %427
      %429 = vrot.lane.b32.xlu0 %v399, 4
      %v430 = vpop.permute.xlu0 %429
      %431 = vrot.lane.b32.xlu0 %v400, 4
      %v432 = vpop.permute.xlu0 %431
      %433 = vrot.lane.b32.xlu0 %v401, 4
      %v434 = vpop.permute.xlu0 %433
      %435 = vrot.lane.b32.xlu0 %v402, 4
      %v436 = vpop.permute.xlu0 %435
      %437 = vrot.lane.b32.xlu0 %v403, 4
      %v438 = vpop.permute.xlu0 %437
      %439 = vrot.lane.b32.xlu0 %v404, 4
      %v440 = vpop.permute.xlu0 %439
      %vm453 = vcmask 64544
      %454 = vst.msk [vmem:[#allocation3] sm:$0xff] %vm453, %v418
      %455 = vst.msk [vmem:[#allocation3 + $0x8] sm:$0xff] %vm453, %v420
      %vm456 = vcmask 57376
      %457 = vst.msk [vmem:[#allocation3 + $0x10] sm:$0x1] %vm456, %v422
      %458 = vst.msk [vmem:[#allocation3 + $0x18] sm:$0xff] %vm453, %v424
      %459 = vst.msk [vmem:[#allocation3 + $0x20] sm:$0xff] %vm453, %v426
      %460 = vst.msk [vmem:[#allocation3 + $0x28] sm:$0x1] %vm456, %v428
      %461 = vst.msk [vmem:[#allocation3 + $0x30] sm:$0xff] %vm453, %v430
      %462 = vst.msk [vmem:[#allocation3 + $0x38] sm:$0xff] %vm453, %v432
      %463 = vst.msk [vmem:[#allocation3 + $0x40] sm:$0x1] %vm456, %v434
      %464 = vst.msk [vmem:[#allocation3 + $0x48] sm:$0xff] %vm453, %v436
      %465 = vst.msk [vmem:[#allocation3 + $0x50] sm:$0xff] %vm453, %v438
      %466 = vst.msk [vmem:[#allocation3 + $0x58] sm:$0x1] %vm456, %v440
      %v467 = vld [vmem:[#allocation2 + $0x2] sm:$0xff]
      %v468 = vld [vmem:[#allocation2 + $0xa] sm:$0xff]
      %v469 = vld [vmem:[#allocation2 + $0x12] sm:$0x1]
      %v470 = vld [vmem:[#allocation2 + $0x22] sm:$0xff]
      %v471 = vld [vmem:[#allocation2 + $0x2a] sm:$0xff]
      %v472 = vld [vmem:[#allocation2 + $0x32] sm:$0x1]
      %v473 = vld [vmem:[#allocation2 + $0x42] sm:$0xff]
      %v474 = vld [vmem:[#allocation2 + $0x4a] sm:$0xff]
      %v475 = vld [vmem:[#allocation2 + $0x52] sm:$0x1]
      %v476 = vld [vmem:[#allocation2 + $0x62] sm:$0xff]
      %v477 = vld [vmem:[#allocation2 + $0x6a] sm:$0xff]
      %v478 = vld [vmem:[#allocation2 + $0x72] sm:$0x1]
      %491 = vrot.lane.b32.xlu0 %v467, 8
      %v492 = vpop.permute.xlu0 %491
      %493 = vrot.lane.b32.xlu0 %v468, 8
      %v494 = vpop.permute.xlu0 %493
      %495 = vrot.lane.b32.xlu0 %v469, 8
      %v496 = vpop.permute.xlu0 %495
      %497 = vrot.lane.b32.xlu0 %v470, 8
      %v498 = vpop.permute.xlu0 %497
      %499 = vrot.lane.b32.xlu0 %v471, 8
      %v500 = vpop.permute.xlu0 %499
      %501 = vrot.lane.b32.xlu0 %v472, 8
      %v502 = vpop.permute.xlu0 %501
      %503 = vrot.lane.b32.xlu0 %v473, 8
      %v504 = vpop.permute.xlu0 %503
      %505 = vrot.lane.b32.xlu0 %v474, 8
      %v506 = vpop.permute.xlu0 %505
      %507 = vrot.lane.b32.xlu0 %v475, 8
      %v508 = vpop.permute.xlu0 %507
      %509 = vrot.lane.b32.xlu0 %v476, 8
      %v510 = vpop.permute.xlu0 %509
      %511 = vrot.lane.b32.xlu0 %v477, 8
      %v512 = vpop.permute.xlu0 %511
      %513 = vrot.lane.b32.xlu0 %v478, 8
      %v514 = vpop.permute.xlu0 %513
      %vm527 = vcmask 97344
      %528 = vst.msk [vmem:[#allocation3] sm:$0xff] %vm527, %v492
      %529 = vst.msk [vmem:[#allocation3 + $0x8] sm:$0xff] %vm527, %v494
      %vm530 = vcmask 90176
      %531 = vst.msk [vmem:[#allocation3 + $0x10] sm:$0x1] %vm530, %v496
      %532 = vst.msk [vmem:[#allocation3 + $0x18] sm:$0xff] %vm527, %v498
      %533 = vst.msk [vmem:[#allocation3 + $0x20] sm:$0xff] %vm527, %v500
      %534 = vst.msk [vmem:[#allocation3 + $0x28] sm:$0x1] %vm530, %v502
      %535 = vst.msk [vmem:[#allocation3 + $0x30] sm:$0xff] %vm527, %v504
      %536 = vst.msk [vmem:[#allocation3 + $0x38] sm:$0xff] %vm527, %v506
      %537 = vst.msk [vmem:[#allocation3 + $0x40] sm:$0x1] %vm530, %v508
      %538 = vst.msk [vmem:[#allocation3 + $0x48] sm:$0xff] %vm527, %v510
      %539 = vst.msk [vmem:[#allocation3 + $0x50] sm:$0xff] %vm527, %v512
      %540 = vst.msk [vmem:[#allocation3 + $0x58] sm:$0x1] %vm530, %v514
      %v541 = vld [vmem:[#allocation2 + $0x3] sm:$0xff]
      %v542 = vld [vmem:[#allocation2 + $0xb] sm:$0xff]
      %v543 = vld [vmem:[#allocation2 + $0x13] sm:$0x1]
      %v544 = vld [vmem:[#allocation2 + $0x23] sm:$0xff]
      %v545 = vld [vmem:[#allocation2 + $0x2b] sm:$0xff]
      %v546 = vld [vmem:[#allocation2 + $0x33] sm:$0x1]
      %v547 = vld [vmem:[#allocation2 + $0x43] sm:$0xff]
      %v548 = vld [vmem:[#allocation2 + $0x4b] sm:$0xff]
      %v549 = vld [vmem:[#allocation2 + $0x53] sm:$0x1]
      %v550 = vld [vmem:[#allocation2 + $0x63] sm:$0xff]
      %v551 = vld [vmem:[#allocation2 + $0x6b] sm:$0xff]
      %v552 = vld [vmem:[#allocation2 + $0x73] sm:$0x1]
      %565 = vrot.lane.b32.xlu0 %v541, 12
      %v566 = vpop.permute.xlu0 %565
      %567 = vrot.lane.b32.xlu0 %v542, 12
      %v568 = vpop.permute.xlu0 %567
      %569 = vrot.lane.b32.xlu0 %v543, 12
      %v570 = vpop.permute.xlu0 %569
      %571 = vrot.lane.b32.xlu0 %v544, 12
      %v572 = vpop.permute.xlu0 %571
      %573 = vrot.lane.b32.xlu0 %v545, 12
      %v574 = vpop.permute.xlu0 %573
      %575 = vrot.lane.b32.xlu0 %v546, 12
      %v576 = vpop.permute.xlu0 %575
      %577 = vrot.lane.b32.xlu0 %v547, 12
      %v578 = vpop.permute.xlu0 %577
      %579 = vrot.lane.b32.xlu0 %v548, 12
      %v580 = vpop.permute.xlu0 %579
      %581 = vrot.lane.b32.xlu0 %v549, 12
      %v582 = vpop.permute.xlu0 %581
      %583 = vrot.lane.b32.xlu0 %v550, 12
      %v584 = vpop.permute.xlu0 %583
      %585 = vrot.lane.b32.xlu0 %v551, 12
      %v586 = vpop.permute.xlu0 %585
      %587 = vrot.lane.b32.xlu0 %v552, 12
      %v588 = vpop.permute.xlu0 %587
      %vm601 = vcmask 130144
      %602 = vst.msk [vmem:[#allocation3] sm:$0xff] %vm601, %v566
      %603 = vst.msk [vmem:[#allocation3 + $0x8] sm:$0xff] %vm601, %v568
      %vm604 = vcmask 122976
      %605 = vst.msk [vmem:[#allocation3 + $0x10] sm:$0x1] %vm604, %v570
      %606 = vst.msk [vmem:[#allocation3 + $0x18] sm:$0xff] %vm601, %v572
      %607 = vst.msk [vmem:[#allocation3 + $0x20] sm:$0xff] %vm601, %v574
      %608 = vst.msk [vmem:[#allocation3 + $0x28] sm:$0x1] %vm604, %v576
      %609 = vst.msk [vmem:[#allocation3 + $0x30] sm:$0xff] %vm601, %v578
      %610 = vst.msk [vmem:[#allocation3 + $0x38] sm:$0xff] %vm601, %v580
      %611 = vst.msk [vmem:[#allocation3 + $0x40] sm:$0x1] %vm604, %v582
      %612 = vst.msk [vmem:[#allocation3 + $0x48] sm:$0xff] %vm601, %v584
      %613 = vst.msk [vmem:[#allocation3 + $0x50] sm:$0xff] %vm601, %v586
      %614 = vst.msk [vmem:[#allocation3 + $0x58] sm:$0x1] %vm604, %v588
      %v615 = vld [vmem:[#allocation2 + $0x4] sm:$0xff]
      %v616 = vld [vmem:[#allocation2 + $0xc] sm:$0xff]
      %v617 = vld [vmem:[#allocation2 + $0x14] sm:$0x1]
      %v618 = vld [vmem:[#allocation2 + $0x24] sm:$0xff]
      %v619 = vld [vmem:[#allocation2 + $0x2c] sm:$0xff]
      %v620 = vld [vmem:[#allocation2 + $0x34] sm:$0x1]
      %v621 = vld [vmem:[#allocation2 + $0x44] sm:$0xff]
      %v622 = vld [vmem:[#allocation2 + $0x4c] sm:$0xff]
      %v623 = vld [vmem:[#allocation2 + $0x54] sm:$0x1]
      %v624 = vld [vmem:[#allocation2 + $0x64] sm:$0xff]
      %v625 = vld [vmem:[#allocation2 + $0x6c] sm:$0xff]
      %v626 = vld [vmem:[#allocation2 + $0x74] sm:$0x1]
      %639 = vrot.lane.b32.xlu0 %v615, 16
      %v640 = vpop.permute.xlu0 %639
      %641 = vrot.lane.b32.xlu0 %v616, 16
      %v642 = vpop.permute.xlu0 %641
      %643 = vrot.lane.b32.xlu0 %v617, 16
      %v644 = vpop.permute.xlu0 %643
      %645 = vrot.lane.b32.xlu0 %v618, 16
      %v646 = vpop.permute.xlu0 %645
      %647 = vrot.lane.b32.xlu0 %v619, 16
      %v648 = vpop.permute.xlu0 %647
      %649 = vrot.lane.b32.xlu0 %v620, 16
      %v650 = vpop.permute.xlu0 %649
      %651 = vrot.lane.b32.xlu0 %v621, 16
      %v652 = vpop.permute.xlu0 %651
      %653 = vrot.lane.b32.xlu0 %v622, 16
      %v654 = vpop.permute.xlu0 %653
      %655 = vrot.lane.b32.xlu0 %v623, 16
      %v656 = vpop.permute.xlu0 %655
      %657 = vrot.lane.b32.xlu0 %v624, 16
      %v658 = vpop.permute.xlu0 %657
      %659 = vrot.lane.b32.xlu0 %v625, 16
      %v660 = vpop.permute.xlu0 %659
      %661 = vrot.lane.b32.xlu0 %v626, 16
      %v662 = vpop.permute.xlu0 %661
      %vm675 = vcmask 162944
      %676 = vst.msk [vmem:[#allocation3] sm:$0xff] %vm675, %v640
      %677 = vst.msk [vmem:[#allocation3 + $0x8] sm:$0xff] %vm675, %v642
      %vm678 = vcmask 155776
      %679 = vst.msk [vmem:[#allocation3 + $0x10] sm:$0x1] %vm678, %v644
      %680 = vst.msk [vmem:[#allocation3 + $0x18] sm:$0xff] %vm675, %v646
      %681 = vst.msk [vmem:[#allocation3 + $0x20] sm:$0xff] %vm675, %v648
      %682 = vst.msk [vmem:[#allocation3 + $0x28] sm:$0x1] %vm678, %v650
      %683 = vst.msk [vmem:[#allocation3 + $0x30] sm:$0xff] %vm675, %v652
      %684 = vst.msk [vmem:[#allocation3 + $0x38] sm:$0xff] %vm675, %v654
      %685 = vst.msk [vmem:[#allocation3 + $0x40] sm:$0x1] %vm678, %v656
      %686 = vst.msk [vmem:[#allocation3 + $0x48] sm:$0xff] %vm675, %v658
      %687 = vst.msk [vmem:[#allocation3 + $0x50] sm:$0xff] %vm675, %v660
      %688 = vst.msk [vmem:[#allocation3 + $0x58] sm:$0x1] %vm678, %v662
      %v689 = vld [vmem:[#allocation2 + $0x5] sm:$0xff]
      %v690 = vld [vmem:[#allocation2 + $0xd] sm:$0xff]
      %v691 = vld [vmem:[#allocation2 + $0x15] sm:$0x1]
      %v692 = vld [vmem:[#allocation2 + $0x25] sm:$0xff]
      %v693 = vld [vmem:[#allocation2 + $0x2d] sm:$0xff]
      %v694 = vld [vmem:[#allocation2 + $0x35] sm:$0x1]
      %v695 = vld [vmem:[#allocation2 + $0x45] sm:$0xff]
      %v696 = vld [vmem:[#allocation2 + $0x4d] sm:$0xff]
      %v697 = vld [vmem:[#allocation2 + $0x55] sm:$0x1]
      %v698 = vld [vmem:[#allocation2 + $0x65] sm:$0xff]
      %v699 = vld [vmem:[#allocation2 + $0x6d] sm:$0xff]
      %v700 = vld [vmem:[#allocation2 + $0x75] sm:$0x1]
      %713 = vrot.lane.b32.xlu0 %v689, 20
      %v714 = vpop.permute.xlu0 %713
      %715 = vrot.lane.b32.xlu0 %v690, 20
      %v716 = vpop.permute.xlu0 %715
      %717 = vrot.lane.b32.xlu0 %v691, 20
      %v718 = vpop.permute.xlu0 %717
      %719 = vrot.lane.b32.xlu0 %v692, 20
      %v720 = vpop.permute.xlu0 %719
      %721 = vrot.lane.b32.xlu0 %v693, 20
      %v722 = vpop.permute.xlu0 %721
      %723 = vrot.lane.b32.xlu0 %v694, 20
      %v724 = vpop.permute.xlu0 %723
      %725 = vrot.lane.b32.xlu0 %v695, 20
      %v726 = vpop.permute.xlu0 %725
      %727 = vrot.lane.b32.xlu0 %v696, 20
      %v728 = vpop.permute.xlu0 %727
      %729 = vrot.lane.b32.xlu0 %v697, 20
      %v730 = vpop.permute.xlu0 %729
      %731 = vrot.lane.b32.xlu0 %v698, 20
      %v732 = vpop.permute.xlu0 %731
      %733 = vrot.lane.b32.xlu0 %v699, 20
      %v734 = vpop.permute.xlu0 %733
      %735 = vrot.lane.b32.xlu0 %v700, 20
      %v736 = vpop.permute.xlu0 %735
      %vm749 = vcmask 195744
      %750 = vst.msk [vmem:[#allocation3] sm:$0xff] %vm749, %v714
      %751 = vst.msk [vmem:[#allocation3 + $0x8] sm:$0xff] %vm749, %v716
      %vm752 = vcmask 188576
      %753 = vst.msk [vmem:[#allocation3 + $0x10] sm:$0x1] %vm752, %v718
      %754 = vst.msk [vmem:[#allocation3 + $0x18] sm:$0xff] %vm749, %v720
      %755 = vst.msk [vmem:[#allocation3 + $0x20] sm:$0xff] %vm749, %v722
      %756 = vst.msk [vmem:[#allocation3 + $0x28] sm:$0x1] %vm752, %v724
      %757 = vst.msk [vmem:[#allocation3 + $0x30] sm:$0xff] %vm749, %v726
      %758 = vst.msk [vmem:[#allocation3 + $0x38] sm:$0xff] %vm749, %v728
      %759 = vst.msk [vmem:[#allocation3 + $0x40] sm:$0x1] %vm752, %v730
      %760 = vst.msk [vmem:[#allocation3 + $0x48] sm:$0xff] %vm749, %v732
      %761 = vst.msk [vmem:[#allocation3 + $0x50] sm:$0xff] %vm749, %v734
      %762 = vst.msk [vmem:[#allocation3 + $0x58] sm:$0x1] %vm752, %v736
      %v763 = vld [vmem:[#allocation2 + $0x6] sm:$0xff]
      %v764 = vld [vmem:[#allocation2 + $0xe] sm:$0xff]
      %v765 = vld [vmem:[#allocation2 + $0x16] sm:$0x1]
      %v766 = vld [vmem:[#allocation2 + $0x26] sm:$0xff]
      %v767 = vld [vmem:[#allocation2 + $0x2e] sm:$0xff]
      %v768 = vld [vmem:[#allocation2 + $0x36] sm:$0x1]
      %v769 = vld [vmem:[#allocation2 + $0x46] sm:$0xff]
      %v770 = vld [vmem:[#allocation2 + $0x4e] sm:$0xff]
      %v771 = vld [vmem:[#allocation2 + $0x56] sm:$0x1]
      %v772 = vld [vmem:[#allocation2 + $0x66] sm:$0xff]
      %v773 = vld [vmem:[#allocation2 + $0x6e] sm:$0xff]
      %v774 = vld [vmem:[#allocation2 + $0x76] sm:$0x1]
      %787 = vrot.lane.b32.xlu0 %v763, 24
      %v788 = vpop.permute.xlu0 %787
      %789 = vrot.lane.b32.xlu0 %v764, 24
      %v790 = vpop.permute.xlu0 %789
      %791 = vrot.lane.b32.xlu0 %v765, 24
      %v792 = vpop.permute.xlu0 %791
      %793 = vrot.lane.b32.xlu0 %v766, 24
      %v794 = vpop.permute.xlu0 %793
      %795 = vrot.lane.b32.xlu0 %v767, 24
      %v796 = vpop.permute.xlu0 %795
      %797 = vrot.lane.b32.xlu0 %v768, 24
      %v798 = vpop.permute.xlu0 %797
      %799 = vrot.lane.b32.xlu0 %v769, 24
      %v800 = vpop.permute.xlu0 %799
      %801 = vrot.lane.b32.xlu0 %v770, 24
      %v802 = vpop.permute.xlu0 %801
      %803 = vrot.lane.b32.xlu0 %v771, 24
      %v804 = vpop.permute.xlu0 %803
      %805 = vrot.lane.b32.xlu0 %v772, 24
      %v806 = vpop.permute.xlu0 %805
      %807 = vrot.lane.b32.xlu0 %v773, 24
      %v808 = vpop.permute.xlu0 %807
      %809 = vrot.lane.b32.xlu0 %v774, 24
      %v810 = vpop.permute.xlu0 %809
      %vm823 = vcmask 228544
      %824 = vst.msk [vmem:[#allocation3] sm:$0xff] %vm823, %v788
      %825 = vst.msk [vmem:[#allocation3 + $0x8] sm:$0xff] %vm823, %v790
      %vm826 = vcmask 221376
      %827 = vst.msk [vmem:[#allocation3 + $0x10] sm:$0x1] %vm826, %v792
      %828 = vst.msk [vmem:[#allocation3 + $0x18] sm:$0xff] %vm823, %v794
      %829 = vst.msk [vmem:[#allocation3 + $0x20] sm:$0xff] %vm823, %v796
      %830 = vst.msk [vmem:[#allocation3 + $0x28] sm:$0x1] %vm826, %v798
      %831 = vst.msk [vmem:[#allocation3 + $0x30] sm:$0xff] %vm823, %v800
      %832 = vst.msk [vmem:[#allocation3 + $0x38] sm:$0xff] %vm823, %v802
      %833 = vst.msk [vmem:[#allocation3 + $0x40] sm:$0x1] %vm826, %v804
      %834 = vst.msk [vmem:[#allocation3 + $0x48] sm:$0xff] %vm823, %v806
      %835 = vst.msk [vmem:[#allocation3 + $0x50] sm:$0xff] %vm823, %v808
      %836 = vst.msk [vmem:[#allocation3 + $0x58] sm:$0x1] %vm826, %v810
      %v837 = vld [vmem:[#allocation2 + $0x7] sm:$0xff]
      %v838 = vld [vmem:[#allocation2 + $0xf] sm:$0xff]
      %v839 = vld [vmem:[#allocation2 + $0x17] sm:$0x1]
      %v840 = vld [vmem:[#allocation2 + $0x27] sm:$0xff]
      %v841 = vld [vmem:[#allocation2 + $0x2f] sm:$0xff]
      %v842 = vld [vmem:[#allocation2 + $0x37] sm:$0x1]
      %v843 = vld [vmem:[#allocation2 + $0x47] sm:$0xff]
      %v844 = vld [vmem:[#allocation2 + $0x4f] sm:$0xff]
      %v845 = vld [vmem:[#allocation2 + $0x57] sm:$0x1]
      %v846 = vld [vmem:[#allocation2 + $0x67] sm:$0xff]
      %v847 = vld [vmem:[#allocation2 + $0x6f] sm:$0xff]
      %v848 = vld [vmem:[#allocation2 + $0x77] sm:$0x1]
      %861 = vrot.lane.b32.xlu0 %v837, 28
      %v862 = vpop.permute.xlu0 %861
      %863 = vrot.lane.b32.xlu0 %v838, 28
      %v864 = vpop.permute.xlu0 %863
      %865 = vrot.lane.b32.xlu0 %v839, 28
      %v866 = vpop.permute.xlu0 %865
      %867 = vrot.lane.b32.xlu0 %v840, 28
      %v868 = vpop.permute.xlu0 %867
      %869 = vrot.lane.b32.xlu0 %v841, 28
      %v870 = vpop.permute.xlu0 %869
      %871 = vrot.lane.b32.xlu0 %v842, 28
      %v872 = vpop.permute.xlu0 %871
      %873 = vrot.lane.b32.xlu0 %v843, 28
      %v874 = vpop.permute.xlu0 %873
      %875 = vrot.lane.b32.xlu0 %v844, 28
      %v876 = vpop.permute.xlu0 %875
      %877 = vrot.lane.b32.xlu0 %v845, 28
      %v878 = vpop.permute.xlu0 %877
      %879 = vrot.lane.b32.xlu0 %v846, 28
      %v880 = vpop.permute.xlu0 %879
      %881 = vrot.lane.b32.xlu0 %v847, 28
      %v882 = vpop.permute.xlu0 %881
      %883 = vrot.lane.b32.xlu0 %v848, 28
      %v884 = vpop.permute.xlu0 %883
      %vm897 = vcmask 261344
      %898 = vst.msk [vmem:[#allocation3] sm:$0xff] %vm897, %v862
      %899 = vst.msk [vmem:[#allocation3 + $0x8] sm:$0xff] %vm897, %v864
      %vm900 = vcmask 254176
      %901 = vst.msk [vmem:[#allocation3 + $0x10] sm:$0x1] %vm900, %v866
      %902 = vst.msk [vmem:[#allocation3 + $0x18] sm:$0xff] %vm897, %v868
      %903 = vst.msk [vmem:[#allocation3 + $0x20] sm:$0xff] %vm897, %v870
      %904 = vst.msk [vmem:[#allocation3 + $0x28] sm:$0x1] %vm900, %v872
      %905 = vst.msk [vmem:[#allocation3 + $0x30] sm:$0xff] %vm897, %v874
      %906 = vst.msk [vmem:[#allocation3 + $0x38] sm:$0xff] %vm897, %v876
      %907 = vst.msk [vmem:[#allocation3 + $0x40] sm:$0x1] %vm900, %v878
      %908 = vst.msk [vmem:[#allocation3 + $0x48] sm:$0xff] %vm897, %v880
      %909 = vst.msk [vmem:[#allocation3 + $0x50] sm:$0xff] %vm897, %v882
      %910 = vst.msk [vmem:[#allocation3 + $0x58] sm:$0x1] %vm900, %v884
      %v911 = vld [vmem:[#allocation2 + $0x8] sm:$0xff]
      %v912 = vld [vmem:[#allocation2 + $0x10] sm:$0xff]
      %v913 = vld [vmem:[#allocation2 + $0x18] sm:$0x1]
      %v914 = vld [vmem:[#allocation2 + $0x28] sm:$0xff]
      %v915 = vld [vmem:[#allocation2 + $0x30] sm:$0xff]
      %v916 = vld [vmem:[#allocation2 + $0x38] sm:$0x1]
      %v917 = vld [vmem:[#allocation2 + $0x48] sm:$0xff]
      %v918 = vld [vmem:[#allocation2 + $0x50] sm:$0xff]
      %v919 = vld [vmem:[#allocation2 + $0x58] sm:$0x1]
      %v920 = vld [vmem:[#allocation2 + $0x68] sm:$0xff]
      %v921 = vld [vmem:[#allocation2 + $0x70] sm:$0xff]
      %v922 = vld [vmem:[#allocation2 + $0x78] sm:$0x1]
      %935 = vrot.lane.b32.xlu0 %v911, 32
      %v936 = vpop.permute.xlu0 %935
      %937 = vrot.lane.b32.xlu0 %v912, 32
      %v938 = vpop.permute.xlu0 %937
      %939 = vrot.lane.b32.xlu0 %v913, 32
      %v940 = vpop.permute.xlu0 %939
      %941 = vrot.lane.b32.xlu0 %v914, 32
      %v942 = vpop.permute.xlu0 %941
      %943 = vrot.lane.b32.xlu0 %v915, 32
      %v944 = vpop.permute.xlu0 %943
      %945 = vrot.lane.b32.xlu0 %v916, 32
      %v946 = vpop.permute.xlu0 %945
      %947 = vrot.lane.b32.xlu0 %v917, 32
      %v948 = vpop.permute.xlu0 %947
      %949 = vrot.lane.b32.xlu0 %v918, 32
      %v950 = vpop.permute.xlu0 %949
      %951 = vrot.lane.b32.xlu0 %v919, 32
      %v952 = vpop.permute.xlu0 %951
      %953 = vrot.lane.b32.xlu0 %v920, 32
      %v954 = vpop.permute.xlu0 %953
      %955 = vrot.lane.b32.xlu0 %v921, 32
      %v956 = vpop.permute.xlu0 %955
      %957 = vrot.lane.b32.xlu0 %v922, 32
      %v958 = vpop.permute.xlu0 %957
      %vm971 = vcmask 294144
      %972 = vst.msk [vmem:[#allocation3] sm:$0xff] %vm971, %v936
      %973 = vst.msk [vmem:[#allocation3 + $0x8] sm:$0xff] %vm971, %v938
      %vm974 = vcmask 286976
      %975 = vst.msk [vmem:[#allocation3 + $0x10] sm:$0x1] %vm974, %v940
      %976 = vst.msk [vmem:[#allocation3 + $0x18] sm:$0xff] %vm971, %v942
      %977 = vst.msk [vmem:[#allocation3 + $0x20] sm:$0xff] %vm971, %v944
      %978 = vst.msk [vmem:[#allocation3 + $0x28] sm:$0x1] %vm974, %v946
      %979 = vst.msk [vmem:[#allocation3 + $0x30] sm:$0xff] %vm971, %v948
      %980 = vst.msk [vmem:[#allocation3 + $0x38] sm:$0xff] %vm971, %v950
      %981 = vst.msk [vmem:[#allocation3 + $0x40] sm:$0x1] %vm974, %v952
      %982 = vst.msk [vmem:[#allocation3 + $0x48] sm:$0xff] %vm971, %v954
      %983 = vst.msk [vmem:[#allocation3 + $0x50] sm:$0xff] %vm971, %v956
      %984 = vst.msk [vmem:[#allocation3 + $0x58] sm:$0x1] %vm974, %v958
      %v985 = vld [vmem:[#allocation2 + $0x9] sm:$0xff]
      %v986 = vld [vmem:[#allocation2 + $0x11] sm:$0xff]
      %v987 = vld [vmem:[#allocation2 + $0x19] sm:$0x1]
      %v988 = vld [vmem:[#allocation2 + $0x29] sm:$0xff]
      %v989 = vld [vmem:[#allocation2 + $0x31] sm:$0xff]
      %v990 = vld [vmem:[#allocation2 + $0x39] sm:$0x1]
      %v991 = vld [vmem:[#allocation2 + $0x49] sm:$0xff]
      %v992 = vld [vmem:[#allocation2 + $0x51] sm:$0xff]
      %v993 = vld [vmem:[#allocation2 + $0x59] sm:$0x1]
      %v994 = vld [vmem:[#allocation2 + $0x69] sm:$0xff]
      %v995 = vld [vmem:[#allocation2 + $0x71] sm:$0xff]
      %v996 = vld [vmem:[#allocation2 + $0x79] sm:$0x1]
      %1009 = vrot.lane.b32.xlu0 %v985, 36
      %v1010 = vpop.permute.xlu0 %1009
      %1011 = vrot.lane.b32.xlu0 %v986, 36
      %v1012 = vpop.permute.xlu0 %1011
      %1013 = vrot.lane.b32.xlu0 %v987, 36
      %v1014 = vpop.permute.xlu0 %1013
      %1015 = vrot.lane.b32.xlu0 %v988, 36
      %v1016 = vpop.permute.xlu0 %1015
      %1017 = vrot.lane.b32.xlu0 %v989, 36
      %v1018 = vpop.permute.xlu0 %1017
      %1019 = vrot.lane.b32.xlu0 %v990, 36
      %v1020 = vpop.permute.xlu0 %1019
      %1021 = vrot.lane.b32.xlu0 %v991, 36
      %v1022 = vpop.permute.xlu0 %1021
      %1023 = vrot.lane.b32.xlu0 %v992, 36
      %v1024 = vpop.permute.xlu0 %1023
      %1025 = vrot.lane.b32.xlu0 %v993, 36
      %v1026 = vpop.permute.xlu0 %1025
      %1027 = vrot.lane.b32.xlu0 %v994, 36
      %v1028 = vpop.permute.xlu0 %1027
      %1029 = vrot.lane.b32.xlu0 %v995, 36
      %v1030 = vpop.permute.xlu0 %1029
      %1031 = vrot.lane.b32.xlu0 %v996, 36
      %v1032 = vpop.permute.xlu0 %1031
      %vm1045 = vcmask 326944
      %1046 = vst.msk [vmem:[#allocation3] sm:$0xff] %vm1045, %v1010
      %1047 = vst.msk [vmem:[#allocation3 + $0x8] sm:$0xff] %vm1045, %v1012
      %vm1048 = vcmask 319776
      %1049 = vst.msk [vmem:[#allocation3 + $0x10] sm:$0x1] %vm1048, %v1014
      %1050 = vst.msk [vmem:[#allocation3 + $0x18] sm:$0xff] %vm1045, %v1016
      %1051 = vst.msk [vmem:[#allocation3 + $0x20] sm:$0xff] %vm1045, %v1018
      %1052 = vst.msk [vmem:[#allocation3 + $0x28] sm:$0x1] %vm1048, %v1020
      %1053 = vst.msk [vmem:[#allocation3 + $0x30] sm:$0xff] %vm1045, %v1022
      %1054 = vst.msk [vmem:[#allocation3 + $0x38] sm:$0xff] %vm1045, %v1024
      %1055 = vst.msk [vmem:[#allocation3 + $0x40] sm:$0x1] %vm1048, %v1026
      %1056 = vst.msk [vmem:[#allocation3 + $0x48] sm:$0xff] %vm1045, %v1028
      %1057 = vst.msk [vmem:[#allocation3 + $0x50] sm:$0xff] %vm1045, %v1030
      %1058 = vst.msk [vmem:[#allocation3 + $0x58] sm:$0x1] %vm1048, %v1032
      %v1059 = vld [vmem:[#allocation3] sm:$0xff]
      %v1060 = vld [vmem:[#allocation3 + $0x8] sm:$0xff]
      %v1061 = vld [vmem:[#allocation3 + $0x10] sm:$0x1]
      %v1062 = vld [vmem:[#allocation3 + $0x18] sm:$0xff]
      %v1063 = vld [vmem:[#allocation3 + $0x20] sm:$0xff]
      %v1064 = vld [vmem:[#allocation3 + $0x28] sm:$0x1]
      %v1065 = vld [vmem:[#allocation3 + $0x30] sm:$0xff]
      %v1066 = vld [vmem:[#allocation3 + $0x38] sm:$0xff]
      %v1067 = vld [vmem:[#allocation3 + $0x40] sm:$0x1]
      %v1068 = vld [vmem:[#allocation3 + $0x48] sm:$0xff]
      %v1069 = vld [vmem:[#allocation3 + $0x50] sm:$0xff]
      %v1070 = vld [vmem:[#allocation3 + $0x58] sm:$0x1]
      %v1071 = vpack.c.bf16 %v1059, %v1059
      %v1072 = vpack.c.bf16 %v1060, %v1060
      %v1073 = vpack.c.bf16 %v1061, %v1061
      %v1074 = vpack.c.bf16 %v1062, %v1062
      %v1075 = vpack.c.bf16 %v1063, %v1063
      %v1076 = vpack.c.bf16 %v1064, %v1064
      %v1077 = vpack.c.bf16 %v1065, %v1065
      %v1078 = vpack.c.bf16 %v1066, %v1066
      %v1079 = vpack.c.bf16 %v1067, %v1067
      %v1080 = vpack.c.bf16 %v1068, %v1068
      %v1081 = vpack.c.bf16 %v1069, %v1069
      %v1082 = vpack.c.bf16 %v1070, %v1070
      %v1095 = vrot.slane %v1071, 3
      %v1096 = vrot.slane %v1072, 3
      %v1097 = vrot.slane %v1073, 3
      %v1098 = vrot.slane %v1074, 3
      %v1099 = vrot.slane %v1075, 3
      %v1100 = vrot.slane %v1076, 3
      %v1101 = vrot.slane %v1077, 3
      %v1102 = vrot.slane %v1078, 3
      %v1103 = vrot.slane %v1079, 3
      %v1104 = vrot.slane %v1080, 3
      %v1105 = vrot.slane %v1081, 3
      %v1106 = vrot.slane %v1082, 3
      %vm1107 = vcmask 1040384
      %v1110 = vsel %vm1107, %v1071, %v1095
      %vm1112 = vcmask 1041409
      %v1113 = vsel %vm1112, %v1071, %v1095
      %v1115 = vrot.slane %v1113, 1
      %vm1116 = vcmask 1042434
      %v1117 = vsel %vm1116, %v1071, %v1095
      %v1119 = vrot.slane %v1117, 2
      %vm1120 = vcmask 1043459
      %v1121 = vsel %vm1120, %v1071, %v1095
      %v1123 = vrot.slane %v1121, 3
      %v1126 = vsel %vm1107, %v1072, %v1096
      %v1128 = vsel %vm1112, %v1072, %v1096
      %v1130 = vrot.slane %v1128, 1
      %v1131 = vsel %vm1116, %v1072, %v1096
      %v1133 = vrot.slane %v1131, 2
      %v1134 = vsel %vm1120, %v1072, %v1096
      %v1136 = vrot.slane %v1134, 3
      %v1139 = vsel %vm1107, %v1073, %v1097
      %v1143 = vsel %vm1107, %v1074, %v1098
      %v1145 = vsel %vm1112, %v1074, %v1098
      %v1147 = vrot.slane %v1145, 1
      %v1148 = vsel %vm1116, %v1074, %v1098
      %v1150 = vrot.slane %v1148, 2
      %v1151 = vsel %vm1120, %v1074, %v1098
      %v1153 = vrot.slane %v1151, 3
      %v1156 = vsel %vm1107, %v1075, %v1099
      %v1158 = vsel %vm1112, %v1075, %v1099
      %v1160 = vrot.slane %v1158, 1
      %v1161 = vsel %vm1116, %v1075, %v1099
      %v1163 = vrot.slane %v1161, 2
      %v1164 = vsel %vm1120, %v1075, %v1099
      %v1166 = vrot.slane %v1164, 3
      %v1169 = vsel %vm1107, %v1076, %v1100
      %v1173 = vsel %vm1107, %v1077, %v1101
      %v1175 = vsel %vm1112, %v1077, %v1101
      %v1177 = vrot.slane %v1175, 1
      %v1178 = vsel %vm1116, %v1077, %v1101
      %v1180 = vrot.slane %v1178, 2
      %v1181 = vsel %vm1120, %v1077, %v1101
      %v1183 = vrot.slane %v1181, 3
      %v1186 = vsel %vm1107, %v1078, %v1102
      %v1188 = vsel %vm1112, %v1078, %v1102
      %v1190 = vrot.slane %v1188, 1
      %v1191 = vsel %vm1116, %v1078, %v1102
      %v1193 = vrot.slane %v1191, 2
      %v1194 = vsel %vm1120, %v1078, %v1102
      %v1196 = vrot.slane %v1194, 3
      %v1199 = vsel %vm1107, %v1079, %v1103
      %v1203 = vsel %vm1107, %v1080, %v1104
      %v1205 = vsel %vm1112, %v1080, %v1104
      %v1207 = vrot.slane %v1205, 1
      %v1208 = vsel %vm1116, %v1080, %v1104
      %v1210 = vrot.slane %v1208, 2
      %v1211 = vsel %vm1120, %v1080, %v1104
      %v1213 = vrot.slane %v1211, 3
      %v1216 = vsel %vm1107, %v1081, %v1105
      %v1218 = vsel %vm1112, %v1081, %v1105
      %v1220 = vrot.slane %v1218, 1
      %v1221 = vsel %vm1116, %v1081, %v1105
      %v1223 = vrot.slane %v1221, 2
      %v1224 = vsel %vm1120, %v1081, %v1105
      %v1226 = vrot.slane %v1224, 3
      %v1229 = vsel %vm1107, %v1082, %v1106
      %v1231 = vunpack.i.l.s16 %v1110
      %v1232 = vunpack.i.h.s16 %v1110
      %v1233 = vunpack.i.l.s16 %v1115
      %v1234 = vunpack.i.h.s16 %v1115
      %v1235 = vunpack.i.l.s16 %v1119
      %v1236 = vunpack.i.h.s16 %v1119
      %v1237 = vunpack.i.l.s16 %v1123
      %v1238 = vunpack.i.h.s16 %v1123
      %v1239 = vunpack.i.l.s16 %v1126
      %v1240 = vunpack.i.h.s16 %v1126
      %v1241 = vunpack.i.l.s16 %v1130
      %v1242 = vunpack.i.h.s16 %v1130
      %v1243 = vunpack.i.l.s16 %v1133
      %v1244 = vunpack.i.h.s16 %v1133
      %v1245 = vunpack.i.l.s16 %v1136
      %v1246 = vunpack.i.h.s16 %v1136
      %v1247 = vunpack.i.l.s16 %v1139
      %v1248 = vunpack.i.l.s16 %v1143
      %v1249 = vunpack.i.h.s16 %v1143
      %v1250 = vunpack.i.l.s16 %v1147
      %v1251 = vunpack.i.h.s16 %v1147
      %v1252 = vunpack.i.l.s16 %v1150
      %v1253 = vunpack.i.h.s16 %v1150
      %v1254 = vunpack.i.l.s16 %v1153
      %v1255 = vunpack.i.h.s16 %v1153
      %v1256 = vunpack.i.l.s16 %v1156
      %v1257 = vunpack.i.h.s16 %v1156
      %v1258 = vunpack.i.l.s16 %v1160
      %v1259 = vunpack.i.h.s16 %v1160
      %v1260 = vunpack.i.l.s16 %v1163
      %v1261 = vunpack.i.h.s16 %v1163
      %v1262 = vunpack.i.l.s16 %v1166
      %v1263 = vunpack.i.h.s16 %v1166
      %v1264 = vunpack.i.l.s16 %v1169
      %v1265 = vunpack.i.l.s16 %v1173
      %v1266 = vunpack.i.h.s16 %v1173
      %v1267 = vunpack.i.l.s16 %v1177
      %v1268 = vunpack.i.h.s16 %v1177
      %v1269 = vunpack.i.l.s16 %v1180
      %v1270 = vunpack.i.h.s16 %v1180
      %v1271 = vunpack.i.l.s16 %v1183
      %v1272 = vunpack.i.h.s16 %v1183
      %v1273 = vunpack.i.l.s16 %v1186
      %v1274 = vunpack.i.h.s16 %v1186
      %v1275 = vunpack.i.l.s16 %v1190
      %v1276 = vunpack.i.h.s16 %v1190
      %v1277 = vunpack.i.l.s16 %v1193
      %v1278 = vunpack.i.h.s16 %v1193
      %v1279 = vunpack.i.l.s16 %v1196
      %v1280 = vunpack.i.h.s16 %v1196
      %v1281 = vunpack.i.l.s16 %v1199
      %v1282 = vunpack.i.l.s16 %v1203
      %v1283 = vunpack.i.h.s16 %v1203
      %v1284 = vunpack.i.l.s16 %v1207
      %v1285 = vunpack.i.h.s16 %v1207
      %v1286 = vunpack.i.l.s16 %v1210
      %v1287 = vunpack.i.h.s16 %v1210
      %v1288 = vunpack.i.l.s16 %v1213
      %v1289 = vunpack.i.h.s16 %v1213
      %v1290 = vunpack.i.l.s16 %v1216
      %v1291 = vunpack.i.h.s16 %v1216
      %v1292 = vunpack.i.l.s16 %v1220
      %v1293 = vunpack.i.h.s16 %v1220
      %v1294 = vunpack.i.l.s16 %v1223
      %v1295 = vunpack.i.h.s16 %v1223
      %v1296 = vunpack.i.l.s16 %v1226
      %v1297 = vunpack.i.h.s16 %v1226
      %v1298 = vunpack.i.l.s16 %v1229
      %v1299 = vld [vmem:[%s1] sm:$0xf]
      %v1300 = vld [vmem:[%s1 + $0x4] sm:$0xf]
      %v1301 = vld [vmem:[%s1 + $0x8] sm:$0xf]
      %v1302 = vld [vmem:[%s1 + $0xc] sm:$0xf]
      %v1303 = vld [vmem:[%s1 + $0x10] sm:$0xf]
      %v1304 = vld [vmem:[%s2] sm:$0x1]
      %v1306 = vperm.slane %v1304, 0
      %v1308 = vpack.i.b16 %v1232, %v1231
      %v1309 = vpack.i.b16 %v1234, %v1233
      %v1310 = vpack.i.b16 %v1236, %v1235
      %v1311 = vpack.i.b16 %v1238, %v1237
      %v1312 = vpack.i.b16 %v1240, %v1239
      %v1313 = vpack.i.b16 %v1242, %v1241
      %v1314 = vpack.i.b16 %v1244, %v1243
      %v1315 = vpack.i.b16 %v1246, %v1245
      %v1316 = vpack.i.b16 %v1248, %v1247
      %v1317 = vpack.i.b16 %v1250, %v1249
      %v1318 = vpack.i.b16 %v1252, %v1251
      %v1319 = vpack.i.b16 %v1254, %v1253
      %v1320 = vpack.i.b16 %v1256, %v1255
      %v1321 = vpack.i.b16 %v1258, %v1257
      %v1322 = vpack.i.b16 %v1260, %v1259
      %v1323 = vpack.i.b16 %v1262, %v1261
      %v1324 = vpack.i.b16 %v1264, %v1263
      %v1325 = vpack.i.b16 %v1266, %v1265
      %v1326 = vpack.i.b16 %v1268, %v1267
      %v1327 = vpack.i.b16 %v1270, %v1269
      %v1328 = vpack.i.b16 %v1272, %v1271
      %v1329 = vpack.i.b16 %v1274, %v1273
      %v1330 = vpack.i.b16 %v1276, %v1275
      %v1331 = vpack.i.b16 %v1278, %v1277
      %v1332 = vpack.i.b16 %v1280, %v1279
      %v1333 = vpack.i.b16 %v1282, %v1281
      %v1334 = vpack.i.b16 %v1284, %v1283
      %v1335 = vpack.i.b16 %v1286, %v1285
      %v1336 = vpack.i.b16 %v1288, %v1287
      %v1337 = vpack.i.b16 %v1290, %v1289
      %v1338 = vpack.i.b16 %v1292, %v1291
      %v1339 = vpack.i.b16 %v1294, %v1293
      %v1340 = vpack.i.b16 %v1296, %v1295
      %v1341 = vpack.i.b16 %v1298, %v1297
      %1343 = vst [vmem:[#allocation1] ss:$9 sm:$0xff] %v1308
      %s1345 = scalar_lea.vmem [#allocation1], 1
      %1346 = vst [vmem:[%s1345] ss:$9 sm:$0xff] %v1309
      %s1348 = scalar_lea.vmem [#allocation1], 2
      %1349 = vst [vmem:[%s1348] ss:$9 sm:$0xff] %v1310
      %s1351 = scalar_lea.vmem [#allocation1], 3
      %1352 = vst [vmem:[%s1351] ss:$9 sm:$0xff] %v1311
      %s1354 = scalar_lea.vmem [#allocation1], 4
      %1355 = vst [vmem:[%s1354] ss:$9 sm:$0xff] %v1312
      %s1357 = scalar_lea.vmem [#allocation1], 5
      %1358 = vst [vmem:[%s1357] ss:$9 sm:$0xff] %v1313
      %s1360 = scalar_lea.vmem [#allocation1], 6
      %1361 = vst [vmem:[%s1360] ss:$9 sm:$0xff] %v1314
      %s1363 = scalar_lea.vmem [#allocation1], 7
      %1364 = vst [vmem:[%s1363] ss:$9 sm:$0xff] %v1315
      %v1365 = vld [vmem:[#allocation1] sm:$0xff]
      %1367 = vst [vmem:[#allocation1] ss:$9 sm:$0xff] %v1316
      %1369 = vst [vmem:[%s1345] ss:$9 sm:$0xff] %v1317
      %1371 = vst [vmem:[%s1348] ss:$9 sm:$0xff] %v1318
      %1373 = vst [vmem:[%s1351] ss:$9 sm:$0xff] %v1319
      %1375 = vst [vmem:[%s1354] ss:$9 sm:$0xff] %v1320
      %1377 = vst [vmem:[%s1357] ss:$9 sm:$0xff] %v1321
      %1379 = vst [vmem:[%s1360] ss:$9 sm:$0xff] %v1322
      %1381 = vst [vmem:[%s1363] ss:$9 sm:$0xff] %v1323
      %v1382 = vld [vmem:[#allocation1] sm:$0xff]
      %1384 = vst [vmem:[#allocation1] ss:$9 sm:$0xff] %v1324
      %1386 = vst [vmem:[%s1345] ss:$9 sm:$0xff] %v1325
      %1388 = vst [vmem:[%s1348] ss:$9 sm:$0xff] %v1326
      %1390 = vst [vmem:[%s1351] ss:$9 sm:$0xff] %v1327
      %1392 = vst [vmem:[%s1354] ss:$9 sm:$0xff] %v1328
      %1394 = vst [vmem:[%s1357] ss:$9 sm:$0xff] %v1329
      %1396 = vst [vmem:[%s1360] ss:$9 sm:$0xff] %v1330
      %1398 = vst [vmem:[%s1363] ss:$9 sm:$0xff] %v1331
      %v1399 = vld [vmem:[#allocation1] sm:$0xff]
      %1401 = vst [vmem:[#allocation1] ss:$9 sm:$0xff] %v1332
      %1403 = vst [vmem:[%s1345] ss:$9 sm:$0xff] %v1333
      %1405 = vst [vmem:[%s1348] ss:$9 sm:$0xff] %v1334
      %1407 = vst [vmem:[%s1351] ss:$9 sm:$0xff] %v1335
      %1409 = vst [vmem:[%s1354] ss:$9 sm:$0xff] %v1336
      %1411 = vst [vmem:[%s1357] ss:$9 sm:$0xff] %v1337
      %1413 = vst [vmem:[%s1360] ss:$9 sm:$0xff] %v1338
      %1415 = vst [vmem:[%s1363] ss:$9 sm:$0xff] %v1339
      %v1416 = vld [vmem:[#allocation1] sm:$0xff]
      %1418 = vst [vmem:[#allocation1] ss:$9 sm:$0xff] %v1340
      %1420 = vst [vmem:[%s1345] ss:$9 sm:$0xff] %v1341
      %v1421 = vld [vmem:[#allocation1] sm:$0xff]
      %v1427 = vunpack.c.l.b16 %v1299
      %v1428 = vunpack.c.l.b16 %v1300
      %v1429 = vunpack.c.l.b16 %v1301
      %v1430 = vunpack.c.l.b16 %v1302
      %v1431 = vunpack.c.l.b16 %v1303
      %v1432 = vpack.c.b16 %v1428, %v1427
      %v1433 = vpack.c.b16 %v1430, %v1429
      %v1434 = vpack.c.b16 %v1431, %v1431
      %vm1437 = vcmask 326656
      %v1438 = vsel %vm1437, %v1365, 0
      %v1440 = vsel %vm1437, %v1382, 0
      %v1442 = vsel %vm1437, %v1399, 0
      %v1444 = vsel %vm1437, %v1416, 0
      %v1446 = vsel %vm1437, %v1421, 0
      %vm1448 = vcmask 1043456
      %v1450 = vsel %vm1448, %v1434, 0
      %1452 = vmatpush.bf16.msra.mxu0 0
      %1453 = vmatpush.bf16.msra.mxu0 0
      %1454 = vmatpush.bf16.msra.mxu0 0
      %1455 = vmatpush.bf16.msra.mxu0 0
      %1456 = vmatpush.bf16.msra.mxu0 0
      %1457 = vmatpush.bf16.msra.mxu0 %v1450
      %1458 = vmatpush.bf16.msra.mxu0 %v1433
      %1459 = vmatpush.bf16.msra.mxu0 %v1432
      %1460 = vmatmul.bf16.gmra.mxu0 %v1438
      %v1461 = vpop.f32.mrf.mxu0
      %v1462 = vadd.f32 %v1306, %v1461
      %v1463 = vpop.f32.mrf.mxu0
      %v1464 = vadd.f32 %v1306, %v1463
      %1465 = vmatmul.bf16.gmra.mxu0 %v1440
      %v1466 = vpop.f32.mrf.mxu0
      %v1467 = vadd.f32 %v1306, %v1466
      %v1468 = vpop.f32.mrf.mxu0
      %v1469 = vadd.f32 %v1306, %v1468
      %1470 = vmatmul.bf16.gmra.mxu0 %v1442
      %v1471 = vpop.f32.mrf.mxu0
      %v1472 = vadd.f32 %v1306, %v1471
      %v1473 = vpop.f32.mrf.mxu0
      %v1474 = vadd.f32 %v1306, %v1473
      %1475 = vmatmul.bf16.gmra.mxu0 %v1444
      %v1476 = vpop.f32.mrf.mxu0
      %v1477 = vadd.f32 %v1306, %v1476
      %v1478 = vpop.f32.mrf.mxu0
      %v1479 = vadd.f32 %v1306, %v1478
      %1480 = vmatmul.bf16.gmra.mxu0 %v1446
      %v1481 = vpop.f32.mrf.mxu0
      %v1482 = vadd.f32 %v1306, %v1481
      %v1483 = vpop.f32.mrf.mxu0
      %1484 = vdwg.mxu0
      %vm1485 = vcmask 261120
      %1486 = vst.msk [vmem:[#allocation4] sm:$0xff] %vm1485, 0.0
      %1487 = vst.msk [vmem:[#allocation4 + $0x8] sm:$0xff] %vm1485, 0.0
      %vm1488 = vcmask 256000
      %1489 = vst.msk [vmem:[#allocation4 + $0x10] sm:$0x7] %vm1488, 0.0
      %1490 = vst.msk [vmem:[#allocation4 + $0x18] sm:$0xff] %vm1485, 0.0
      %1491 = vst.msk [vmem:[#allocation4 + $0x20] sm:$0xff] %vm1485, 0.0
      %1492 = vst.msk [vmem:[#allocation4 + $0x28] sm:$0x7] %vm1488, 0.0
      %1493 = vst.msk [vmem:[#allocation4 + $0x30] sm:$0xff] %vm1485, 0.0
      %1494 = vst.msk [vmem:[#allocation4 + $0x38] sm:$0xff] %vm1485, 0.0
      %1495 = vst.msk [vmem:[#allocation4 + $0x40] sm:$0x7] %vm1488, 0.0
      %1496 = vst.msk [vmem:[#allocation4 + $0x48] sm:$0xff] %vm1485, 0.0
      %1497 = vst.msk [vmem:[#allocation4 + $0x50] sm:$0xff] %vm1485, 0.0
      %1498 = vst.msk [vmem:[#allocation4 + $0x58] sm:$0x7] %vm1488, 0.0
      %v1508 = vrot.slane %v1462, 1
      %v1509 = vrot.slane %v1462, 2
      %v1510 = vrot.slane %v1462, 3
      %v1511 = vrot.slane %v1462, 4
      %v1512 = vrot.slane %v1462, 5
      %v1513 = vrot.slane %v1462, 6
      %v1514 = vrot.slane %v1462, 7
      %v1515 = vrot.slane %v1464, 1
      %v1516 = vrot.slane %v1464, 2
      %v1517 = vrot.slane %v1464, 3
      %v1518 = vrot.slane %v1464, 4
      %v1519 = vrot.slane %v1464, 5
      %v1520 = vrot.slane %v1464, 6
      %v1521 = vrot.slane %v1464, 7
      %v1522 = vrot.slane %v1467, 1
      %v1523 = vrot.slane %v1467, 2
      %v1524 = vrot.slane %v1467, 3
      %v1525 = vrot.slane %v1467, 4
      %v1526 = vrot.slane %v1467, 5
      %v1527 = vrot.slane %v1467, 6
      %v1528 = vrot.slane %v1467, 7
      %v1529 = vrot.slane %v1469, 1
      %v1530 = vrot.slane %v1469, 2
      %v1531 = vrot.slane %v1469, 3
      %v1532 = vrot.slane %v1469, 4
      %v1533 = vrot.slane %v1469, 5
      %v1534 = vrot.slane %v1469, 6
      %v1535 = vrot.slane %v1469, 7
      %v1536 = vrot.slane %v1472, 1
      %v1537 = vrot.slane %v1472, 2
      %v1538 = vrot.slane %v1472, 3
      %v1539 = vrot.slane %v1472, 4
      %v1540 = vrot.slane %v1472, 5
      %v1541 = vrot.slane %v1472, 6
      %v1542 = vrot.slane %v1472, 7
      %v1543 = vrot.slane %v1474, 1
      %v1544 = vrot.slane %v1474, 2
      %v1545 = vrot.slane %v1474, 3
      %v1546 = vrot.slane %v1474, 4
      %v1547 = vrot.slane %v1474, 5
      %v1548 = vrot.slane %v1474, 6
      %v1549 = vrot.slane %v1474, 7
      %v1550 = vrot.slane %v1477, 1
      %v1551 = vrot.slane %v1477, 2
      %v1552 = vrot.slane %v1477, 3
      %v1553 = vrot.slane %v1477, 4
      %v1554 = vrot.slane %v1477, 5
      %v1555 = vrot.slane %v1477, 6
      %v1556 = vrot.slane %v1477, 7
      %v1557 = vrot.slane %v1479, 1
      %v1558 = vrot.slane %v1479, 2
      %v1559 = vrot.slane %v1479, 3
      %v1560 = vrot.slane %v1479, 4
      %v1561 = vrot.slane %v1479, 5
      %v1562 = vrot.slane %v1479, 6
      %v1563 = vrot.slane %v1479, 7
      %v1564 = vrot.slane %v1482, 1
      %v1565 = vrot.slane %v1482, 2
      %v1566 = vrot.slane %v1482, 3
      %1567 = vst [vmem:[#allocation1] ss:$9 sm:$0xff] %v1462
      %s1568 = scalar_lea.vmem [#allocation1], 1
      %1569 = vst [vmem:[%s1568] ss:$9 sm:$0xff] %v1508
      %s1570 = scalar_lea.vmem [#allocation1], 2
      %1571 = vst [vmem:[%s1570] ss:$9 sm:$0xff] %v1509
      %s1572 = scalar_lea.vmem [#allocation1], 3
      %1573 = vst [vmem:[%s1572] ss:$9 sm:$0xff] %v1510
      %s1574 = scalar_lea.vmem [#allocation1], 4
      %1575 = vst [vmem:[%s1574] ss:$9 sm:$0xff] %v1511
      %s1576 = scalar_lea.vmem [#allocation1], 5
      %1577 = vst [vmem:[%s1576] ss:$9 sm:$0xff] %v1512
      %s1578 = scalar_lea.vmem [#allocation1], 6
      %1579 = vst [vmem:[%s1578] ss:$9 sm:$0xff] %v1513
      %s1580 = scalar_lea.vmem [#allocation1], 7
      %1581 = vst [vmem:[%s1580] ss:$9 sm:$0xff] %v1514
      %v1582 = vld [vmem:[#allocation1] sm:$0xff]
      %1583 = vst [vmem:[#allocation1] ss:$9 sm:$0xff] %v1464
      %1584 = vst [vmem:[%s1568] ss:$9 sm:$0xff] %v1515
      %1585 = vst [vmem:[%s1570] ss:$9 sm:$0xff] %v1516
      %1586 = vst [vmem:[%s1572] ss:$9 sm:$0xff] %v1517
      %1587 = vst [vmem:[%s1574] ss:$9 sm:$0xff] %v1518
      %1588 = vst [vmem:[%s1576] ss:$9 sm:$0xff] %v1519
      %1589 = vst [vmem:[%s1578] ss:$9 sm:$0xff] %v1520
      %1590 = vst [vmem:[%s1580] ss:$9 sm:$0xff] %v1521
      %v1591 = vld [vmem:[#allocation1] sm:$0xff]
      %1592 = vst [vmem:[#allocation1] ss:$9 sm:$0xff] %v1467
      %v1593 = vld [vmem:[#allocation1] sm:$0xff]
      %1594 = vst [vmem:[#allocation1] ss:$9 sm:$0xff] %v1522
      %1595 = vst [vmem:[%s1568] ss:$9 sm:$0xff] %v1523
      %1596 = vst [vmem:[%s1570] ss:$9 sm:$0xff] %v1524
      %1597 = vst [vmem:[%s1572] ss:$9 sm:$0xff] %v1525
      %1598 = vst [vmem:[%s1574] ss:$9 sm:$0xff] %v1526
      %1599 = vst [vmem:[%s1576] ss:$9 sm:$0xff] %v1527
      %1600 = vst [vmem:[%s1578] ss:$9 sm:$0xff] %v1528
      %1601 = vst [vmem:[%s1580] ss:$9 sm:$0xff] %v1469
      %v1602 = vld [vmem:[#allocation1] sm:$0xff]
      %1603 = vst [vmem:[#allocation1] ss:$9 sm:$0xff] %v1529
      %1604 = vst [vmem:[%s1568] ss:$9 sm:$0xff] %v1530
      %1605 = vst [vmem:[%s1570] ss:$9 sm:$0xff] %v1531
      %1606 = vst [vmem:[%s1572] ss:$9 sm:$0xff] %v1532
      %1607 = vst [vmem:[%s1574] ss:$9 sm:$0xff] %v1533
      %1608 = vst [vmem:[%s1576] ss:$9 sm:$0xff] %v1534
      %1609 = vst [vmem:[%s1578] ss:$9 sm:$0xff] %v1535
      %1610 = vst [vmem:[%s1580] ss:$9 sm:$0xff] %v1472
      %v1611 = vld [vmem:[#allocation1] sm:$0xff]
      %1612 = vst [vmem:[#allocation1] ss:$9 sm:$0xff] %v1536
      %v1613 = vld [vmem:[#allocation1] sm:$0xff]
      %1614 = vst [vmem:[#allocation1] ss:$9 sm:$0xff] %v1537
      %1615 = vst [vmem:[%s1568] ss:$9 sm:$0xff] %v1538
      %1616 = vst [vmem:[%s1570] ss:$9 sm:$0xff] %v1539
      %1617 = vst [vmem:[%s1572] ss:$9 sm:$0xff] %v1540
      %1618 = vst [vmem:[%s1574] ss:$9 sm:$0xff] %v1541
      %1619 = vst [vmem:[%s1576] ss:$9 sm:$0xff] %v1542
      %1620 = vst [vmem:[%s1578] ss:$9 sm:$0xff] %v1474
      %1621 = vst [vmem:[%s1580] ss:$9 sm:$0xff] %v1543
      %v1622 = vld [vmem:[#allocation1] sm:$0xff]
      %1623 = vst [vmem:[#allocation1] ss:$9 sm:$0xff] %v1544
      %1624 = vst [vmem:[%s1568] ss:$9 sm:$0xff] %v1545
      %1625 = vst [vmem:[%s1570] ss:$9 sm:$0xff] %v1546
      %1626 = vst [vmem:[%s1572] ss:$9 sm:$0xff] %v1547
      %1627 = vst [vmem:[%s1574] ss:$9 sm:$0xff] %v1548
      %1628 = vst [vmem:[%s1576] ss:$9 sm:$0xff] %v1549
      %1629 = vst [vmem:[%s1578] ss:$9 sm:$0xff] %v1477
      %1630 = vst [vmem:[%s1580] ss:$9 sm:$0xff] %v1550
      %v1631 = vld [vmem:[#allocation1] sm:$0xff]
      %1632 = vst [vmem:[#allocation1] ss:$9 sm:$0xff] %v1551
      %v1633 = vld [vmem:[#allocation1] sm:$0xff]
      %1634 = vst [vmem:[#allocation1] ss:$9 sm:$0xff] %v1552
      %1635 = vst [vmem:[%s1568] ss:$9 sm:$0xff] %v1553
      %1636 = vst [vmem:[%s1570] ss:$9 sm:$0xff] %v1554
      %1637 = vst [vmem:[%s1572] ss:$9 sm:$0xff] %v1555
      %1638 = vst [vmem:[%s1574] ss:$9 sm:$0xff] %v1556
      %1639 = vst [vmem:[%s1576] ss:$9 sm:$0xff] %v1479
      %1640 = vst [vmem:[%s1578] ss:$9 sm:$0xff] %v1557
      %1641 = vst [vmem:[%s1580] ss:$9 sm:$0xff] %v1558
      %v1642 = vld [vmem:[#allocation1] sm:$0xff]
      %1643 = vst [vmem:[#allocation1] ss:$9 sm:$0xff] %v1559
      %1644 = vst [vmem:[%s1568] ss:$9 sm:$0xff] %v1560
      %1645 = vst [vmem:[%s1570] ss:$9 sm:$0xff] %v1561
      %1646 = vst [vmem:[%s1572] ss:$9 sm:$0xff] %v1562
      %1647 = vst [vmem:[%s1574] ss:$9 sm:$0xff] %v1563
      %1648 = vst [vmem:[%s1576] ss:$9 sm:$0xff] %v1482
      %1649 = vst [vmem:[%s1578] ss:$9 sm:$0xff] %v1564
      %1650 = vst [vmem:[%s1580] ss:$9 sm:$0xff] %v1565
      %v1651 = vld [vmem:[#allocation1] sm:$0xff]
      %1652 = vst [vmem:[#allocation1] ss:$9 sm:$0xff] %v1566
      %v1653 = vld [vmem:[#allocation1] sm:$0xff]
      %1666 = vst.msk [vmem:[#allocation4 + $0x1] sm:$0xff] %vm1485, %v1582
      %1667 = vst.msk [vmem:[#allocation4 + $0x9] sm:$0xff] %vm1485, %v1591
      %vm1668 = vcmask 253952
      %1669 = vst.msk [vmem:[#allocation4 + $0x11] sm:$0x1] %vm1668, %v1593
      %1670 = vst.msk [vmem:[#allocation4 + $0x19] sm:$0xff] %vm1485, %v1602
      %1671 = vst.msk [vmem:[#allocation4 + $0x21] sm:$0xff] %vm1485, %v1611
      %1672 = vst.msk [vmem:[#allocation4 + $0x29] sm:$0x1] %vm1668, %v1613
      %1673 = vst.msk [vmem:[#allocation4 + $0x31] sm:$0xff] %vm1485, %v1622
      %1674 = vst.msk [vmem:[#allocation4 + $0x39] sm:$0xff] %vm1485, %v1631
      %1675 = vst.msk [vmem:[#allocation4 + $0x41] sm:$0x1] %vm1668, %v1633
      %1676 = vst.msk [vmem:[#allocation4 + $0x49] sm:$0xff] %vm1485, %v1642
      %1677 = vst.msk [vmem:[#allocation4 + $0x51] sm:$0xff] %vm1485, %v1651
      %1678 = vst.msk [vmem:[#allocation4 + $0x59] sm:$0x1] %vm1668, %v1653
      %v1679 = vld [vmem:[#allocation4] sm:$0xff]
      %v1680 = vld [vmem:[#allocation4 + $0x8] sm:$0xff]
      %v1681 = vld [vmem:[#allocation4 + $0x10] sm:$0x1]
      %v1682 = vld [vmem:[#allocation4 + $0x18] sm:$0xff]
      %v1683 = vld [vmem:[#allocation4 + $0x20] sm:$0xff]
      %v1684 = vld [vmem:[#allocation4 + $0x28] sm:$0x1]
      %v1685 = vld [vmem:[#allocation4 + $0x30] sm:$0xff]
      %v1686 = vld [vmem:[#allocation4 + $0x38] sm:$0xff]
      %v1687 = vld [vmem:[#allocation4 + $0x40] sm:$0x1]
      %v1688 = vld [vmem:[#allocation4 + $0x48] sm:$0xff]
      %v1689 = vld [vmem:[#allocation4 + $0x50] sm:$0xff]
      %v1690 = vld [vmem:[#allocation4 + $0x58] sm:$0x1]
      %1691 = vst.msk [vmem:[#allocation5] sm:$0xff] %vm1485, %v1679
      %1692 = vst.msk [vmem:[#allocation5 + $0x8] sm:$0xff] %vm1485, %v1680
      %1693 = vst.msk [vmem:[#allocation5 + $0x10] sm:$0x1] %vm1668, %v1681
      %1694 = vst.msk [vmem:[#allocation5 + $0x18] sm:$0xff] %vm1485, %v1682
      %1695 = vst.msk [vmem:[#allocation5 + $0x20] sm:$0xff] %vm1485, %v1683
      %1696 = vst.msk [vmem:[#allocation5 + $0x28] sm:$0x1] %vm1668, %v1684
      %1697 = vst.msk [vmem:[#allocation5 + $0x30] sm:$0xff] %vm1485, %v1685
      %1698 = vst.msk [vmem:[#allocation5 + $0x38] sm:$0xff] %vm1485, %v1686
      %1699 = vst.msk [vmem:[#allocation5 + $0x40] sm:$0x1] %vm1668, %v1687
      %1700 = vst.msk [vmem:[#allocation5 + $0x48] sm:$0xff] %vm1485, %v1688
      %1701 = vst.msk [vmem:[#allocation5 + $0x50] sm:$0xff] %vm1485, %v1689
      %1702 = vst.msk [vmem:[#allocation5 + $0x58] sm:$0x1] %vm1668, %v1690
      %v1703 = vld [vmem:[#allocation4 + $0x1] sm:$0xff]
      %v1704 = vld [vmem:[#allocation4 + $0x9] sm:$0xff]
      %v1705 = vld [vmem:[#allocation4 + $0x11] sm:$0x1]
      %v1706 = vld [vmem:[#allocation4 + $0x19] sm:$0xff]
      %v1707 = vld [vmem:[#allocation4 + $0x21] sm:$0xff]
      %v1708 = vld [vmem:[#allocation4 + $0x29] sm:$0x1]
      %v1709 = vld [vmem:[#allocation4 + $0x31] sm:$0xff]
      %v1710 = vld [vmem:[#allocation4 + $0x39] sm:$0xff]
      %v1711 = vld [vmem:[#allocation4 + $0x41] sm:$0x1]
      %v1712 = vld [vmem:[#allocation4 + $0x49] sm:$0xff]
      %v1713 = vld [vmem:[#allocation4 + $0x51] sm:$0xff]
      %v1714 = vld [vmem:[#allocation4 + $0x59] sm:$0x1]
      %1727 = vrot.lane.b32.xlu0 %v1703, 32
      %v1728 = vpop.permute.xlu0 %1727
      %1729 = vrot.lane.b32.xlu0 %v1704, 32
      %v1730 = vpop.permute.xlu0 %1729
      %1731 = vrot.lane.b32.xlu0 %v1705, 32
      %v1732 = vpop.permute.xlu0 %1731
      %1733 = vrot.lane.b32.xlu0 %v1706, 32
      %v1734 = vpop.permute.xlu0 %1733
      %1735 = vrot.lane.b32.xlu0 %v1707, 32
      %v1736 = vpop.permute.xlu0 %1735
      %1737 = vrot.lane.b32.xlu0 %v1708, 32
      %v1738 = vpop.permute.xlu0 %1737
      %1739 = vrot.lane.b32.xlu0 %v1709, 32
      %v1740 = vpop.permute.xlu0 %1739
      %1741 = vrot.lane.b32.xlu0 %v1710, 32
      %v1742 = vpop.permute.xlu0 %1741
      %1743 = vrot.lane.b32.xlu0 %v1711, 32
      %v1744 = vpop.permute.xlu0 %1743
      %1745 = vrot.lane.b32.xlu0 %v1712, 32
      %v1746 = vpop.permute.xlu0 %1745
      %1747 = vrot.lane.b32.xlu0 %v1713, 32
      %v1748 = vpop.permute.xlu0 %1747
      %1749 = vrot.lane.b32.xlu0 %v1714, 32
      %v1750 = vpop.permute.xlu0 %1749
      %vm1763 = vcmask 523520
      %1764 = vst.msk [vmem:[#allocation5] sm:$0xff] %vm1763, %v1728
      %1765 = vst.msk [vmem:[#allocation5 + $0x8] sm:$0xff] %vm1763, %v1730
      %vm1766 = vcmask 516352
      %1767 = vst.msk [vmem:[#allocation5 + $0x10] sm:$0x1] %vm1766, %v1732
      %1768 = vst.msk [vmem:[#allocation5 + $0x18] sm:$0xff] %vm1763, %v1734
      %1769 = vst.msk [vmem:[#allocation5 + $0x20] sm:$0xff] %vm1763, %v1736
      %1770 = vst.msk [vmem:[#allocation5 + $0x28] sm:$0x1] %vm1766, %v1738
      %1771 = vst.msk [vmem:[#allocation5 + $0x30] sm:$0xff] %vm1763, %v1740
      %1772 = vst.msk [vmem:[#allocation5 + $0x38] sm:$0xff] %vm1763, %v1742
      %1773 = vst.msk [vmem:[#allocation5 + $0x40] sm:$0x1] %vm1766, %v1744
      %1774 = vst.msk [vmem:[#allocation5 + $0x48] sm:$0xff] %vm1763, %v1746
      %1775 = vst.msk [vmem:[#allocation5 + $0x50] sm:$0xff] %vm1763, %v1748
      %1776 = vst.msk [vmem:[#allocation5 + $0x58] sm:$0x1] %vm1766, %v1750
      %v1777 = vld [vmem:[#allocation4 + $0x2] sm:$0xff]
      %v1778 = vld [vmem:[#allocation4 + $0xa] sm:$0xff]
      %v1779 = vld [vmem:[#allocation4 + $0x12] sm:$0x1]
      %v1780 = vld [vmem:[#allocation4 + $0x1a] sm:$0xff]
      %v1781 = vld [vmem:[#allocation4 + $0x22] sm:$0xff]
      %v1782 = vld [vmem:[#allocation4 + $0x2a] sm:$0x1]
      %v1783 = vld [vmem:[#allocation4 + $0x32] sm:$0xff]
      %v1784 = vld [vmem:[#allocation4 + $0x3a] sm:$0xff]
      %v1785 = vld [vmem:[#allocation4 + $0x42] sm:$0x1]
      %v1786 = vld [vmem:[#allocation4 + $0x4a] sm:$0xff]
      %v1787 = vld [vmem:[#allocation4 + $0x52] sm:$0xff]
      %v1788 = vld [vmem:[#allocation4 + $0x5a] sm:$0x1]
      %1801 = vrot.lane.b32.xlu0 %v1777, 64
      %v1802 = vpop.permute.xlu0 %1801
      %1803 = vrot.lane.b32.xlu0 %v1778, 64
      %v1804 = vpop.permute.xlu0 %1803
      %1805 = vrot.lane.b32.xlu0 %v1779, 64
      %v1806 = vpop.permute.xlu0 %1805
      %1807 = vrot.lane.b32.xlu0 %v1780, 64
      %v1808 = vpop.permute.xlu0 %1807
      %1809 = vrot.lane.b32.xlu0 %v1781, 64
      %v1810 = vpop.permute.xlu0 %1809
      %1811 = vrot.lane.b32.xlu0 %v1782, 64
      %v1812 = vpop.permute.xlu0 %1811
      %1813 = vrot.lane.b32.xlu0 %v1783, 64
      %v1814 = vpop.permute.xlu0 %1813
      %1815 = vrot.lane.b32.xlu0 %v1784, 64
      %v1816 = vpop.permute.xlu0 %1815
      %1817 = vrot.lane.b32.xlu0 %v1785, 64
      %v1818 = vpop.permute.xlu0 %1817
      %1819 = vrot.lane.b32.xlu0 %v1786, 64
      %v1820 = vpop.permute.xlu0 %1819
      %1821 = vrot.lane.b32.xlu0 %v1787, 64
      %v1822 = vpop.permute.xlu0 %1821
      %1823 = vrot.lane.b32.xlu0 %v1788, 64
      %v1824 = vpop.permute.xlu0 %1823
      %vm1837 = vcmask 785920
      %1838 = vst.msk [vmem:[#allocation5] sm:$0xff] %vm1837, %v1802
      %1839 = vst.msk [vmem:[#allocation5 + $0x8] sm:$0xff] %vm1837, %v1804
      %vm1840 = vcmask 778752
      %1841 = vst.msk [vmem:[#allocation5 + $0x10] sm:$0x1] %vm1840, %v1806
      %1842 = vst.msk [vmem:[#allocation5 + $0x18] sm:$0xff] %vm1837, %v1808
      %1843 = vst.msk [vmem:[#allocation5 + $0x20] sm:$0xff] %vm1837, %v1810
      %1844 = vst.msk [vmem:[#allocation5 + $0x28] sm:$0x1] %vm1840, %v1812
      %1845 = vst.msk [vmem:[#allocation5 + $0x30] sm:$0xff] %vm1837, %v1814
      %1846 = vst.msk [vmem:[#allocation5 + $0x38] sm:$0xff] %vm1837, %v1816
      %1847 = vst.msk [vmem:[#allocation5 + $0x40] sm:$0x1] %vm1840, %v1818
      %1848 = vst.msk [vmem:[#allocation5 + $0x48] sm:$0xff] %vm1837, %v1820
      %1849 = vst.msk [vmem:[#allocation5 + $0x50] sm:$0xff] %vm1837, %v1822
      %1850 = vst.msk [vmem:[#allocation5 + $0x58] sm:$0x1] %vm1840, %v1824
      %v1851 = vld [vmem:[#allocation5] sm:$0xff]
      %v1852 = vld [vmem:[#allocation5 + $0x8] sm:$0xff]
      %v1853 = vld [vmem:[#allocation5 + $0x10] sm:$0x1]
      %v1854 = vld [vmem:[#allocation5 + $0x18] sm:$0xff]
      %v1855 = vld [vmem:[#allocation5 + $0x20] sm:$0xff]
      %v1856 = vld [vmem:[#allocation5 + $0x28] sm:$0x1]
      %v1857 = vld [vmem:[#allocation5 + $0x30] sm:$0xff]
      %v1858 = vld [vmem:[#allocation5 + $0x38] sm:$0xff]
      %v1859 = vld [vmem:[#allocation5 + $0x40] sm:$0x1]
      %v1860 = vld [vmem:[#allocation5 + $0x48] sm:$0xff]
      %v1861 = vld [vmem:[#allocation5 + $0x50] sm:$0xff]
      %v1862 = vld [vmem:[#allocation5 + $0x58] sm:$0x1]
      %v1863 = vpack.c.bf16 %v1851, %v1851
      %v1864 = vpack.c.bf16 %v1852, %v1852
      %v1865 = vpack.c.bf16 %v1853, %v1853
      %v1866 = vpack.c.bf16 %v1854, %v1854
      %v1867 = vpack.c.bf16 %v1855, %v1855
      %v1868 = vpack.c.bf16 %v1856, %v1856
      %v1869 = vpack.c.bf16 %v1857, %v1857
      %v1870 = vpack.c.bf16 %v1858, %v1858
      %v1871 = vpack.c.bf16 %v1859, %v1859
      %v1872 = vpack.c.bf16 %v1860, %v1860
      %v1873 = vpack.c.bf16 %v1861, %v1861
      %v1874 = vpack.c.bf16 %v1862, %v1862
      %v1887 = vrot.slane %v1863, 3
      %v1888 = vrot.slane %v1864, 3
      %v1889 = vrot.slane %v1865, 3
      %v1890 = vrot.slane %v1866, 3
      %v1891 = vrot.slane %v1867, 3
      %v1892 = vrot.slane %v1868, 3
      %v1893 = vrot.slane %v1869, 3
      %v1894 = vrot.slane %v1870, 3
      %v1895 = vrot.slane %v1871, 3
      %v1896 = vrot.slane %v1872, 3
      %v1897 = vrot.slane %v1873, 3
      %v1898 = vrot.slane %v1874, 3
      %v1901 = vsel %vm1107, %v1863, %v1887
      %v1903 = vsel %vm1112, %v1863, %v1887
      %v1905 = vrot.slane %v1903, 1
      %v1906 = vsel %vm1116, %v1863, %v1887
      %v1908 = vrot.slane %v1906, 2
      %v1909 = vsel %vm1120, %v1863, %v1887
      %v1911 = vrot.slane %v1909, 3
      %v1914 = vsel %vm1107, %v1864, %v1888
      %v1916 = vsel %vm1112, %v1864, %v1888
      %v1918 = vrot.slane %v1916, 1
      %v1919 = vsel %vm1116, %v1864, %v1888
      %v1921 = vrot.slane %v1919, 2
      %v1922 = vsel %vm1120, %v1864, %v1888
      %v1924 = vrot.slane %v1922, 3
      %v1927 = vsel %vm1107, %v1865, %v1889
      %v1931 = vsel %vm1107, %v1866, %v1890
      %v1933 = vsel %vm1112, %v1866, %v1890
      %v1935 = vrot.slane %v1933, 1
      %v1936 = vsel %vm1116, %v1866, %v1890
      %v1938 = vrot.slane %v1936, 2
      %v1939 = vsel %vm1120, %v1866, %v1890
      %v1941 = vrot.slane %v1939, 3
      %v1944 = vsel %vm1107, %v1867, %v1891
      %v1946 = vsel %vm1112, %v1867, %v1891
      %v1948 = vrot.slane %v1946, 1
      %v1949 = vsel %vm1116, %v1867, %v1891
      %v1951 = vrot.slane %v1949, 2
      %v1952 = vsel %vm1120, %v1867, %v1891
      %v1954 = vrot.slane %v1952, 3
      %v1957 = vsel %vm1107, %v1868, %v1892
      %v1961 = vsel %vm1107, %v1869, %v1893
      %v1963 = vsel %vm1112, %v1869, %v1893
      %v1965 = vrot.slane %v1963, 1
      %v1966 = vsel %vm1116, %v1869, %v1893
      %v1968 = vrot.slane %v1966, 2
      %v1969 = vsel %vm1120, %v1869, %v1893
      %v1971 = vrot.slane %v1969, 3
      %v1974 = vsel %vm1107, %v1870, %v1894
      %v1976 = vsel %vm1112, %v1870, %v1894
      %v1978 = vrot.slane %v1976, 1
      %v1979 = vsel %vm1116, %v1870, %v1894
      %v1981 = vrot.slane %v1979, 2
      %v1982 = vsel %vm1120, %v1870, %v1894
      %v1984 = vrot.slane %v1982, 3
      %v1987 = vsel %vm1107, %v1871, %v1895
      %v1991 = vsel %vm1107, %v1872, %v1896
      %v1993 = vsel %vm1112, %v1872, %v1896
      %v1995 = vrot.slane %v1993, 1
      %v1996 = vsel %vm1116, %v1872, %v1896
      %v1998 = vrot.slane %v1996, 2
      %v1999 = vsel %vm1120, %v1872, %v1896
      %v2001 = vrot.slane %v1999, 3
      %v2004 = vsel %vm1107, %v1873, %v1897
      %v2006 = vsel %vm1112, %v1873, %v1897
      %v2008 = vrot.slane %v2006, 1
      %v2009 = vsel %vm1116, %v1873, %v1897
      %v2011 = vrot.slane %v2009, 2
      %v2012 = vsel %vm1120, %v1873, %v1897
      %v2014 = vrot.slane %v2012, 3
      %v2017 = vsel %vm1107, %v1874, %v1898
      %v2019 = vunpack.i.l.s16 %v1901
      %v2020 = vunpack.i.h.s16 %v1901
      %v2021 = vunpack.i.l.s16 %v1905
      %v2022 = vunpack.i.h.s16 %v1905
      %v2023 = vunpack.i.l.s16 %v1908
      %v2024 = vunpack.i.h.s16 %v1908
      %v2025 = vunpack.i.l.s16 %v1911
      %v2026 = vunpack.i.h.s16 %v1911
      %v2027 = vunpack.i.l.s16 %v1914
      %v2028 = vunpack.i.h.s16 %v1914
      %v2029 = vunpack.i.l.s16 %v1918
      %v2030 = vunpack.i.h.s16 %v1918
      %v2031 = vunpack.i.l.s16 %v1921
      %v2032 = vunpack.i.h.s16 %v1921
      %v2033 = vunpack.i.l.s16 %v1924
      %v2034 = vunpack.i.h.s16 %v1924
      %v2035 = vunpack.i.l.s16 %v1927
      %v2036 = vunpack.i.l.s16 %v1931
      %v2037 = vunpack.i.h.s16 %v1931
      %v2038 = vunpack.i.l.s16 %v1935
      %v2039 = vunpack.i.h.s16 %v1935
      %v2040 = vunpack.i.l.s16 %v1938
      %v2041 = vunpack.i.h.s16 %v1938
      %v2042 = vunpack.i.l.s16 %v1941
      %v2043 = vunpack.i.h.s16 %v1941
      %v2044 = vunpack.i.l.s16 %v1944
      %v2045 = vunpack.i.h.s16 %v1944
      %v2046 = vunpack.i.l.s16 %v1948
      %v2047 = vunpack.i.h.s16 %v1948
      %v2048 = vunpack.i.l.s16 %v1951
      %v2049 = vunpack.i.h.s16 %v1951
      %v2050 = vunpack.i.l.s16 %v1954
      %v2051 = vunpack.i.h.s16 %v1954
      %v2052 = vunpack.i.l.s16 %v1957
      %v2053 = vunpack.i.l.s16 %v1961
      %v2054 = vunpack.i.h.s16 %v1961
      %v2055 = vunpack.i.l.s16 %v1965
      %v2056 = vunpack.i.h.s16 %v1965
      %v2057 = vunpack.i.l.s16 %v1968
      %v2058 = vunpack.i.h.s16 %v1968
      %v2059 = vunpack.i.l.s16 %v1971
      %v2060 = vunpack.i.h.s16 %v1971
      %v2061 = vunpack.i.l.s16 %v1974
      %v2062 = vunpack.i.h.s16 %v1974
      %v2063 = vunpack.i.l.s16 %v1978
      %v2064 = vunpack.i.h.s16 %v1978
      %v2065 = vunpack.i.l.s16 %v1981
      %v2066 = vunpack.i.h.s16 %v1981
      %v2067 = vunpack.i.l.s16 %v1984
      %v2068 = vunpack.i.h.s16 %v1984
      %v2069 = vunpack.i.l.s16 %v1987
      %v2070 = vunpack.i.l.s16 %v1991
      %v2071 = vunpack.i.h.s16 %v1991
      %v2072 = vunpack.i.l.s16 %v1995
      %v2073 = vunpack.i.h.s16 %v1995
      %v2074 = vunpack.i.l.s16 %v1998
      %v2075 = vunpack.i.h.s16 %v1998
      %v2076 = vunpack.i.l.s16 %v2001
      %v2077 = vunpack.i.h.s16 %v2001
      %v2078 = vunpack.i.l.s16 %v2004
      %v2079 = vunpack.i.h.s16 %v2004
      %v2080 = vunpack.i.l.s16 %v2008
      %v2081 = vunpack.i.h.s16 %v2008
      %v2082 = vunpack.i.l.s16 %v2011
      %v2083 = vunpack.i.h.s16 %v2011
      %v2084 = vunpack.i.l.s16 %v2014
      %v2085 = vunpack.i.h.s16 %v2014
      %v2086 = vunpack.i.l.s16 %v2017
      %v2087 = vld [vmem:[%s3] sm:$0xf]
      %v2088 = vld [vmem:[%s3 + $0x4] sm:$0xf]
      %v2089 = vld [vmem:[%s3 + $0x8] sm:$0xf]
      %v2090 = vld [vmem:[%s3 + $0xc] sm:$0xf]
      %v2091 = vld [vmem:[%s3 + $0x10] sm:$0xf]
      %v2092 = vld [vmem:[%s3 + $0x14] sm:$0xf]
      %v2093 = vld [vmem:[%s3 + $0x18] sm:$0xf]
      %v2094 = vld [vmem:[%s3 + $0x1c] sm:$0xf]
      %v2095 = vld [vmem:[%s3 + $0x20] sm:$0xf]
      %v2096 = vld [vmem:[%s3 + $0x24] sm:$0xf]
      %v2097 = vld [vmem:[%s3 + $0x28] sm:$0xf]
      %v2098 = vld [vmem:[%s3 + $0x2c] sm:$0xf]
      %v2099 = vld [vmem:[%s4] sm:$0x1]
      %v2101 = vperm.slane %v2099, 0
      %v2103 = vpack.i.b16 %v2020, %v2019
      %v2104 = vpack.i.b16 %v2022, %v2021
      %v2105 = vpack.i.b16 %v2024, %v2023
      %v2106 = vpack.i.b16 %v2026, %v2025
      %v2107 = vpack.i.b16 %v2028, %v2027
      %v2108 = vpack.i.b16 %v2030, %v2029
      %v2109 = vpack.i.b16 %v2032, %v2031
      %v2110 = vpack.i.b16 %v2034, %v2033
      %v2111 = vpack.i.b16 %v2036, %v2035
      %v2112 = vpack.i.b16 %v2038, %v2037
      %v2113 = vpack.i.b16 %v2040, %v2039
      %v2114 = vpack.i.b16 %v2042, %v2041
      %v2115 = vpack.i.b16 %v2044, %v2043
      %v2116 = vpack.i.b16 %v2046, %v2045
      %v2117 = vpack.i.b16 %v2048, %v2047
      %v2118 = vpack.i.b16 %v2050, %v2049
      %v2119 = vpack.i.b16 %v2052, %v2051
      %v2120 = vpack.i.b16 %v2054, %v2053
      %v2121 = vpack.i.b16 %v2056, %v2055
      %v2122 = vpack.i.b16 %v2058, %v2057
      %v2123 = vpack.i.b16 %v2060, %v2059
      %v2124 = vpack.i.b16 %v2062, %v2061
      %v2125 = vpack.i.b16 %v2064, %v2063
      %v2126 = vpack.i.b16 %v2066, %v2065
      %v2127 = vpack.i.b16 %v2068, %v2067
      %v2128 = vpack.i.b16 %v2070, %v2069
      %v2129 = vpack.i.b16 %v2072, %v2071
      %v2130 = vpack.i.b16 %v2074, %v2073
      %v2131 = vpack.i.b16 %v2076, %v2075
      %v2132 = vpack.i.b16 %v2078, %v2077
      %v2133 = vpack.i.b16 %v2080, %v2079
      %v2134 = vpack.i.b16 %v2082, %v2081
      %v2135 = vpack.i.b16 %v2084, %v2083
      %v2136 = vpack.i.b16 %v2086, %v2085
      %2138 = vst [vmem:[#allocation1] ss:$9 sm:$0xff] %v2103
      %s2140 = scalar_lea.vmem [#allocation1], 1
      %2141 = vst [vmem:[%s2140] ss:$9 sm:$0xff] %v2104
      %s2143 = scalar_lea.vmem [#allocation1], 2
      %2144 = vst [vmem:[%s2143] ss:$9 sm:$0xff] %v2105
      %s2146 = scalar_lea.vmem [#allocation1], 3
      %2147 = vst [vmem:[%s2146] ss:$9 sm:$0xff] %v2106
      %s2149 = scalar_lea.vmem [#allocation1], 4
      %2150 = vst [vmem:[%s2149] ss:$9 sm:$0xff] %v2107
      %s2152 = scalar_lea.vmem [#allocation1], 5
      %2153 = vst [vmem:[%s2152] ss:$9 sm:$0xff] %v2108
      %s2155 = scalar_lea.vmem [#allocation1], 6
      %2156 = vst [vmem:[%s2155] ss:$9 sm:$0xff] %v2109
      %s2158 = scalar_lea.vmem [#allocation1], 7
      %2159 = vst [vmem:[%s2158] ss:$9 sm:$0xff] %v2110
      %v2160 = vld [vmem:[#allocation1] sm:$0xff]
      %2162 = vst [vmem:[#allocation1] ss:$9 sm:$0xff] %v2111
      %2164 = vst [vmem:[%s2140] ss:$9 sm:$0xff] %v2112
      %2166 = vst [vmem:[%s2143] ss:$9 sm:$0xff] %v2113
      %2168 = vst [vmem:[%s2146] ss:$9 sm:$0xff] %v2114
      %2170 = vst [vmem:[%s2149] ss:$9 sm:$0xff] %v2115
      %2172 = vst [vmem:[%s2152] ss:$9 sm:$0xff] %v2116
      %2174 = vst [vmem:[%s2155] ss:$9 sm:$0xff] %v2117
      %2176 = vst [vmem:[%s2158] ss:$9 sm:$0xff] %v2118
      %v2177 = vld [vmem:[#allocation1] sm:$0xff]
      %2179 = vst [vmem:[#allocation1] ss:$9 sm:$0xff] %v2119
      %2181 = vst [vmem:[%s2140] ss:$9 sm:$0xff] %v2120
      %2183 = vst [vmem:[%s2143] ss:$9 sm:$0xff] %v2121
      %2185 = vst [vmem:[%s2146] ss:$9 sm:$0xff] %v2122
      %2187 = vst [vmem:[%s2149] ss:$9 sm:$0xff] %v2123
      %2189 = vst [vmem:[%s2152] ss:$9 sm:$0xff] %v2124
      %2191 = vst [vmem:[%s2155] ss:$9 sm:$0xff] %v2125
      %2193 = vst [vmem:[%s2158] ss:$9 sm:$0xff] %v2126
      %v2194 = vld [vmem:[#allocation1] sm:$0xff]
      %2196 = vst [vmem:[#allocation1] ss:$9 sm:$0xff] %v2127
      %2198 = vst [vmem:[%s2140] ss:$9 sm:$0xff] %v2128
      %2200 = vst [vmem:[%s2143] ss:$9 sm:$0xff] %v2129
      %2202 = vst [vmem:[%s2146] ss:$9 sm:$0xff] %v2130
      %2204 = vst [vmem:[%s2149] ss:$9 sm:$0xff] %v2131
      %2206 = vst [vmem:[%s2152] ss:$9 sm:$0xff] %v2132
      %2208 = vst [vmem:[%s2155] ss:$9 sm:$0xff] %v2133
      %2210 = vst [vmem:[%s2158] ss:$9 sm:$0xff] %v2134
      %v2211 = vld [vmem:[#allocation1] sm:$0xff]
      %2213 = vst [vmem:[#allocation1] ss:$9 sm:$0xff] %v2135
      %2215 = vst [vmem:[%s2140] ss:$9 sm:$0xff] %v2136
      %v2216 = vld [vmem:[#allocation1] sm:$0xff]
      %v2229 = vunpack.c.l.b16 %v2087
      %v2230 = vunpack.c.l.b16 %v2088
      %v2231 = vunpack.c.l.b16 %v2089
      %v2232 = vunpack.c.l.b16 %v2090
      %v2233 = vunpack.c.l.b16 %v2091
      %v2234 = vunpack.c.l.b16 %v2092
      %v2235 = vunpack.c.l.b16 %v2093
      %v2236 = vunpack.c.l.b16 %v2094
      %v2237 = vunpack.c.l.b16 %v2095
      %v2238 = vunpack.c.l.b16 %v2096
      %v2239 = vunpack.c.l.b16 %v2097
      %v2240 = vunpack.c.l.b16 %v2098
      %v2241 = vpack.c.b16 %v2230, %v2229
      %v2242 = vpack.c.b16 %v2232, %v2231
      %v2243 = vpack.c.b16 %v2234, %v2233
      %v2244 = vpack.c.b16 %v2236, %v2235
      %v2245 = vpack.c.b16 %v2238, %v2237
      %v2246 = vpack.c.b16 %v2240, %v2239
      %vm2253 = vcmask 785408
      %v2254 = vsel %vm2253, %v2160, 0
      %v2256 = vsel %vm2253, %v2177, 0
      %v2258 = vsel %vm2253, %v2194, 0
      %v2260 = vsel %vm2253, %v2211, 0
      %v2262 = vsel %vm2253, %v2216, 0
      %2264 = vmatpush.bf16.msra.mxu0 0
      %2265 = vmatpush.bf16.msra.mxu0 0
      %2266 = vmatpush.bf16.msra.mxu0 %v2246
      %2267 = vmatpush.bf16.msra.mxu0 %v2245
      %2268 = vmatpush.bf16.msra.mxu0 %v2244
      %2269 = vmatpush.bf16.msra.mxu0 %v2243
      %2270 = vmatpush.bf16.msra.mxu0 %v2242
      %2271 = vmatpush.bf16.msra.mxu0 %v2241
      %2272 = vmatmul.bf16.gmra.mxu0 %v2254
      %v2273 = vpop.f32.mrf.mxu0
      %v2274 = vadd.f32 %v2101, %v2273
      %v2275 = vpop.f32.mrf.mxu0
      %v2276 = vadd.f32 %v2101, %v2275
      %2277 = vmatmul.bf16.gmra.mxu0 %v2256
      %v2278 = vpop.f32.mrf.mxu0
      %v2279 = vadd.f32 %v2101, %v2278
      %v2280 = vpop.f32.mrf.mxu0
      %v2281 = vadd.f32 %v2101, %v2280
      %2282 = vmatmul.bf16.gmra.mxu0 %v2258
      %v2283 = vpop.f32.mrf.mxu0
      %v2284 = vadd.f32 %v2101, %v2283
      %v2285 = vpop.f32.mrf.mxu0
      %v2286 = vadd.f32 %v2101, %v2285
      %2287 = vmatmul.bf16.gmra.mxu0 %v2260
      %v2288 = vpop.f32.mrf.mxu0
      %v2289 = vadd.f32 %v2101, %v2288
      %v2290 = vpop.f32.mrf.mxu0
      %v2291 = vadd.f32 %v2101, %v2290
      %2292 = vmatmul.bf16.gmra.mxu0 %v2262
      %v2293 = vpop.f32.mrf.mxu0
      %v2294 = vadd.f32 %v2101, %v2293
      %v2295 = vpop.f32.mrf.mxu0
      %2296 = vdwg.mxu0
      %v2297 = vmax.f32 %v2274, 0.0
      %v2298 = vmax.f32 %v2276, 0.0
      %v2299 = vmax.f32 %v2279, 0.0
      %v2300 = vmax.f32 %v2281, 0.0
      %v2301 = vmax.f32 %v2284, 0.0
      %v2302 = vmax.f32 %v2286, 0.0
      %v2303 = vmax.f32 %v2289, 0.0
      %v2304 = vmax.f32 %v2291, 0.0
      %v2305 = vmax.f32 %v2294, 0.0
      %v2315 = vrot.slane %v2297, 1
      %v2316 = vrot.slane %v2297, 2
      %v2317 = vrot.slane %v2297, 3
      %v2318 = vrot.slane %v2297, 4
      %v2319 = vrot.slane %v2297, 5
      %v2320 = vrot.slane %v2297, 6
      %v2321 = vrot.slane %v2297, 7
      %v2322 = vrot.slane %v2298, 1
      %v2323 = vrot.slane %v2298, 2
      %v2324 = vrot.slane %v2298, 3
      %v2325 = vrot.slane %v2298, 4
      %v2326 = vrot.slane %v2298, 5
      %v2327 = vrot.slane %v2298, 6
      %v2328 = vrot.slane %v2298, 7
      %v2329 = vrot.slane %v2299, 1
      %v2330 = vrot.slane %v2299, 2
      %v2331 = vrot.slane %v2299, 3
      %v2332 = vrot.slane %v2299, 4
      %v2333 = vrot.slane %v2299, 5
      %v2334 = vrot.slane %v2299, 6
      %v2335 = vrot.slane %v2299, 7
      %v2336 = vrot.slane %v2300, 1
      %v2337 = vrot.slane %v2300, 2
      %v2338 = vrot.slane %v2300, 3
      %v2339 = vrot.slane %v2300, 4
      %v2340 = vrot.slane %v2300, 5
      %v2341 = vrot.slane %v2300, 6
      %v2342 = vrot.slane %v2300, 7
      %v2343 = vrot.slane %v2301, 1
      %v2344 = vrot.slane %v2301, 2
      %v2345 = vrot.slane %v2301, 3
      %v2346 = vrot.slane %v2301, 4
      %v2347 = vrot.slane %v2301, 5
      %v2348 = vrot.slane %v2301, 6
      %v2349 = vrot.slane %v2301, 7
      %v2350 = vrot.slane %v2302, 1
      %v2351 = vrot.slane %v2302, 2
      %v2352 = vrot.slane %v2302, 3
      %v2353 = vrot.slane %v2302, 4
      %v2354 = vrot.slane %v2302, 5
      %v2355 = vrot.slane %v2302, 6
      %v2356 = vrot.slane %v2302, 7
      %v2357 = vrot.slane %v2303, 1
      %v2358 = vrot.slane %v2303, 2
      %v2359 = vrot.slane %v2303, 3
      %v2360 = vrot.slane %v2303, 4
      %v2361 = vrot.slane %v2303, 5
      %v2362 = vrot.slane %v2303, 6
      %v2363 = vrot.slane %v2303, 7
      %v2364 = vrot.slane %v2304, 1
      %v2365 = vrot.slane %v2304, 2
      %v2366 = vrot.slane %v2304, 3
      %v2367 = vrot.slane %v2304, 4
      %v2368 = vrot.slane %v2304, 5
      %v2369 = vrot.slane %v2304, 6
      %v2370 = vrot.slane %v2304, 7
      %v2371 = vrot.slane %v2305, 1
      %v2372 = vrot.slane %v2305, 2
      %v2373 = vrot.slane %v2305, 3
      %2374 = vst [vmem:[#allocation1] ss:$9 sm:$0xff] %v2297
      %s2375 = scalar_lea.vmem [#allocation1], 1
      %2376 = vst [vmem:[%s2375] ss:$9 sm:$0xff] %v2315
      %s2377 = scalar_lea.vmem [#allocation1], 2
      %2378 = vst [vmem:[%s2377] ss:$9 sm:$0xff] %v2316
      %s2379 = scalar_lea.vmem [#allocation1], 3
      %2380 = vst [vmem:[%s2379] ss:$9 sm:$0xff] %v2317
      %s2381 = scalar_lea.vmem [#allocation1], 4
      %2382 = vst [vmem:[%s2381] ss:$9 sm:$0xff] %v2318
      %s2383 = scalar_lea.vmem [#allocation1], 5
      %2384 = vst [vmem:[%s2383] ss:$9 sm:$0xff] %v2319
      %s2385 = scalar_lea.vmem [#allocation1], 6
      %2386 = vst [vmem:[%s2385] ss:$9 sm:$0xff] %v2320
      %s2387 = scalar_lea.vmem [#allocation1], 7
      %2388 = vst [vmem:[%s2387] ss:$9 sm:$0xff] %v2321
      %v2389 = vld [vmem:[#allocation1] sm:$0xff]
      %2390 = vst [vmem:[#allocation1] ss:$9 sm:$0xff] %v2298
      %2391 = vst [vmem:[%s2375] ss:$9 sm:$0xff] %v2322
      %2392 = vst [vmem:[%s2377] ss:$9 sm:$0xff] %v2323
      %2393 = vst [vmem:[%s2379] ss:$9 sm:$0xff] %v2324
      %2394 = vst [vmem:[%s2381] ss:$9 sm:$0xff] %v2325
      %2395 = vst [vmem:[%s2383] ss:$9 sm:$0xff] %v2326
      %2396 = vst [vmem:[%s2385] ss:$9 sm:$0xff] %v2327
      %2397 = vst [vmem:[%s2387] ss:$9 sm:$0xff] %v2328
      %v2398 = vld [vmem:[#allocation1] sm:$0xff]
      %2399 = vst [vmem:[#allocation1] ss:$9 sm:$0xff] %v2299
      %v2400 = vld [vmem:[#allocation1] sm:$0xff]
      %2401 = vst [vmem:[#allocation1] ss:$9 sm:$0xff] %v2329
      %2402 = vst [vmem:[%s2375] ss:$9 sm:$0xff] %v2330
      %2403 = vst [vmem:[%s2377] ss:$9 sm:$0xff] %v2331
      %2404 = vst [vmem:[%s2379] ss:$9 sm:$0xff] %v2332
      %2405 = vst [vmem:[%s2381] ss:$9 sm:$0xff] %v2333
      %2406 = vst [vmem:[%s2383] ss:$9 sm:$0xff] %v2334
      %2407 = vst [vmem:[%s2385] ss:$9 sm:$0xff] %v2335
      %2408 = vst [vmem:[%s2387] ss:$9 sm:$0xff] %v2300
      %v2409 = vld [vmem:[#allocation1] sm:$0xff]
      %2410 = vst [vmem:[#allocation1] ss:$9 sm:$0xff] %v2336
      %2411 = vst [vmem:[%s2375] ss:$9 sm:$0xff] %v2337
      %2412 = vst [vmem:[%s2377] ss:$9 sm:$0xff] %v2338
      %2413 = vst [vmem:[%s2379] ss:$9 sm:$0xff] %v2339
      %2414 = vst [vmem:[%s2381] ss:$9 sm:$0xff] %v2340
      %2415 = vst [vmem:[%s2383] ss:$9 sm:$0xff] %v2341
      %2416 = vst [vmem:[%s2385] ss:$9 sm:$0xff] %v2342
      %2417 = vst [vmem:[%s2387] ss:$9 sm:$0xff] %v2301
      %v2418 = vld [vmem:[#allocation1] sm:$0xff]
      %2419 = vst [vmem:[#allocation1] ss:$9 sm:$0xff] %v2343
      %v2420 = vld [vmem:[#allocation1] sm:$0xff]
      %2421 = vst [vmem:[#allocation1] ss:$9 sm:$0xff] %v2344
      %2422 = vst [vmem:[%s2375] ss:$9 sm:$0xff] %v2345
      %2423 = vst [vmem:[%s2377] ss:$9 sm:$0xff] %v2346
      %2424 = vst [vmem:[%s2379] ss:$9 sm:$0xff] %v2347
      %2425 = vst [vmem:[%s2381] ss:$9 sm:$0xff] %v2348
      %2426 = vst [vmem:[%s2383] ss:$9 sm:$0xff] %v2349
      %2427 = vst [vmem:[%s2385] ss:$9 sm:$0xff] %v2302
      %2428 = vst [vmem:[%s2387] ss:$9 sm:$0xff] %v2350
      %v2429 = vld [vmem:[#allocation1] sm:$0xff]
      %2430 = vst [vmem:[#allocation1] ss:$9 sm:$0xff] %v2351
      %2431 = vst [vmem:[%s2375] ss:$9 sm:$0xff] %v2352
      %2432 = vst [vmem:[%s2377] ss:$9 sm:$0xff] %v2353
      %2433 = vst [vmem:[%s2379] ss:$9 sm:$0xff] %v2354
      %2434 = vst [vmem:[%s2381] ss:$9 sm:$0xff] %v2355
      %2435 = vst [vmem:[%s2383] ss:$9 sm:$0xff] %v2356
      %2436 = vst [vmem:[%s2385] ss:$9 sm:$0xff] %v2303
      %2437 = vst [vmem:[%s2387] ss:$9 sm:$0xff] %v2357
      %v2438 = vld [vmem:[#allocation1] sm:$0xff]
      %2439 = vst [vmem:[#allocation1] ss:$9 sm:$0xff] %v2358
      %v2440 = vld [vmem:[#allocation1] sm:$0xff]
      %2441 = vst [vmem:[#allocation1] ss:$9 sm:$0xff] %v2359
      %2442 = vst [vmem:[%s2375] ss:$9 sm:$0xff] %v2360
      %2443 = vst [vmem:[%s2377] ss:$9 sm:$0xff] %v2361
      %2444 = vst [vmem:[%s2379] ss:$9 sm:$0xff] %v2362
      %2445 = vst [vmem:[%s2381] ss:$9 sm:$0xff] %v2363
      %2446 = vst [vmem:[%s2383] ss:$9 sm:$0xff] %v2304
      %2447 = vst [vmem:[%s2385] ss:$9 sm:$0xff] %v2364
      %2448 = vst [vmem:[%s2387] ss:$9 sm:$0xff] %v2365
      %v2449 = vld [vmem:[#allocation1] sm:$0xff]
      %2450 = vst [vmem:[#allocation1] ss:$9 sm:$0xff] %v2366
      %2451 = vst [vmem:[%s2375] ss:$9 sm:$0xff] %v2367
      %2452 = vst [vmem:[%s2377] ss:$9 sm:$0xff] %v2368
      %2453 = vst [vmem:[%s2379] ss:$9 sm:$0xff] %v2369
      %2454 = vst [vmem:[%s2381] ss:$9 sm:$0xff] %v2370
      %2455 = vst [vmem:[%s2383] ss:$9 sm:$0xff] %v2305
      %2456 = vst [vmem:[%s2385] ss:$9 sm:$0xff] %v2371
      %2457 = vst [vmem:[%s2387] ss:$9 sm:$0xff] %v2372
      %v2458 = vld [vmem:[#allocation1] sm:$0xff]
      %2459 = vst [vmem:[#allocation1] ss:$9 sm:$0xff] %v2373
      %v2460 = vld [vmem:[#allocation1] sm:$0xff]
      %2473 = vst.msk [vmem:[#allocation4 + $0x1] sm:$0xff] %vm1485, %v2389
      %2474 = vst.msk [vmem:[#allocation4 + $0x9] sm:$0xff] %vm1485, %v2398
      %2475 = vst.msk [vmem:[#allocation4 + $0x11] sm:$0x1] %vm1668, %v2400
      %2476 = vst.msk [vmem:[#allocation4 + $0x19] sm:$0xff] %vm1485, %v2409
      %2477 = vst.msk [vmem:[#allocation4 + $0x21] sm:$0xff] %vm1485, %v2418
      %2478 = vst.msk [vmem:[#allocation4 + $0x29] sm:$0x1] %vm1668, %v2420
      %2479 = vst.msk [vmem:[#allocation4 + $0x31] sm:$0xff] %vm1485, %v2429
      %2480 = vst.msk [vmem:[#allocation4 + $0x39] sm:$0xff] %vm1485, %v2438
      %2481 = vst.msk [vmem:[#allocation4 + $0x41] sm:$0x1] %vm1668, %v2440
      %2482 = vst.msk [vmem:[#allocation4 + $0x49] sm:$0xff] %vm1485, %v2449
      %2483 = vst.msk [vmem:[#allocation4 + $0x51] sm:$0xff] %vm1485, %v2458
      %2484 = vst.msk [vmem:[#allocation4 + $0x59] sm:$0x1] %vm1668, %v2460
      %v2485 = vld [vmem:[#allocation4] sm:$0xff]
      %v2486 = vld [vmem:[#allocation4 + $0x8] sm:$0xff]
      %v2487 = vld [vmem:[#allocation4 + $0x10] sm:$0x1]
      %v2488 = vld [vmem:[#allocation4 + $0x18] sm:$0xff]
      %v2489 = vld [vmem:[#allocation4 + $0x20] sm:$0xff]
      %v2490 = vld [vmem:[#allocation4 + $0x28] sm:$0x1]
      %v2491 = vld [vmem:[#allocation4 + $0x30] sm:$0xff]
      %v2492 = vld [vmem:[#allocation4 + $0x38] sm:$0xff]
      %v2493 = vld [vmem:[#allocation4 + $0x40] sm:$0x1]
      %v2494 = vld [vmem:[#allocation4 + $0x48] sm:$0xff]
      %v2495 = vld [vmem:[#allocation4 + $0x50] sm:$0xff]
      %v2496 = vld [vmem:[#allocation4 + $0x58] sm:$0x1]
      %2497 = vst.msk [vmem:[#allocation5] sm:$0xff] %vm1485, %v2485
      %2498 = vst.msk [vmem:[#allocation5 + $0x8] sm:$0xff] %vm1485, %v2486
      %2499 = vst.msk [vmem:[#allocation5 + $0x10] sm:$0x1] %vm1668, %v2487
      %2500 = vst.msk [vmem:[#allocation5 + $0x18] sm:$0xff] %vm1485, %v2488
      %2501 = vst.msk [vmem:[#allocation5 + $0x20] sm:$0xff] %vm1485, %v2489
      %2502 = vst.msk [vmem:[#allocation5 + $0x28] sm:$0x1] %vm1668, %v2490
      %2503 = vst.msk [vmem:[#allocation5 + $0x30] sm:$0xff] %vm1485, %v2491
      %2504 = vst.msk [vmem:[#allocation5 + $0x38] sm:$0xff] %vm1485, %v2492
      %2505 = vst.msk [vmem:[#allocation5 + $0x40] sm:$0x1] %vm1668, %v2493
      %2506 = vst.msk [vmem:[#allocation5 + $0x48] sm:$0xff] %vm1485, %v2494
      %2507 = vst.msk [vmem:[#allocation5 + $0x50] sm:$0xff] %vm1485, %v2495
      %2508 = vst.msk [vmem:[#allocation5 + $0x58] sm:$0x1] %vm1668, %v2496
      %v2509 = vld [vmem:[#allocation4 + $0x1] sm:$0xff]
      %v2510 = vld [vmem:[#allocation4 + $0x9] sm:$0xff]
      %v2511 = vld [vmem:[#allocation4 + $0x11] sm:$0x1]
      %v2512 = vld [vmem:[#allocation4 + $0x19] sm:$0xff]
      %v2513 = vld [vmem:[#allocation4 + $0x21] sm:$0xff]
      %v2514 = vld [vmem:[#allocation4 + $0x29] sm:$0x1]
      %v2515 = vld [vmem:[#allocation4 + $0x31] sm:$0xff]
      %v2516 = vld [vmem:[#allocation4 + $0x39] sm:$0xff]
      %v2517 = vld [vmem:[#allocation4 + $0x41] sm:$0x1]
      %v2518 = vld [vmem:[#allocation4 + $0x49] sm:$0xff]
      %v2519 = vld [vmem:[#allocation4 + $0x51] sm:$0xff]
      %v2520 = vld [vmem:[#allocation4 + $0x59] sm:$0x1]
      %2533 = vrot.lane.b32.xlu0 %v2509, 32
      %v2534 = vpop.permute.xlu0 %2533
      %2535 = vrot.lane.b32.xlu0 %v2510, 32
      %v2536 = vpop.permute.xlu0 %2535
      %2537 = vrot.lane.b32.xlu0 %v2511, 32
      %v2538 = vpop.permute.xlu0 %2537
      %2539 = vrot.lane.b32.xlu0 %v2512, 32
      %v2540 = vpop.permute.xlu0 %2539
      %2541 = vrot.lane.b32.xlu0 %v2513, 32
      %v2542 = vpop.permute.xlu0 %2541
      %2543 = vrot.lane.b32.xlu0 %v2514, 32
      %v2544 = vpop.permute.xlu0 %2543
      %2545 = vrot.lane.b32.xlu0 %v2515, 32
      %v2546 = vpop.permute.xlu0 %2545
      %2547 = vrot.lane.b32.xlu0 %v2516, 32
      %v2548 = vpop.permute.xlu0 %2547
      %2549 = vrot.lane.b32.xlu0 %v2517, 32
      %v2550 = vpop.permute.xlu0 %2549
      %2551 = vrot.lane.b32.xlu0 %v2518, 32
      %v2552 = vpop.permute.xlu0 %2551
      %2553 = vrot.lane.b32.xlu0 %v2519, 32
      %v2554 = vpop.permute.xlu0 %2553
      %2555 = vrot.lane.b32.xlu0 %v2520, 32
      %v2556 = vpop.permute.xlu0 %2555
      %2569 = vst.msk [vmem:[#allocation5] sm:$0xff] %vm1763, %v2534
      %2570 = vst.msk [vmem:[#allocation5 + $0x8] sm:$0xff] %vm1763, %v2536
      %2571 = vst.msk [vmem:[#allocation5 + $0x10] sm:$0x1] %vm1766, %v2538
      %2572 = vst.msk [vmem:[#allocation5 + $0x18] sm:$0xff] %vm1763, %v2540
      %2573 = vst.msk [vmem:[#allocation5 + $0x20] sm:$0xff] %vm1763, %v2542
      %2574 = vst.msk [vmem:[#allocation5 + $0x28] sm:$0x1] %vm1766, %v2544
      %2575 = vst.msk [vmem:[#allocation5 + $0x30] sm:$0xff] %vm1763, %v2546
      %2576 = vst.msk [vmem:[#allocation5 + $0x38] sm:$0xff] %vm1763, %v2548
      %2577 = vst.msk [vmem:[#allocation5 + $0x40] sm:$0x1] %vm1766, %v2550
      %2578 = vst.msk [vmem:[#allocation5 + $0x48] sm:$0xff] %vm1763, %v2552
      %2579 = vst.msk [vmem:[#allocation5 + $0x50] sm:$0xff] %vm1763, %v2554
      %2580 = vst.msk [vmem:[#allocation5 + $0x58] sm:$0x1] %vm1766, %v2556
      %v2581 = vld [vmem:[#allocation4 + $0x2] sm:$0xff]
      %v2582 = vld [vmem:[#allocation4 + $0xa] sm:$0xff]
      %v2583 = vld [vmem:[#allocation4 + $0x12] sm:$0x1]
      %v2584 = vld [vmem:[#allocation4 + $0x1a] sm:$0xff]
      %v2585 = vld [vmem:[#allocation4 + $0x22] sm:$0xff]
      %v2586 = vld [vmem:[#allocation4 + $0x2a] sm:$0x1]
      %v2587 = vld [vmem:[#allocation4 + $0x32] sm:$0xff]
      %v2588 = vld [vmem:[#allocation4 + $0x3a] sm:$0xff]
      %v2589 = vld [vmem:[#allocation4 + $0x42] sm:$0x1]
      %v2590 = vld [vmem:[#allocation4 + $0x4a] sm:$0xff]
      %v2591 = vld [vmem:[#allocation4 + $0x52] sm:$0xff]
      %v2592 = vld [vmem:[#allocation4 + $0x5a] sm:$0x1]
      %2605 = vrot.lane.b32.xlu0 %v2581, 64
      %v2606 = vpop.permute.xlu0 %2605
      %2607 = vrot.lane.b32.xlu0 %v2582, 64
      %v2608 = vpop.permute.xlu0 %2607
      %2609 = vrot.lane.b32.xlu0 %v2583, 64
      %v2610 = vpop.permute.xlu0 %2609
      %2611 = vrot.lane.b32.xlu0 %v2584, 64
      %v2612 = vpop.permute.xlu0 %2611
      %2613 = vrot.lane.b32.xlu0 %v2585, 64
      %v2614 = vpop.permute.xlu0 %2613
      %2615 = vrot.lane.b32.xlu0 %v2586, 64
      %v2616 = vpop.permute.xlu0 %2615
      %2617 = vrot.lane.b32.xlu0 %v2587, 64
      %v2618 = vpop.permute.xlu0 %2617
      %2619 = vrot.lane.b32.xlu0 %v2588, 64
      %v2620 = vpop.permute.xlu0 %2619
      %2621 = vrot.lane.b32.xlu0 %v2589, 64
      %v2622 = vpop.permute.xlu0 %2621
      %2623 = vrot.lane.b32.xlu0 %v2590, 64
      %v2624 = vpop.permute.xlu0 %2623
      %2625 = vrot.lane.b32.xlu0 %v2591, 64
      %v2626 = vpop.permute.xlu0 %2625
      %2627 = vrot.lane.b32.xlu0 %v2592, 64
      %v2628 = vpop.permute.xlu0 %2627
      %2641 = vst.msk [vmem:[#allocation5] sm:$0xff] %vm1837, %v2606
      %2642 = vst.msk [vmem:[#allocation5 + $0x8] sm:$0xff] %vm1837, %v2608
      %2643 = vst.msk [vmem:[#allocation5 + $0x10] sm:$0x1] %vm1840, %v2610
      %2644 = vst.msk [vmem:[#allocation5 + $0x18] sm:$0xff] %vm1837, %v2612
      %2645 = vst.msk [vmem:[#allocation5 + $0x20] sm:$0xff] %vm1837, %v2614
      %2646 = vst.msk [vmem:[#allocation5 + $0x28] sm:$0x1] %vm1840, %v2616
      %2647 = vst.msk [vmem:[#allocation5 + $0x30] sm:$0xff] %vm1837, %v2618
      %2648 = vst.msk [vmem:[#allocation5 + $0x38] sm:$0xff] %vm1837, %v2620
      %2649 = vst.msk [vmem:[#allocation5 + $0x40] sm:$0x1] %vm1840, %v2622
      %2650 = vst.msk [vmem:[#allocation5 + $0x48] sm:$0xff] %vm1837, %v2624
      %2651 = vst.msk [vmem:[#allocation5 + $0x50] sm:$0xff] %vm1837, %v2626
      %2652 = vst.msk [vmem:[#allocation5 + $0x58] sm:$0x1] %vm1840, %v2628
      %v2653 = vld [vmem:[#allocation5] sm:$0xff]
      %v2654 = vld [vmem:[#allocation5 + $0x8] sm:$0xff]
      %v2655 = vld [vmem:[#allocation5 + $0x10] sm:$0x1]
      %v2656 = vld [vmem:[#allocation5 + $0x18] sm:$0xff]
      %v2657 = vld [vmem:[#allocation5 + $0x20] sm:$0xff]
      %v2658 = vld [vmem:[#allocation5 + $0x28] sm:$0x1]
      %v2659 = vld [vmem:[#allocation5 + $0x30] sm:$0xff]
      %v2660 = vld [vmem:[#allocation5 + $0x38] sm:$0xff]
      %v2661 = vld [vmem:[#allocation5 + $0x40] sm:$0x1]
      %v2662 = vld [vmem:[#allocation5 + $0x48] sm:$0xff]
      %v2663 = vld [vmem:[#allocation5 + $0x50] sm:$0xff]
      %v2664 = vld [vmem:[#allocation5 + $0x58] sm:$0x1]
      %v2665 = vpack.c.bf16 %v2653, %v2653
      %v2666 = vpack.c.bf16 %v2654, %v2654
      %v2667 = vpack.c.bf16 %v2655, %v2655
      %v2668 = vpack.c.bf16 %v2656, %v2656
      %v2669 = vpack.c.bf16 %v2657, %v2657
      %v2670 = vpack.c.bf16 %v2658, %v2658
      %v2671 = vpack.c.bf16 %v2659, %v2659
      %v2672 = vpack.c.bf16 %v2660, %v2660
      %v2673 = vpack.c.bf16 %v2661, %v2661
      %v2674 = vpack.c.bf16 %v2662, %v2662
      %v2675 = vpack.c.bf16 %v2663, %v2663
      %v2676 = vpack.c.bf16 %v2664, %v2664
      %v2689 = vrot.slane %v2665, 3
      %v2690 = vrot.slane %v2666, 3
      %v2691 = vrot.slane %v2667, 3
      %v2692 = vrot.slane %v2668, 3
      %v2693 = vrot.slane %v2669, 3
      %v2694 = vrot.slane %v2670, 3
      %v2695 = vrot.slane %v2671, 3
      %v2696 = vrot.slane %v2672, 3
      %v2697 = vrot.slane %v2673, 3
      %v2698 = vrot.slane %v2674, 3
      %v2699 = vrot.slane %v2675, 3
      %v2700 = vrot.slane %v2676, 3
      %v2703 = vsel %vm1107, %v2665, %v2689
      %v2705 = vsel %vm1112, %v2665, %v2689
      %v2707 = vrot.slane %v2705, 1
      %v2708 = vsel %vm1116, %v2665, %v2689
      %v2710 = vrot.slane %v2708, 2
      %v2711 = vsel %vm1120, %v2665, %v2689
      %v2713 = vrot.slane %v2711, 3
      %v2716 = vsel %vm1107, %v2666, %v2690
      %v2718 = vsel %vm1112, %v2666, %v2690
      %v2720 = vrot.slane %v2718, 1
      %v2721 = vsel %vm1116, %v2666, %v2690
      %v2723 = vrot.slane %v2721, 2
      %v2724 = vsel %vm1120, %v2666, %v2690
      %v2726 = vrot.slane %v2724, 3
      %v2729 = vsel %vm1107, %v2667, %v2691
      %v2733 = vsel %vm1107, %v2668, %v2692
      %v2735 = vsel %vm1112, %v2668, %v2692
      %v2737 = vrot.slane %v2735, 1
      %v2738 = vsel %vm1116, %v2668, %v2692
      %v2740 = vrot.slane %v2738, 2
      %v2741 = vsel %vm1120, %v2668, %v2692
      %v2743 = vrot.slane %v2741, 3
      %v2746 = vsel %vm1107, %v2669, %v2693
      %v2748 = vsel %vm1112, %v2669, %v2693
      %v2750 = vrot.slane %v2748, 1
      %v2751 = vsel %vm1116, %v2669, %v2693
      %v2753 = vrot.slane %v2751, 2
      %v2754 = vsel %vm1120, %v2669, %v2693
      %v2756 = vrot.slane %v2754, 3
      %v2759 = vsel %vm1107, %v2670, %v2694
      %v2763 = vsel %vm1107, %v2671, %v2695
      %v2765 = vsel %vm1112, %v2671, %v2695
      %v2767 = vrot.slane %v2765, 1
      %v2768 = vsel %vm1116, %v2671, %v2695
      %v2770 = vrot.slane %v2768, 2
      %v2771 = vsel %vm1120, %v2671, %v2695
      %v2773 = vrot.slane %v2771, 3
      %v2776 = vsel %vm1107, %v2672, %v2696
      %v2778 = vsel %vm1112, %v2672, %v2696
      %v2780 = vrot.slane %v2778, 1
      %v2781 = vsel %vm1116, %v2672, %v2696
      %v2783 = vrot.slane %v2781, 2
      %v2784 = vsel %vm1120, %v2672, %v2696
      %v2786 = vrot.slane %v2784, 3
      %v2789 = vsel %vm1107, %v2673, %v2697
      %v2793 = vsel %vm1107, %v2674, %v2698
      %v2795 = vsel %vm1112, %v2674, %v2698
      %v2797 = vrot.slane %v2795, 1
      %v2798 = vsel %vm1116, %v2674, %v2698
      %v2800 = vrot.slane %v2798, 2
      %v2801 = vsel %vm1120, %v2674, %v2698
      %v2803 = vrot.slane %v2801, 3
      %v2806 = vsel %vm1107, %v2675, %v2699
      %v2808 = vsel %vm1112, %v2675, %v2699
      %v2810 = vrot.slane %v2808, 1
      %v2811 = vsel %vm1116, %v2675, %v2699
      %v2813 = vrot.slane %v2811, 2
      %v2814 = vsel %vm1120, %v2675, %v2699
      %v2816 = vrot.slane %v2814, 3
      %v2819 = vsel %vm1107, %v2676, %v2700
      %v2821 = vunpack.i.l.s16 %v2703
      %v2822 = vunpack.i.h.s16 %v2703
      %v2823 = vunpack.i.l.s16 %v2707
      %v2824 = vunpack.i.h.s16 %v2707
      %v2825 = vunpack.i.l.s16 %v2710
      %v2826 = vunpack.i.h.s16 %v2710
      %v2827 = vunpack.i.l.s16 %v2713
      %v2828 = vunpack.i.h.s16 %v2713
      %v2829 = vunpack.i.l.s16 %v2716
      %v2830 = vunpack.i.h.s16 %v2716
      %v2831 = vunpack.i.l.s16 %v2720
      %v2832 = vunpack.i.h.s16 %v2720
      %v2833 = vunpack.i.l.s16 %v2723
      %v2834 = vunpack.i.h.s16 %v2723
      %v2835 = vunpack.i.l.s16 %v2726
      %v2836 = vunpack.i.h.s16 %v2726
      %v2837 = vunpack.i.l.s16 %v2729
      %v2838 = vunpack.i.l.s16 %v2733
      %v2839 = vunpack.i.h.s16 %v2733
      %v2840 = vunpack.i.l.s16 %v2737
      %v2841 = vunpack.i.h.s16 %v2737
      %v2842 = vunpack.i.l.s16 %v2740
      %v2843 = vunpack.i.h.s16 %v2740
      %v2844 = vunpack.i.l.s16 %v2743
      %v2845 = vunpack.i.h.s16 %v2743
      %v2846 = vunpack.i.l.s16 %v2746
      %v2847 = vunpack.i.h.s16 %v2746
      %v2848 = vunpack.i.l.s16 %v2750
      %v2849 = vunpack.i.h.s16 %v2750
      %v2850 = vunpack.i.l.s16 %v2753
      %v2851 = vunpack.i.h.s16 %v2753
      %v2852 = vunpack.i.l.s16 %v2756
      %v2853 = vunpack.i.h.s16 %v2756
      %v2854 = vunpack.i.l.s16 %v2759
      %v2855 = vunpack.i.l.s16 %v2763
      %v2856 = vunpack.i.h.s16 %v2763
      %v2857 = vunpack.i.l.s16 %v2767
      %v2858 = vunpack.i.h.s16 %v2767
      %v2859 = vunpack.i.l.s16 %v2770
      %v2860 = vunpack.i.h.s16 %v2770
      %v2861 = vunpack.i.l.s16 %v2773
      %v2862 = vunpack.i.h.s16 %v2773
      %v2863 = vunpack.i.l.s16 %v2776
      %v2864 = vunpack.i.h.s16 %v2776
      %v2865 = vunpack.i.l.s16 %v2780
      %v2866 = vunpack.i.h.s16 %v2780
      %v2867 = vunpack.i.l.s16 %v2783
      %v2868 = vunpack.i.h.s16 %v2783
      %v2869 = vunpack.i.l.s16 %v2786
      %v2870 = vunpack.i.h.s16 %v2786
      %v2871 = vunpack.i.l.s16 %v2789
      %v2872 = vunpack.i.l.s16 %v2793
      %v2873 = vunpack.i.h.s16 %v2793
      %v2874 = vunpack.i.l.s16 %v2797
      %v2875 = vunpack.i.h.s16 %v2797
      %v2876 = vunpack.i.l.s16 %v2800
      %v2877 = vunpack.i.h.s16 %v2800
      %v2878 = vunpack.i.l.s16 %v2803
      %v2879 = vunpack.i.h.s16 %v2803
      %v2880 = vunpack.i.l.s16 %v2806
      %v2881 = vunpack.i.h.s16 %v2806
      %v2882 = vunpack.i.l.s16 %v2810
      %v2883 = vunpack.i.h.s16 %v2810
      %v2884 = vunpack.i.l.s16 %v2813
      %v2885 = vunpack.i.h.s16 %v2813
      %v2886 = vunpack.i.l.s16 %v2816
      %v2887 = vunpack.i.h.s16 %v2816
      %v2888 = vunpack.i.l.s16 %v2819
      %v2889 = vld [vmem:[%s5] sm:$0xf]
      %v2890 = vld [vmem:[%s5 + $0x4] sm:$0xf]
      %v2891 = vld [vmem:[%s5 + $0x8] sm:$0xf]
      %v2892 = vld [vmem:[%s5 + $0xc] sm:$0xf]
      %v2893 = vld [vmem:[%s5 + $0x10] sm:$0xf]
      %v2894 = vld [vmem:[%s5 + $0x14] sm:$0xf]
      %v2895 = vld [vmem:[%s5 + $0x18] sm:$0xf]
      %v2896 = vld [vmem:[%s5 + $0x1c] sm:$0xf]
      %v2897 = vld [vmem:[%s5 + $0x20] sm:$0xf]
      %v2898 = vld [vmem:[%s5 + $0x24] sm:$0xf]
      %v2899 = vld [vmem:[%s5 + $0x28] sm:$0xf]
      %v2900 = vld [vmem:[%s5 + $0x2c] sm:$0xf]
      %v2901 = vld [vmem:[%s6] sm:$0x1]
      %v2903 = vperm.slane %v2901, 0
      %v2905 = vpack.i.b16 %v2822, %v2821
      %v2906 = vpack.i.b16 %v2824, %v2823
      %v2907 = vpack.i.b16 %v2826, %v2825
      %v2908 = vpack.i.b16 %v2828, %v2827
      %v2909 = vpack.i.b16 %v2830, %v2829
      %v2910 = vpack.i.b16 %v2832, %v2831
      %v2911 = vpack.i.b16 %v2834, %v2833
      %v2912 = vpack.i.b16 %v2836, %v2835
      %v2913 = vpack.i.b16 %v2838, %v2837
      %v2914 = vpack.i.b16 %v2840, %v2839
      %v2915 = vpack.i.b16 %v2842, %v2841
      %v2916 = vpack.i.b16 %v2844, %v2843
      %v2917 = vpack.i.b16 %v2846, %v2845
      %v2918 = vpack.i.b16 %v2848, %v2847
      %v2919 = vpack.i.b16 %v2850, %v2849
      %v2920 = vpack.i.b16 %v2852, %v2851
      %v2921 = vpack.i.b16 %v2854, %v2853
      %v2922 = vpack.i.b16 %v2856, %v2855
      %v2923 = vpack.i.b16 %v2858, %v2857
      %v2924 = vpack.i.b16 %v2860, %v2859
      %v2925 = vpack.i.b16 %v2862, %v2861
      %v2926 = vpack.i.b16 %v2864, %v2863
      %v2927 = vpack.i.b16 %v2866, %v2865
      %v2928 = vpack.i.b16 %v2868, %v2867
      %v2929 = vpack.i.b16 %v2870, %v2869
      %v2930 = vpack.i.b16 %v2872, %v2871
      %v2931 = vpack.i.b16 %v2874, %v2873
      %v2932 = vpack.i.b16 %v2876, %v2875
      %v2933 = vpack.i.b16 %v2878, %v2877
      %v2934 = vpack.i.b16 %v2880, %v2879
      %v2935 = vpack.i.b16 %v2882, %v2881
      %v2936 = vpack.i.b16 %v2884, %v2883
      %v2937 = vpack.i.b16 %v2886, %v2885
      %v2938 = vpack.i.b16 %v2888, %v2887
      %2940 = vst [vmem:[#allocation1] ss:$9 sm:$0xff] %v2905
      %s2942 = scalar_lea.vmem [#allocation1], 1
      %2943 = vst [vmem:[%s2942] ss:$9 sm:$0xff] %v2906
      %s2945 = scalar_lea.vmem [#allocation1], 2
      %2946 = vst [vmem:[%s2945] ss:$9 sm:$0xff] %v2907
      %s2948 = scalar_lea.vmem [#allocation1], 3
      %2949 = vst [vmem:[%s2948] ss:$9 sm:$0xff] %v2908
      %s2951 = scalar_lea.vmem [#allocation1], 4
      %2952 = vst [vmem:[%s2951] ss:$9 sm:$0xff] %v2909
      %s2954 = scalar_lea.vmem [#allocation1], 5
      %2955 = vst [vmem:[%s2954] ss:$9 sm:$0xff] %v2910
      %s2957 = scalar_lea.vmem [#allocation1], 6
      %2958 = vst [vmem:[%s2957] ss:$9 sm:$0xff] %v2911
      %s2960 = scalar_lea.vmem [#allocation1], 7
      %2961 = vst [vmem:[%s2960] ss:$9 sm:$0xff] %v2912
      %v2962 = vld [vmem:[#allocation1] sm:$0xff]
      %2964 = vst [vmem:[#allocation1] ss:$9 sm:$0xff] %v2913
      %2966 = vst [vmem:[%s2942] ss:$9 sm:$0xff] %v2914
      %2968 = vst [vmem:[%s2945] ss:$9 sm:$0xff] %v2915
      %2970 = vst [vmem:[%s2948] ss:$9 sm:$0xff] %v2916
      %2972 = vst [vmem:[%s2951] ss:$9 sm:$0xff] %v2917
      %2974 = vst [vmem:[%s2954] ss:$9 sm:$0xff] %v2918
      %2976 = vst [vmem:[%s2957] ss:$9 sm:$0xff] %v2919
      %2978 = vst [vmem:[%s2960] ss:$9 sm:$0xff] %v2920
      %v2979 = vld [vmem:[#allocation1] sm:$0xff]
      %2981 = vst [vmem:[#allocation1] ss:$9 sm:$0xff] %v2921
      %2983 = vst [vmem:[%s2942] ss:$9 sm:$0xff] %v2922
      %2985 = vst [vmem:[%s2945] ss:$9 sm:$0xff] %v2923
      %2987 = vst [vmem:[%s2948] ss:$9 sm:$0xff] %v2924
      %2989 = vst [vmem:[%s2951] ss:$9 sm:$0xff] %v2925
      %2991 = vst [vmem:[%s2954] ss:$9 sm:$0xff] %v2926
      %2993 = vst [vmem:[%s2957] ss:$9 sm:$0xff] %v2927
      %2995 = vst [vmem:[%s2960] ss:$9 sm:$0xff] %v2928
      %v2996 = vld [vmem:[#allocation1] sm:$0xff]
      %2998 = vst [vmem:[#allocation1] ss:$9 sm:$0xff] %v2929
      %3000 = vst [vmem:[%s2942] ss:$9 sm:$0xff] %v2930
      %3002 = vst [vmem:[%s2945] ss:$9 sm:$0xff] %v2931
      %3004 = vst [vmem:[%s2948] ss:$9 sm:$0xff] %v2932
      %3006 = vst [vmem:[%s2951] ss:$9 sm:$0xff] %v2933
      %3008 = vst [vmem:[%s2954] ss:$9 sm:$0xff] %v2934
      %3010 = vst [vmem:[%s2957] ss:$9 sm:$0xff] %v2935
      %3012 = vst [vmem:[%s2960] ss:$9 sm:$0xff] %v2936
      %v3013 = vld [vmem:[#allocation1] sm:$0xff]
      %3015 = vst [vmem:[#allocation1] ss:$9 sm:$0xff] %v2937
      %3017 = vst [vmem:[%s2942] ss:$9 sm:$0xff] %v2938
      %v3018 = vld [vmem:[#allocation1] sm:$0xff]
      %v3031 = vunpack.c.l.b16 %v2889
      %v3032 = vunpack.c.l.b16 %v2890
      %v3033 = vunpack.c.l.b16 %v2891
      %v3034 = vunpack.c.l.b16 %v2892
      %v3035 = vunpack.c.l.b16 %v2893
      %v3036 = vunpack.c.l.b16 %v2894
      %v3037 = vunpack.c.l.b16 %v2895
      %v3038 = vunpack.c.l.b16 %v2896
      %v3039 = vunpack.c.l.b16 %v2897
      %v3040 = vunpack.c.l.b16 %v2898
      %v3041 = vunpack.c.l.b16 %v2899
      %v3042 = vunpack.c.l.b16 %v2900
      %v3043 = vpack.c.b16 %v3032, %v3031
      %v3044 = vpack.c.b16 %v3034, %v3033
      %v3045 = vpack.c.b16 %v3036, %v3035
      %v3046 = vpack.c.b16 %v3038, %v3037
      %v3047 = vpack.c.b16 %v3040, %v3039
      %v3048 = vpack.c.b16 %v3042, %v3041
      %v3055 = vsel %vm2253, %v2962, 0
      %v3057 = vsel %vm2253, %v2979, 0
      %v3059 = vsel %vm2253, %v2996, 0
      %v3061 = vsel %vm2253, %v3013, 0
      %v3063 = vsel %vm2253, %v3018, 0
      %3065 = vmatpush.bf16.msra.mxu0 0
      %3066 = vmatpush.bf16.msra.mxu0 0
      %3067 = vmatpush.bf16.msra.mxu0 %v3048
      %3068 = vmatpush.bf16.msra.mxu0 %v3047
      %3069 = vmatpush.bf16.msra.mxu0 %v3046
      %3070 = vmatpush.bf16.msra.mxu0 %v3045
      %3071 = vmatpush.bf16.msra.mxu0 %v3044
      %3072 = vmatpush.bf16.msra.mxu0 %v3043
      %3073 = vmatmul.bf16.gmra.mxu0 %v3055
      %v3074 = vpop.f32.mrf.mxu0
      %v3075 = vadd.f32 %v2903, %v3074
      %v3076 = vpop.f32.mrf.mxu0
      %v3077 = vadd.f32 %v2903, %v3076
      %3078 = vmatmul.bf16.gmra.mxu0 %v3057
      %v3079 = vpop.f32.mrf.mxu0
      %v3080 = vadd.f32 %v2903, %v3079
      %v3081 = vpop.f32.mrf.mxu0
      %v3082 = vadd.f32 %v2903, %v3081
      %3083 = vmatmul.bf16.gmra.mxu0 %v3059
      %v3084 = vpop.f32.mrf.mxu0
      %v3085 = vadd.f32 %v2903, %v3084
      %v3086 = vpop.f32.mrf.mxu0
      %v3087 = vadd.f32 %v2903, %v3086
      %3088 = vmatmul.bf16.gmra.mxu0 %v3061
      %v3089 = vpop.f32.mrf.mxu0
      %v3090 = vadd.f32 %v2903, %v3089
      %v3091 = vpop.f32.mrf.mxu0
      %v3092 = vadd.f32 %v2903, %v3091
      %3093 = vmatmul.bf16.gmra.mxu0 %v3063
      %v3094 = vpop.f32.mrf.mxu0
      %v3095 = vadd.f32 %v2903, %v3094
      %v3096 = vpop.f32.mrf.mxu0
      %3097 = vdwg.mxu0
      %v3098 = vmax.f32 %v3075, 0.0
      %v3099 = vmax.f32 %v3077, 0.0
      %v3100 = vmax.f32 %v3080, 0.0
      %v3101 = vmax.f32 %v3082, 0.0
      %v3102 = vmax.f32 %v3085, 0.0
      %v3103 = vmax.f32 %v3087, 0.0
      %v3104 = vmax.f32 %v3090, 0.0
      %v3105 = vmax.f32 %v3092, 0.0
      %v3106 = vmax.f32 %v3095, 0.0
      %v3107 = vsel %vm1485, %v3098, 0.0
      %v3108 = vsel %vm1485, %v3099, 0.0
      %v3109 = vadd.f32 %v3107, %v3108
      %v3110 = vsel %vm1485, %v3100, 0.0
      %v3111 = vadd.f32 %v3109, %v3110
      %v3112 = vsel %vm1485, %v3101, 0.0
      %v3113 = vadd.f32 %v3111, %v3112
      %v3114 = vsel %vm1485, %v3102, 0.0
      %v3115 = vadd.f32 %v3113, %v3114
      %v3116 = vsel %vm1485, %v3103, 0.0
      %v3117 = vadd.f32 %v3115, %v3116
      %v3118 = vsel %vm1485, %v3104, 0.0
      %v3119 = vadd.f32 %v3117, %v3118
      %v3120 = vsel %vm1485, %v3105, 0.0
      %v3121 = vadd.f32 %v3119, %v3120
      %vm3122 = vcmask 257024
      %v3123 = vsel %vm3122, %v3106, 0.0
      %v3124 = vadd.f32 %v3121, %v3123
      %v3125 = vrot.slane %v3124, 4
      %v3126 = vadd.f32 %v3124, %v3125
      %v3127 = vrot.slane %v3126, 2
      %v3128 = vadd.f32 %v3126, %v3127
      %v3129 = vrot.slane %v3128, 1
      %v3130 = vadd.f32 %v3128, %v3129
      %v3131 = vrcp.pop 68.0
      %v3132 = vmul.f32 68.0, %v3131
      %v3133 = vsub.f32 1.0, %v3132
      %v3134 = vmul.f32 %v3131, %v3133
      %v3135 = vadd.f32 %v3131, %v3134
      %vm3136 = vweird.f32 %v3131
      %v3137 = vsel %vm3136, %v3131, %v3135
      %v3138 = vmul.f32 %v3130, %v3137
      %v3139 = vld [vmem:[%s7] sm:$0xff]
      %v3140 = vld [vmem:[%s7 + $0x8] sm:$0xff]
      %v3141 = vld [vmem:[%s7 + $0x10] sm:$0xff]
      %v3142 = vld [vmem:[%s7 + $0x18] sm:$0xff]
      %v3144 = vsel %vm1485, %v3138, 0
      %3146 = vmatpush.msra.mxu0 0.0
      %3147 = vmatpush.msra.mxu0 0.0
      %3148 = vmatpush.msra.mxu0 0.0
      %3149 = vmatpush.msra.mxu0 0.0
      %3150 = vmatpush.msra.mxu0 0.0
      %3151 = vmatpush.msra.mxu0 0.0
      %3152 = vmatpush.msra.mxu0 0.0
      %3153 = vmatpush.msra.mxu0 0.0
      %3154 = vmatpush.msra.mxu0 0.0
      %3155 = vmatpush.msra.mxu0 0.0
      %3156 = vmatpush.msra.mxu0 0.0
      %3157 = vmatpush.msra.mxu0 0.0
      %3158 = vmatpush.msra.mxu0 %v3142
      %3159 = vmatpush.msra.mxu0 %v3141
      %3160 = vmatpush.msra.mxu0 %v3140
      %3161 = vmatpush.msra.mxu0 %v3139
      %3162 = vmatmul.f32.gmra.mxu0 %v3144
      %v3163 = vpop.f32.mrf.mxu0
      %v3164 = vadd.f32 0.0, %v3163
      %3165 = vdwg.mxu0
      %v3166 = vmax.f32 %v3164, 0.0
      %v3167 = vld [vmem:[%s8] sm:$0x3]
      %vm3168 = vcmask 15360
      %v3170 = vsel %vm3168, %v3166, 0
      %vm3172 = vcmask 1041408
      %v3174 = vsel %vm3172, %v3167, 0
      %3176 = vmatpush.msra.mxu0 0.0
      %3177 = vmatpush.msra.mxu0 0.0
      %3178 = vmatpush.msra.mxu0 0.0
      %3179 = vmatpush.msra.mxu0 0.0
      %3180 = vmatpush.msra.mxu0 0.0
      %3181 = vmatpush.msra.mxu0 0.0
      %3182 = vmatpush.msra.mxu0 0.0
      %3183 = vmatpush.msra.mxu0 0.0
      %3184 = vmatpush.msra.mxu0 0.0
      %3185 = vmatpush.msra.mxu0 0.0
      %3186 = vmatpush.msra.mxu0 0.0
      %3187 = vmatpush.msra.mxu0 0.0
      %3188 = vmatpush.msra.mxu0 0.0
      %3189 = vmatpush.msra.mxu0 0.0
      %3190 = vmatpush.msra.mxu0 0.0
      %3191 = vmatpush.msra.mxu0 %v3174
      %3192 = vmatmul.f32.gmra.mxu0 %v3170
      %v3193 = vpop.f32.mrf.mxu0
      %v3194 = vadd.f32 0.0, %v3193
      %3195 = vdwg.mxu0
      %v3196 = vxor.u32 %v3194, 2147483648
      %v3197 = vmul.f32 %v3196, 1.442695
      %v3198 = vpow.pop %v3197
      %v3199 = vadd.f32 %v3198, 1.0
      %v3200 = vrcp.pop %v3199
      %v3201 = vmul.f32 %v3199, %v3200
      %v3202 = vsub.f32 1.0, %v3201
      %v3203 = vmul.f32 %v3200, %v3202
      %v3204 = vadd.f32 %v3200, %v3203
      %vm3205 = vweird.f32 %v3199
      %vm3206 = vweird.f32 %v3200
      %vm3207 = vmor %vm3205, %vm3206
      %v3208 = vsel %vm3207, %v3200, %v3204
      %v3209 = vand.u32 2147483647, %v3199
      %vm3210 = vcmp.eq.f32.partialorder %v3209, 8.507059e+37
      %v3211 = vand.u32 %v3199, 2147483648
      %v3212 = vor.u32 1.1754944e-38, %v3211
      %v3213 = vsel %vm3210, %v3212, %v3208
      %v3214 = vmul.f32 1.0, %v3213
      %v3215 = vperm.slane %v3214, 0
      %v3216 = vmul.f32 %v3098, %v3215
      %v3217 = vmul.f32 %v3099, %v3215
      %v3218 = vmul.f32 %v3100, %v3215
      %v3219 = vmul.f32 %v3101, %v3215
      %v3220 = vmul.f32 %v3102, %v3215
      %v3221 = vmul.f32 %v3103, %v3215
      %v3222 = vmul.f32 %v3104, %v3215
      %v3223 = vmul.f32 %v3105, %v3215
      %v3224 = vmul.f32 %v3106, %v3215
      %v3234 = vrot.slane %v3216, 1
      %v3235 = vrot.slane %v3216, 2
      %v3236 = vrot.slane %v3216, 3
      %v3237 = vrot.slane %v3216, 4
      %v3238 = vrot.slane %v3216, 5
      %v3239 = vrot.slane %v3216, 6
      %v3240 = vrot.slane %v3216, 7
      %v3241 = vrot.slane %v3217, 1
      %v3242 = vrot.slane %v3217, 2
      %v3243 = vrot.slane %v3217, 3
      %v3244 = vrot.slane %v3217, 4
      %v3245 = vrot.slane %v3217, 5
      %v3246 = vrot.slane %v3217, 6
      %v3247 = vrot.slane %v3217, 7
      %v3248 = vrot.slane %v3218, 1
      %v3249 = vrot.slane %v3218, 2
      %v3250 = vrot.slane %v3218, 3
      %v3251 = vrot.slane %v3218, 4
      %v3252 = vrot.slane %v3218, 5
      %v3253 = vrot.slane %v3218, 6
      %v3254 = vrot.slane %v3218, 7
      %v3255 = vrot.slane %v3219, 1
      %v3256 = vrot.slane %v3219, 2
      %v3257 = vrot.slane %v3219, 3
      %v3258 = vrot.slane %v3219, 4
      %v3259 = vrot.slane %v3219, 5
      %v3260 = vrot.slane %v3219, 6
      %v3261 = vrot.slane %v3219, 7
      %v3262 = vrot.slane %v3220, 1
      %v3263 = vrot.slane %v3220, 2
      %v3264 = vrot.slane %v3220, 3
      %v3265 = vrot.slane %v3220, 4
      %v3266 = vrot.slane %v3220, 5
      %v3267 = vrot.slane %v3220, 6
      %v3268 = vrot.slane %v3220, 7
      %v3269 = vrot.slane %v3221, 1
      %v3270 = vrot.slane %v3221, 2
      %v3271 = vrot.slane %v3221, 3
      %v3272 = vrot.slane %v3221, 4
      %v3273 = vrot.slane %v3221, 5
      %v3274 = vrot.slane %v3221, 6
      %v3275 = vrot.slane %v3221, 7
      %v3276 = vrot.slane %v3222, 1
      %v3277 = vrot.slane %v3222, 2
      %v3278 = vrot.slane %v3222, 3
      %v3279 = vrot.slane %v3222, 4
      %v3280 = vrot.slane %v3222, 5
      %v3281 = vrot.slane %v3222, 6
      %v3282 = vrot.slane %v3222, 7
      %v3283 = vrot.slane %v3223, 1
      %v3284 = vrot.slane %v3223, 2
      %v3285 = vrot.slane %v3223, 3
      %v3286 = vrot.slane %v3223, 4
      %v3287 = vrot.slane %v3223, 5
      %v3288 = vrot.slane %v3223, 6
      %v3289 = vrot.slane %v3223, 7
      %v3290 = vrot.slane %v3224, 1
      %v3291 = vrot.slane %v3224, 2
      %v3292 = vrot.slane %v3224, 3
      %3293 = vst [vmem:[#allocation1] ss:$9 sm:$0xff] %v3216
      %s3294 = scalar_lea.vmem [#allocation1], 1
      %3295 = vst [vmem:[%s3294] ss:$9 sm:$0xff] %v3234
      %s3296 = scalar_lea.vmem [#allocation1], 2
      %3297 = vst [vmem:[%s3296] ss:$9 sm:$0xff] %v3235
      %s3298 = scalar_lea.vmem [#allocation1], 3
      %3299 = vst [vmem:[%s3298] ss:$9 sm:$0xff] %v3236
      %s3300 = scalar_lea.vmem [#allocation1], 4
      %3301 = vst [vmem:[%s3300] ss:$9 sm:$0xff] %v3237
      %s3302 = scalar_lea.vmem [#allocation1], 5
      %3303 = vst [vmem:[%s3302] ss:$9 sm:$0xff] %v3238
      %s3304 = scalar_lea.vmem [#allocation1], 6
      %3305 = vst [vmem:[%s3304] ss:$9 sm:$0xff] %v3239
      %s3306 = scalar_lea.vmem [#allocation1], 7
      %3307 = vst [vmem:[%s3306] ss:$9 sm:$0xff] %v3240
      %v3308 = vld [vmem:[#allocation1] sm:$0xff]
      %3309 = vst [vmem:[#allocation1] ss:$9 sm:$0xff] %v3217
      %3310 = vst [vmem:[%s3294] ss:$9 sm:$0xff] %v3241
      %3311 = vst [vmem:[%s3296] ss:$9 sm:$0xff] %v3242
      %3312 = vst [vmem:[%s3298] ss:$9 sm:$0xff] %v3243
      %3313 = vst [vmem:[%s3300] ss:$9 sm:$0xff] %v3244
      %3314 = vst [vmem:[%s3302] ss:$9 sm:$0xff] %v3245
      %3315 = vst [vmem:[%s3304] ss:$9 sm:$0xff] %v3246
      %3316 = vst [vmem:[%s3306] ss:$9 sm:$0xff] %v3247
      %v3317 = vld [vmem:[#allocation1] sm:$0xff]
      %3318 = vst [vmem:[#allocation1] ss:$9 sm:$0xff] %v3218
      %v3319 = vld [vmem:[#allocation1] sm:$0xff]
      %3320 = vst [vmem:[#allocation1] ss:$9 sm:$0xff] %v3248
      %3321 = vst [vmem:[%s3294] ss:$9 sm:$0xff] %v3249
      %3322 = vst [vmem:[%s3296] ss:$9 sm:$0xff] %v3250
      %3323 = vst [vmem:[%s3298] ss:$9 sm:$0xff] %v3251
      %3324 = vst [vmem:[%s3300] ss:$9 sm:$0xff] %v3252
      %3325 = vst [vmem:[%s3302] ss:$9 sm:$0xff] %v3253
      %3326 = vst [vmem:[%s3304] ss:$9 sm:$0xff] %v3254
      %3327 = vst [vmem:[%s3306] ss:$9 sm:$0xff] %v3219
      %v3328 = vld [vmem:[#allocation1] sm:$0xff]
      %3329 = vst [vmem:[#allocation1] ss:$9 sm:$0xff] %v3255
      %3330 = vst [vmem:[%s3294] ss:$9 sm:$0xff] %v3256
      %3331 = vst [vmem:[%s3296] ss:$9 sm:$0xff] %v3257
      %3332 = vst [vmem:[%s3298] ss:$9 sm:$0xff] %v3258
      %3333 = vst [vmem:[%s3300] ss:$9 sm:$0xff] %v3259
      %3334 = vst [vmem:[%s3302] ss:$9 sm:$0xff] %v3260
      %3335 = vst [vmem:[%s3304] ss:$9 sm:$0xff] %v3261
      %3336 = vst [vmem:[%s3306] ss:$9 sm:$0xff] %v3220
      %v3337 = vld [vmem:[#allocation1] sm:$0xff]
      %3338 = vst [vmem:[#allocation1] ss:$9 sm:$0xff] %v3262
      %v3339 = vld [vmem:[#allocation1] sm:$0xff]
      %3340 = vst [vmem:[#allocation1] ss:$9 sm:$0xff] %v3263
      %3341 = vst [vmem:[%s3294] ss:$9 sm:$0xff] %v3264
      %3342 = vst [vmem:[%s3296] ss:$9 sm:$0xff] %v3265
      %3343 = vst [vmem:[%s3298] ss:$9 sm:$0xff] %v3266
      %3344 = vst [vmem:[%s3300] ss:$9 sm:$0xff] %v3267
      %3345 = vst [vmem:[%s3302] ss:$9 sm:$0xff] %v3268
      %3346 = vst [vmem:[%s3304] ss:$9 sm:$0xff] %v3221
      %3347 = vst [vmem:[%s3306] ss:$9 sm:$0xff] %v3269
      %v3348 = vld [vmem:[#allocation1] sm:$0xff]
      %3349 = vst [vmem:[#allocation1] ss:$9 sm:$0xff] %v3270
      %3350 = vst [vmem:[%s3294] ss:$9 sm:$0xff] %v3271
      %3351 = vst [vmem:[%s3296] ss:$9 sm:$0xff] %v3272
      %3352 = vst [vmem:[%s3298] ss:$9 sm:$0xff] %v3273
      %3353 = vst [vmem:[%s3300] ss:$9 sm:$0xff] %v3274
      %3354 = vst [vmem:[%s3302] ss:$9 sm:$0xff] %v3275
      %3355 = vst [vmem:[%s3304] ss:$9 sm:$0xff] %v3222
      %3356 = vst [vmem:[%s3306] ss:$9 sm:$0xff] %v3276
      %v3357 = vld [vmem:[#allocation1] sm:$0xff]
      %3358 = vst [vmem:[#allocation1] ss:$9 sm:$0xff] %v3277
      %v3359 = vld [vmem:[#allocation1] sm:$0xff]
      %3360 = vst [vmem:[#allocation1] ss:$9 sm:$0xff] %v3278
      %3361 = vst [vmem:[%s3294] ss:$9 sm:$0xff] %v3279
      %3362 = vst [vmem:[%s3296] ss:$9 sm:$0xff] %v3280
      %3363 = vst [vmem:[%s3298] ss:$9 sm:$0xff] %v3281
      %3364 = vst [vmem:[%s3300] ss:$9 sm:$0xff] %v3282
      %3365 = vst [vmem:[%s3302] ss:$9 sm:$0xff] %v3223
      %3366 = vst [vmem:[%s3304] ss:$9 sm:$0xff] %v3283
      %3367 = vst [vmem:[%s3306] ss:$9 sm:$0xff] %v3284
      %v3368 = vld [vmem:[#allocation1] sm:$0xff]
      %3369 = vst [vmem:[#allocation1] ss:$9 sm:$0xff] %v3285
      %3370 = vst [vmem:[%s3294] ss:$9 sm:$0xff] %v3286
      %3371 = vst [vmem:[%s3296] ss:$9 sm:$0xff] %v3287
      %3372 = vst [vmem:[%s3298] ss:$9 sm:$0xff] %v3288
      %3373 = vst [vmem:[%s3300] ss:$9 sm:$0xff] %v3289
      %3374 = vst [vmem:[%s3302] ss:$9 sm:$0xff] %v3224
      %3375 = vst [vmem:[%s3304] ss:$9 sm:$0xff] %v3290
      %3376 = vst [vmem:[%s3306] ss:$9 sm:$0xff] %v3291
      %v3377 = vld [vmem:[#allocation1] sm:$0xff]
      %3378 = vst [vmem:[#allocation1] ss:$9 sm:$0xff] %v3292
      %v3379 = vld [vmem:[#allocation1] sm:$0xff]
      %3392 = vst.msk [vmem:[%s332] sm:$0xff] %vm1485, %v3308
      %3393 = vst.msk [vmem:[%s332 + $0x8] sm:$0xff] %vm1485, %v3317
      %3394 = vst.msk [vmem:[%s332 + $0x10] sm:$0x1] %vm1668, %v3319
      %3395 = vst.msk [vmem:[%s332 + $0x18] sm:$0xff] %vm1485, %v3328
      %3396 = vst.msk [vmem:[%s332 + $0x20] sm:$0xff] %vm1485, %v3337
      %3397 = vst.msk [vmem:[%s332 + $0x28] sm:$0x1] %vm1668, %v3339
      %3398 = vst.msk [vmem:[%s332 + $0x30] sm:$0xff] %vm1485, %v3348
      %3399 = vst.msk [vmem:[%s332 + $0x38] sm:$0xff] %vm1485, %v3357
      %3400 = vst.msk [vmem:[%s332 + $0x40] sm:$0x1] %vm1668, %v3359
      %3401 = vst.msk [vmem:[%s332 + $0x48] sm:$0xff] %vm1485, %v3368
      %3402 = vst.msk [vmem:[%s332 + $0x50] sm:$0xff] %vm1485, %v3377
      %3403 = vst.msk [vmem:[%s332 + $0x58] sm:$0x1] %vm1668, %v3379
      %p3404 = scmp.lt.s32.totalorder %s20, 1
      %s3405 = scalar_select %p3404, %s20, 1
      %s3406 = smul.addr %s3405, 12
      %s3407 = smul.addr %s3406, 8
      %s3408 = scalar_lea.vmem %s9, %s3407
      // Predicated region
      $region57: #{tpu_custom_call.1} parent=55 // pred_check
        %p3409 = pneg %p232
      $region58: #{tpu_custom_call.1} parent=55 // pred_check_branch
        %3411 = sbr.rel (%p3409) target = $region60
      $region59: #{tpu_custom_call.1} parent=55 // pred_region
        _
      $region60: #{tpu_custom_call.1} parent=55 // pred_fallthru
        _
    $region56: #{tpu_custom_call.1} parent=5 // pred_fallthru
      _
    %p3412 = scmp.le.s32.totalorder 2, %s15
    // Predicated region
    $region61: #{tpu_custom_call.1} parent=5 // pred_check
      %p3413 = pneg %p3412
    $region62: #{tpu_custom_call.1} parent=5 // pred_check_branch
      %3415 = sbr.rel (%p3413) target = $region64
    $region63: #{tpu_custom_call.1} parent=5 // pred_region
      %s3416 = ssub.s32 %s15, 2
      // Predicated region
      $region65: #{tpu_custom_call.1} parent=63 // pred_check
        %p3417 = pneg %p238
      $region66: #{tpu_custom_call.1} parent=63 // pred_check_branch
        %3419 = sbr.rel (%p3417) target = $region68
      $region67: #{tpu_custom_call.1} parent=63 // pred_region
        %p3420 = scmp.lt.s32.totalorder %s21, 1
        %s3421 = scalar_select %p3420, %s21, 1
        %s3422 = smul.addr %s3421, 12
        %s3423 = smul.addr %s3422, 8
        %s3424 = scalar_lea.vmem %s9, %s3423
      $region68: #{tpu_custom_call.1} parent=63 // pred_fallthru
        _
    $region64: #{tpu_custom_call.1} parent=5 // pred_fallthru
      _
  $region6: #{tpu_custom_call.1} parent=0 // loop_footer
    %s19 = sadd.s32 1, %s15
  $region7: #{tpu_custom_call.1} parent=0 // loop_footer_branch
    %14 = sbr.rel target = $region3
  $region8: #{tpu_custom_call.1} parent=0 // loop_exit
    _

</llo_original>
